<compile_context>
chip_gen: v7x
topology: tpu7x:2x2x1
jax: 0.10.0
libtpu: 0.0.40
codegen_flags: <defaults>
</compile_context>

<pallas_src>
import math

import jax
import jax.numpy as jnp
from jax import lax
from jax.experimental import pallas as pl
from jax.experimental.pallas import tpu as pltpu

# ------------------------- static model config -------------------------
OUT_CHANNELS    = 2
HIDDEN_CHANNELS = 64
FILTER_CHANNELS = 128
N_HEADS         = 2
N_LAYERS        = 2
KERNEL_SIZE     = 3
EMOIN_CHANNELS  = 8
HEAD_DIM        = HIDDEN_CHANNELS // N_HEADS
NEG_FILL        = -1e4            # value used by masked_fill in VITS attention
MXU_DTYPE       = jnp.bfloat16    # matmul operand dtype (f32 accumulation everywhere)
# p_dropout is irrelevant at inference (nn.Dropout == identity in eval mode).

# packed-parameter order (wrapper <-> kernel contract)
PACKED_ORDER = [
    "cond_w",      # [E, H]
    "vec_h",       # [3 + K, H]  rows: cond_b, f0p_b, pre_b, f0p_w[0..K-1]
    "pre_w",       # [K*H, H]    tap-major unfolded prenet conv weight
    "wqkv",        # [L, H, 3H]  fused per-layer Q|K|V (heads concatenated)
    "bqkv",        # [L, 1, 3H]
    "wo",          # [L, H, H]   fused per-layer output projection
    "ffn1_w",      # [L, K*H, F] tap-major unfolded FFN conv1 weight
    "ffn1_b",      # [L, 1, F]
    "ffn2_w",      # [L, K, F, H] per-tap FFN conv2 weight (accumulated tap matmuls)
    "layer_vec",   # [L, 6, H]   rows: bo, g0, beta0, ffn2_b, g1, beta1
    "proj_w",      # [H, OUT]
    "proj_b",      # [1, OUT]
]


# ------------------------- shared math helpers (kernel AND reference) ----------
def _mm(a, b):
  """Matmul with bf16 operands (MXU-friendly on v5e/v6e/v7x) and f32 accumulation."""
  return jnp.dot(a.astype(MXU_DTYPE), b.astype(MXU_DTYPE),
                 preferred_element_type=jnp.float32)


def _shift_time(y, s):
  """z[..., t, :] = y[..., t + s, :], zero outside [0, T).  Pure static slice +
  concat on the sublane axis: no T x T matmul, no cross-sequence leakage for the
  batched [BB, T, C] case."""
  if s == 0:
    return y
  T = y.shape[-2]
  pad = jnp.zeros(y.shape[:-2] + (abs(s), y.shape[-1]), y.dtype)
  if s > 0:
    return jnp.concatenate([y[..., s:, :], pad], axis=-2)
  return jnp.concatenate([pad, y[..., :T + s, :]], axis=-2)


def _conv1d_unfolded(x, w_unf, b, pad):
  """PyTorch Conv1d in [.., T, Cin] layout, all K taps fused into ONE matmul.

  w_unf: [K*Cin, Cout] with rows [j*Cin:(j+1)*Cin] = tap-j weight.  b: [1, Cout].
  out[t] = b + sum_j x[t + j - pad] @ w[j];  pad == K-1 gives the causal FFN conv.
  """
  Cin = x.shape[-1]
  K = w_unf.shape[0] // Cin
  taps = [_shift_time(x, j - pad) for j in range(K)]
  unf = jnp.concatenate(taps, axis=-1)                       # [.., T, K*Cin]
  y = _mm(unf.reshape(-1, K * Cin), w_unf)                   # single MXU matmul
  return y.reshape(x.shape[:-1] + (w_unf.shape[-1],)) + b


def _conv1d_tapsum(x, w_taps, b, pad):
  """PyTorch Conv1d as K accumulated matmuls in f32 (no K*Cin unfold slab).

  w_taps: [K, Cin, Cout].  Used for the wide FFN conv2 (K*F = 384) where the
  unfolded intermediate (f32 + bf16 copies) would dominate VMEM.
  """
  K, Cin, Cout = w_taps.shape
  acc = None
  for j in range(K):
    y = _mm(_shift_time(x, j - pad).reshape(-1, Cin), w_taps[j])
    acc = y if acc is None else acc + y
  return acc.reshape(x.shape[:-1] + (Cout,)) + b


def _f0_prenet(f0, w, b, pad=1):
  """Conv1d 1->H (Cin == 1) kept as broadcast multiplies (no MXU needed).
  f0: [.., T, 1], w: [K, H] (row j = tap-j weight), b: [1, H]."""
  out = b
  for j in range(w.shape[0]):
    out = out + _shift_time(f0, j - pad) * w[j:j + 1]        # [..,T,1] * [1,H]
  return out


def _layer_norm(x, gamma, beta, eps=1e-5):
  mu = jnp.mean(x, axis=-1, keepdims=True)
  var = jnp.mean(jnp.square(x - mu), axis=-1, keepdims=True)
  return (x - mu) * lax.rsqrt(var + eps) * gamma + beta


def _attention(x, wqkv, bqkv, wo, bo, causal_bias, recip):
  """Causal multi-head self-attention (VITS MultiHeadAttention, window_size=None).

  x: [N, T, H].  wqkv: [H, 3H] (Q|K|V, heads concatenated), bqkv: [1, 3H],
  wo: [H, H] (heads stacked along rows), bo: [1, H].
  Scores / softmax stay in f32; only matmul operands go through bf16.
  Softmax is normalized AFTER the P@V matmul (p = exp(s - m) <= 1, safe in bf16),
  so the per-row 1/sum multiply touches [N,T,dk] instead of [N,T,T].
  """
  N, T, H = x.shape
  dk = H // N_HEADS
  scale = 1.0 / math.sqrt(dk)
  qkv = _mm(x.reshape(N * T, H), wqkv).reshape(N, T, 3 * H) + bqkv
  ctx = []
  for h in range(N_HEADS):
    q = qkv[..., h * dk:(h + 1) * dk]
    k = qkv[..., H + h * dk: H + (h + 1) * dk]
    v = qkv[..., 2 * H + h * dk: 2 * H + (h + 1) * dk]
    s = jnp.einsum('bqd,bkd->bqk',
                   (q * scale).astype(MXU_DTYPE), k.astype(MXU_DTYPE),
                   preferred_element_type=jnp.float32)        # [N, T, T], f32
    s = s + causal_bias                                       # additive 0/NEG_FILL
    m = jnp.max(s, axis=-1, keepdims=True)
    p = jnp.exp(s - m)                                        # unnormalized, in (0,1]
    denom = jnp.sum(p, axis=-1, keepdims=True)                # f32 row-sum [N,T,1]
    o = jnp.einsum('bqk,bkd->bqd',
                   p.astype(MXU_DTYPE), v.astype(MXU_DTYPE),
                   preferred_element_type=jnp.float32)
    ctx.append(o * recip(denom))                              # normalize post-matmul
  o = jnp.concatenate(ctx, axis=-1)                           # [N, T, H]
  return _mm(o.reshape(N * T, H), wo).reshape(N, T, H) + bo


def _ffn(x, mask, w1, b1, w2_taps, b2):
  """VITS FFN with causal=True (left-only padding of kernel_size - 1) and ReLU."""
  h = _conv1d_unfolded(x * mask, w1, b1, pad=KERNEL_SIZE - 1)
  h = jnp.maximum(h, 0.0)
  h = _conv1d_tapsum(h * mask, w2_taps, b2, pad=KERNEL_SIZE - 1)
  return h * mask


def _forward_math(x, f0, mask, emo, P, recip):
  """Full ProsodyDecoder forward on a [N, T, *] block; shared by kernel & reference."""
  N, T, H = x.shape

  # Hoisted additive causal bias (built once, reused by every layer / head).
  row = lax.broadcasted_iota(jnp.int32, (T, T), 0)
  col = lax.broadcasted_iota(jnp.int32, (T, T), 1)
  causal_bias = jnp.where(row >= col, 0.0, NEG_FILL).astype(jnp.float32)

  vec = P["vec_h"]
  cond_b, f0p_b, pre_b = vec[0:1], vec[1:2], vec[2:3]
  f0p_w = vec[3:3 + KERNEL_SIZE]

  # x = x + cond(emo)   (1x1 conv on a length-1 time axis, broadcast over T)
  c = (_mm(emo.reshape(N, EMOIN_CHANNELS), P["cond_w"]) + cond_b).reshape(N, 1, H)
  x = x + c
  # x = x + f0_prenet(norm_f0)
  x = x + _f0_prenet(f0, f0p_w, f0p_b, pad=1)
  # x = prenet(x) * x_mask
  x = _conv1d_unfolded(x, P["pre_w"], pre_b, pad=(KERNEL_SIZE - 1) // 2) * mask

  # decoder: FFT(x * x_mask, x_mask).  x_mask is a 0/1 mask, so the back-to-back
  # (x * m) * m of the PyTorch code collapses to a single multiply.
  x = x * mask
  for l in range(N_LAYERS):
    lv = P["layer_vec"][l]     # rows: bo, g0, beta0, ffn2_b, g1, beta1
    y = _attention(x, P["wqkv"][l], P["bqkv"][l], P["wo"][l], lv[0:1],
                   causal_bias, recip)
    x = _layer_norm(x + y, lv[1:2], lv[2:3])
    y = _ffn(x, mask, P["ffn1_w"][l], P["ffn1_b"][l], P["ffn2_w"][l], lv[3:4])
    x = _layer_norm(x + y, lv[4:5], lv[5:6])
  x = x * mask

  # proj (1x1 conv) * x_mask
  out = _mm(x.reshape(N * T, H), P["proj_w"]).reshape(N, T, OUT_CHANNELS) + P["proj_b"]
  return out * mask
  # TODO(synk): flash-style KV tiling of the T axis (and bf16 exp on v6e/v7x) is
  # the next lever for T >~ 512; omitted here to keep the full-T math exact.


# ------------------------- Pallas kernel -------------------------
def _kernel_recip(d):
  if hasattr(pl, "reciprocal"):
    return pl.reciprocal(d, approx=True)     # EUP slot, frees VALU
  return 1.0 / d


def prosody_decoder_kernel(x_ref, f0_ref, mask_ref, emo_ref, *rest):
  *param_refs, out_ref = rest
  P = {name: ref[...] for name, ref in zip(PACKED_ORDER, param_refs)}
  out = _forward_math(x_ref[...], f0_ref[...], mask_ref[...], emo_ref[...],
                      P, recip=_kernel_recip)
  out_ref[...] = out.astype(out_ref.dtype)


# ------------------------- VMEM-aware block selection -------------------------
def _vmem_capacity_bytes():
  """Physical VMEM per TensorCore; conservative fallback if the query fails."""
  try:
    info = pltpu.get_tpu_info()
    for name in ("vmem_capacity_bytes", "vmem_size_bytes", "vmem_bytes"):
      v = getattr(info, name, None)
      if v:
        return int(v)
  except Exception:
    pass
  return 64 << 20   # v7x per-TensorCore VMEM (smallest of v5e/v6e/v7x)


def _vmem_bytes_estimate(bb, T):
  """Rough per-grid-step VMEM footprint (bytes) for a [bb, T, *] block."""
  H, F, K, L = HIDDEN_CHANNELS, FILTER_CHANNELS, KERNEL_SIZE, N_LAYERS
  f32, bf16, lane = 4, 2, 128
  # Grid-blocked inputs/output, double-buffered; last dim pads to 128 lanes.
  io = 2 * f32 * bb * (4 * T * lane + 8 * lane)          # x, f0, mask, out (+emo)
  # Packed parameters (assume double buffering, last-dim lane padding ignored).
  n_param = (EMOIN_CHANNELS * H + (3 + K) * H + K * H * H
             + L * (H * 3 * H + 3 * H + H * H + K * H * F + F + K * F * H + 6 * H)
             + H * lane + lane)
  params = 2 * f32 * n_param
  # Attention intermediates: scores/probs (f32 + bf16 live copies) + causal bias.
  attn = bb * T * T * (2 * f32 + bf16) + T * T * f32
  # Conv unfolds / activations (FFN1 unfold f32+bf16, plus several H/F-wide bufs).
  act = bb * T * (K * H) * (f32 + bf16) + 8 * bb * T * max(H, F) * f32
  return io + params + attn + act


def _pick_block_b(B, T, vmem_budget, max_bb=16):
  """Largest divisor of B (<= max_bb) that fits the VMEM budget and keeps
  >= 2 grid steps when possible (v7x has 2 TensorCores)."""
  best = 1
  for bb in range(1, min(B, max_bb) + 1):
    if B % bb:
      continue
    if B >= 2 and B // bb < 2:
      continue
    if _vmem_bytes_estimate(bb, T) > vmem_budget:
      continue
    best = bb
  return best


# ------------------------- wrapper -------------------------
def prosody_decoder(x, norm_f0, x_mask, emo, packed, block_b=None):
  """x: [B,T,H], norm_f0: [B,T,1], x_mask: [B,T,1], emo: [B,1,E] -> [B,T,OUT].

  `packed` is the output of pack_params().
  """
  B, T, H = x.shape
  assert H == HIDDEN_CHANNELS, (H, HIDDEN_CHANNELS)
  assert T % 8 == 0, ("T must be a multiple of 8 (f32 sublane tile) so the "
                      "[BB,T,H] <-> [BB*T,H] reshapes stay layout-trivial; "
                      "pad the time axis in the caller.")

  cap = _vmem_capacity_bytes()
  budget = max(cap - (16 << 20), 32 << 20)          # leave headroom for Mosaic
  vmem_limit = int(min(budget, 112 << 20))          # never above v5e/v6e physical

  BB = block_b if block_b is not None else _pick_block_b(B, T, budget)
  assert B % BB == 0, (B, BB)
  flat = [packed[k] for k in PACKED_ORDER]

  def full_spec(a):
    nd = a.ndim
    return pl.BlockSpec(a.shape, lambda b, nd=nd: (0,) * nd)

  in_specs = [
      pl.BlockSpec((BB, T, H), lambda b: (b, 0, 0)),
      pl.BlockSpec((BB, T, 1), lambda b: (b, 0, 0)),
      pl.BlockSpec((BB, T, 1), lambda b: (b, 0, 0)),
      pl.BlockSpec((BB, 1, EMOIN_CHANNELS), lambda b: (b, 0, 0)),
  ] + [full_spec(a) for a in flat]
  out_spec = pl.BlockSpec((BB, T, OUT_CHANNELS), lambda b: (b, 0, 0))

  return pl.pallas_call(
      prosody_decoder_kernel,
      out_shape=jax.ShapeDtypeStruct((B, T, OUT_CHANNELS), jnp.float32),
      grid_spec=pltpu.PrefetchScalarGridSpec(
          num_scalar_prefetch=0,
          grid=(B // BB,),
          in_specs=in_specs,
          out_specs=out_spec),
      compiler_params=pltpu.CompilerParams(
          dimension_semantics=("parallel",),
          vmem_limit_bytes=vmem_limit),
  )(x, norm_f0, x_mask, emo, *flat)


# ------------------------- parameter packing -------------------------
def pack_params(p):
  """Fuse / reorder raw parameters into the 12 packed arrays the kernel consumes."""
  L, K, H, F = N_LAYERS, KERNEL_SIZE, HIDDEN_CHANNELS, FILTER_CHANNELS
  q = {}
  q["cond_w"] = p["cond_w"]                                             # [E, H]
  q["vec_h"] = jnp.concatenate(
      [p["cond_b"], p["f0p_b"], p["pre_b"], p["f0p_w"].reshape(K, H)], axis=0)
  q["pre_w"] = p["pre_w"].reshape(K * H, H)                             # tap-major

  def fuse_heads_w(w):   # [L, nh, H, dk] -> [L, H, nh*dk]
    return jnp.concatenate([w[:, h] for h in range(N_HEADS)], axis=-1)

  def fuse_heads_b(b):   # [L, nh, 1, dk] -> [L, 1, nh*dk]
    return jnp.concatenate([b[:, h] for h in range(N_HEADS)], axis=-1)

  q["wqkv"] = jnp.concatenate(
      [fuse_heads_w(p["wq"]), fuse_heads_w(p["wk"]), fuse_heads_w(p["wv"])], axis=-1)
  q["bqkv"] = jnp.concatenate(
      [fuse_heads_b(p["bq"]), fuse_heads_b(p["bk"]), fuse_heads_b(p["bv"])], axis=-1)
  q["wo"] = jnp.concatenate([p["wo"][:, h] for h in range(N_HEADS)], axis=1)  # [L,H,H]
  q["ffn1_w"] = p["ffn1_w"].reshape(L, K * H, F)                        # tap-major
  q["ffn1_b"] = p["ffn1_b"]
  q["ffn2_w"] = p["ffn2_w"]                                             # [L, K, F, H]
  q["layer_vec"] = jnp.concatenate(
      [p["bo"], p["g0"], p["beta0"], p["ffn2_b"], p["g1"], p["beta1"]], axis=1)
  q["proj_w"] = p["proj_w"]
  q["proj_b"] = p["proj_b"]
  return q


# ------------------------- deterministic parameter init -------------------------
def init_params(key):
  H, F, E, K, L, O = (HIDDEN_CHANNELS, FILTER_CHANNELS, EMOIN_CHANNELS,
                      KERNEL_SIZE, N_LAYERS, OUT_CHANNELS)
  ks = list(jax.random.split(key, 24))
  it = iter(ks)

  def w(shape, scale=0.1):
    return scale * jax.random.normal(next(it), shape, jnp.float32)

  p = {}
  p["cond_w"] = w((E, H));            p["cond_b"] = w((1, H))
  p["f0p_w"]  = w((K, 1, H));         p["f0p_b"]  = w((1, H))
  p["pre_w"]  = w((K, H, H));         p["pre_b"]  = w((1, H))
  p["wq"] = w((L, N_HEADS, H, HEAD_DIM));  p["bq"] = w((L, N_HEADS, 1, HEAD_DIM))
  # FFT uses proximal_init=True: conv_k is initialized as a copy of conv_q.
  p["wk"] = p["wq"];                  p["bk"] = p["bq"]
  p["wv"] = w((L, N_HEADS, H, HEAD_DIM));  p["bv"] = w((L, N_HEADS, 1, HEAD_DIM))
  p["wo"] = w((L, N_HEADS, HEAD_DIM, H));  p["bo"] = w((L, 1, H))
  p["g0"] = jnp.ones((L, 1, H), jnp.float32)
  p["beta0"] = jnp.zeros((L, 1, H), jnp.float32)
  p["ffn1_w"] = w((L, K, H, F));      p["ffn1_b"] = w((L, 1, F))
  p["ffn2_w"] = w((L, K, F, H));      p["ffn2_b"] = w((L, 1, H))
  p["g1"] = jnp.ones((L, 1, H), jnp.float32)
  p["beta1"] = jnp.zeros((L, 1, H), jnp.float32)
  p["proj_w"] = w((H, O));            p["proj_b"] = w((1, O))
  return p


# ------------------------- pure-JAX reference (same math, no Pallas) ------------
def reference_forward(x, norm_f0, x_mask, emo, packed):
  return _forward_math(x, norm_f0, x_mask, emo, packed, recip=lambda d: 1.0 / d)


# ------------------------- main -------------------------
if __name__ == "__main__":
  key = jax.random.PRNGKey(0)
  kx, kf, ke, kp = jax.random.split(key, 4)

  B, T = 2, 16
  x = 0.1 * jax.random.normal(kx, (B, T, HIDDEN_CHANNELS), jnp.float32)
  norm_f0 = jax.random.normal(kf, (B, T, 1), jnp.float32)
  emo = 0.1 * jax.random.normal(ke, (B, 1, EMOIN_CHANNELS), jnp.float32)

  lengths = jnp.array([T, T - 4])
  t_idx = jnp.arange(T)
  x_mask = (t_idx[None, :] < lengths[:, None]).astype(jnp.float32)[..., None]  # [B,T,1]

  params = init_params(kp)
  packed = pack_params(params)

  out = prosody_decoder(x, norm_f0, x_mask, emo, packed)
  out = jax.block_until_ready(out)

  ref = reference_forward(x, norm_f0, x_mask, emo, packed)
  assert out.shape == (B, T, OUT_CHANNELS), out.shape
  max_err = float(jnp.max(jnp.abs(out - ref)))
  if max_err > 5e-2:
    raise AssertionError(f"Pallas kernel mismatch vs reference, max abs err = {max_err}")

  # TODO(synk): dropout (p_dropout) is omitted — module is evaluated in eval mode.
  print("KERNEL_OK")
</pallas_src>

<mosaic_0001>
module attributes {stable_mosaic.version = 11 : i64} {
  func.func @prosody_decoder_kernel(%arg0: i32, %arg1: memref<1x16x64xf32, #tpu.memory_space<vmem>>, %arg2: memref<1x16x1xf32, #tpu.memory_space<vmem>>, %arg3: memref<1x16x1xf32, #tpu.memory_space<vmem>>, %arg4: memref<1x1x8xf32, #tpu.memory_space<vmem>>, %arg5: memref<8x64xf32, #tpu.memory_space<vmem>>, %arg6: memref<6x64xf32, #tpu.memory_space<vmem>>, %arg7: memref<192x64xf32, #tpu.memory_space<vmem>>, %arg8: memref<2x64x192xf32, #tpu.memory_space<vmem>>, %arg9: memref<2x1x192xf32, #tpu.memory_space<vmem>>, %arg10: memref<2x64x64xf32, #tpu.memory_space<vmem>>, %arg11: memref<2x192x128xf32, #tpu.memory_space<vmem>>, %arg12: memref<2x1x128xf32, #tpu.memory_space<vmem>>, %arg13: memref<2x3x128x64xf32, #tpu.memory_space<vmem>>, %arg14: memref<2x6x64xf32, #tpu.memory_space<vmem>>, %arg15: memref<64x2xf32, #tpu.memory_space<vmem>>, %arg16: memref<1x2xf32, #tpu.memory_space<vmem>>, %arg17: memref<1x16x2xf32, #tpu.memory_space<vmem>>) attributes {dimension_semantics = [#tpu.dimension_semantics<parallel>], iteration_bounds = array<i64: 2>, scalar_prefetch = 0 : i64, scratch_operands = 0 : i64, tpu.core_type = #tpu.core_type<tc>, window_params = [{transform_indices = @transform_0, window_bounds = array<i64: 1, 16, 64>}, {transform_indices = @transform_1, window_bounds = array<i64: 1, 16, 1>}, {transform_indices = @transform_2, window_bounds = array<i64: 1, 16, 1>}, {transform_indices = @transform_3, window_bounds = array<i64: 1, 1, 8>}, {pipeline_mode = #tpu.pipeline_mode<synchronous>, transform_indices = @transform_4, window_bounds = array<i64: 8, 64>}, {pipeline_mode = #tpu.pipeline_mode<synchronous>, transform_indices = @transform_5, window_bounds = array<i64: 6, 64>}, {pipeline_mode = #tpu.pipeline_mode<synchronous>, transform_indices = @transform_6, window_bounds = array<i64: 192, 64>}, {pipeline_mode = #tpu.pipeline_mode<synchronous>, transform_indices = @transform_7, window_bounds = array<i64: 2, 64, 192>}, {pipeline_mode = #tpu.pipeline_mode<synchronous>, transform_indices = @transform_8, window_bounds = array<i64: 2, 1, 192>}, {pipeline_mode = #tpu.pipeline_mode<synchronous>, transform_indices = @transform_9, window_bounds = array<i64: 2, 64, 64>}, {pipeline_mode = #tpu.pipeline_mode<synchronous>, transform_indices = @transform_10, window_bounds = array<i64: 2, 192, 128>}, {pipeline_mode = #tpu.pipeline_mode<synchronous>, transform_indices = @transform_11, window_bounds = array<i64: 2, 1, 128>}, {pipeline_mode = #tpu.pipeline_mode<synchronous>, transform_indices = @transform_12, window_bounds = array<i64: 2, 3, 128, 64>}, {pipeline_mode = #tpu.pipeline_mode<synchronous>, transform_indices = @transform_13, window_bounds = array<i64: 2, 6, 64>}, {pipeline_mode = #tpu.pipeline_mode<synchronous>, transform_indices = @transform_14, window_bounds = array<i64: 64, 2>}, {pipeline_mode = #tpu.pipeline_mode<synchronous>, transform_indices = @transform_15, window_bounds = array<i64: 1, 2>}, {transform_indices = @transform_16, window_bounds = array<i64: 1, 16, 2>}]} {
    %c0 = arith.constant 0 : index
    %c0_0 = arith.constant 0 : index
    %0 = vector.load %arg5[%c0, %c0_0] : memref<8x64xf32, #tpu.memory_space<vmem>>, vector<8x64xf32>
    %c0_1 = arith.constant 0 : index
    %c0_2 = arith.constant 0 : index
    %1 = vector.load %arg6[%c0_1, %c0_2] : memref<6x64xf32, #tpu.memory_space<vmem>>, vector<6x64xf32>
    %c0_3 = arith.constant 0 : index
    %c0_4 = arith.constant 0 : index
    %2 = vector.load %arg7[%c0_3, %c0_4] : memref<192x64xf32, #tpu.memory_space<vmem>>, vector<192x64xf32>
    %c0_5 = arith.constant 0 : index
    %c0_6 = arith.constant 0 : index
    %c0_7 = arith.constant 0 : index
    %3 = vector.load %arg8[%c0_5, %c0_6, %c0_7] : memref<2x64x192xf32, #tpu.memory_space<vmem>>, vector<2x64x192xf32>
    %c0_8 = arith.constant 0 : index
    %c0_9 = arith.constant 0 : index
    %c0_10 = arith.constant 0 : index
    %4 = vector.load %arg9[%c0_8, %c0_9, %c0_10] : memref<2x1x192xf32, #tpu.memory_space<vmem>>, vector<2x1x192xf32>
    %c0_11 = arith.constant 0 : index
    %c0_12 = arith.constant 0 : index
    %c0_13 = arith.constant 0 : index
    %5 = vector.load %arg10[%c0_11, %c0_12, %c0_13] : memref<2x64x64xf32, #tpu.memory_space<vmem>>, vector<2x64x64xf32>
    %c0_14 = arith.constant 0 : index
    %c0_15 = arith.constant 0 : index
    %c0_16 = arith.constant 0 : index
    %6 = vector.load %arg11[%c0_14, %c0_15, %c0_16] : memref<2x192x128xf32, #tpu.memory_space<vmem>>, vector<2x192x128xf32>
    %c0_17 = arith.constant 0 : index
    %c0_18 = arith.constant 0 : index
    %c0_19 = arith.constant 0 : index
    %7 = vector.load %arg12[%c0_17, %c0_18, %c0_19] : memref<2x1x128xf32, #tpu.memory_space<vmem>>, vector<2x1x128xf32>
    %c0_20 = arith.constant 0 : index
    %c0_21 = arith.constant 0 : index
    %c0_22 = arith.constant 0 : index
    %c0_23 = arith.constant 0 : index
    %8 = vector.load %arg13[%c0_20, %c0_21, %c0_22, %c0_23] : memref<2x3x128x64xf32, #tpu.memory_space<vmem>>, vector<2x3x128x64xf32>
    %c0_24 = arith.constant 0 : index
    %c0_25 = arith.constant 0 : index
    %c0_26 = arith.constant 0 : index
    %9 = vector.load %arg14[%c0_24, %c0_25, %c0_26] : memref<2x6x64xf32, #tpu.memory_space<vmem>>, vector<2x6x64xf32>
    %c0_27 = arith.constant 0 : index
    %c0_28 = arith.constant 0 : index
    %10 = vector.load %arg15[%c0_27, %c0_28] : memref<64x2xf32, #tpu.memory_space<vmem>>, vector<64x2xf32>
    %c0_29 = arith.constant 0 : index
    %c0_30 = arith.constant 0 : index
    %11 = vector.load %arg16[%c0_29, %c0_30] : memref<1x2xf32, #tpu.memory_space<vmem>>, vector<1x2xf32>
    %c0_31 = arith.constant 0 : index
    %c0_32 = arith.constant 0 : index
    %c0_33 = arith.constant 0 : index
    %12 = vector.load %arg1[%c0_31, %c0_32, %c0_33] : memref<1x16x64xf32, #tpu.memory_space<vmem>>, vector<1x16x64xf32>
    %c0_34 = arith.constant 0 : index
    %c0_35 = arith.constant 0 : index
    %c0_36 = arith.constant 0 : index
    %13 = vector.load %arg2[%c0_34, %c0_35, %c0_36] : memref<1x16x1xf32, #tpu.memory_space<vmem>>, vector<1x16x1xf32>
    %c0_37 = arith.constant 0 : index
    %c0_38 = arith.constant 0 : index
    %c0_39 = arith.constant 0 : index
    %14 = vector.load %arg3[%c0_37, %c0_38, %c0_39] : memref<1x16x1xf32, #tpu.memory_space<vmem>>, vector<1x16x1xf32>
    %c0_40 = arith.constant 0 : index
    %c0_41 = arith.constant 0 : index
    %c0_42 = arith.constant 0 : index
    %15 = vector.load %arg4[%c0_40, %c0_41, %c0_42] : memref<1x1x8xf32, #tpu.memory_space<vmem>>, vector<1x1x8xf32>
    %16 = tpu.iota {dimensions = array<i32: 0>} : vector<16x16xi32>
    %17 = tpu.iota {dimensions = array<i32: 1>} : vector<16x16xi32>
    %18 = arith.cmpi sge, %16, %17 : vector<16x16xi32>
    %cst = arith.constant 0.000000e+00 : f32
    %cst_43 = arith.constant -1.000000e+04 : f32
    %19 = vector.broadcast %cst : f32 to vector<16x16xf32>
    %20 = vector.broadcast %cst_43 : f32 to vector<16x16xf32>
    %21 = arith.select %18, %19, %20 : vector<16x16xi1>, vector<16x16xf32>
    %22 = vector.extract_strided_slice %1 {offsets = [0, 0], sizes = [1, 64], strides = [1, 1]} : vector<6x64xf32> to vector<1x64xf32>
    %23 = vector.extract_strided_slice %1 {offsets = [1, 0], sizes = [1, 64], strides = [1, 1]} : vector<6x64xf32> to vector<1x64xf32>
    %24 = vector.extract_strided_slice %1 {offsets = [2, 0], sizes = [1, 64], strides = [1, 1]} : vector<6x64xf32> to vector<1x64xf32>
    %25 = vector.extract_strided_slice %1 {offsets = [3, 0], sizes = [3, 64], strides = [1, 1]} : vector<6x64xf32> to vector<3x64xf32>
    %26 = vector.shape_cast %15 : vector<1x1x8xf32> to vector<1x8xf32>
    %27 = arith.truncf %26 : vector<1x8xf32> to vector<1x8xbf16>
    %28 = arith.truncf %0 : vector<8x64xf32> to vector<8x64xbf16>
    %cst_44 = arith.constant dense<0.000000e+00> : vector<1x64xf32>
    %29 = tpu.matmul %27, %28, %cst_44 {dimension_numbers = #tpu.dot_dimension_numbers<[1], [0], [0], [1], [0, 0, 1, 1], [], []>} : vector<1x8xbf16>, vector<8x64xbf16>, vector<1x64xf32> -> vector<1x64xf32>
    %30 = arith.addf %29, %22 : vector<1x64xf32>
    %31 = vector.shape_cast %30 : vector<1x64xf32> to vector<1x1x64xf32>
    %32 = vector.broadcast %31 : vector<1x1x64xf32> to vector<1x16x64xf32>
    %33 = arith.addf %12, %32 : vector<1x16x64xf32>
    %cst_45 = arith.constant 0.000000e+00 : f32
    %34 = vector.broadcast %cst_45 : f32 to vector<1x1x1xf32>
    %35 = vector.extract_strided_slice %13 {offsets = [0, 0, 0], sizes = [1, 15, 1], strides = [1, 1, 1]} : vector<1x16x1xf32> to vector<1x15x1xf32>
    %36 = tpu.concatenate %34, %35 in 1 : vector<1x1x1xf32>, vector<1x15x1xf32> -> vector<1x16x1xf32>
    %37 = vector.extract_strided_slice %25 {offsets = [0, 0], sizes = [1, 64], strides = [1, 1]} : vector<3x64xf32> to vector<1x64xf32>
    %38 = vector.shape_cast %37 : vector<1x64xf32> to vector<1x1x64xf32>
    %39 = vector.broadcast %36 : vector<1x16x1xf32> to vector<1x16x64xf32>
    %40 = vector.broadcast %38 : vector<1x1x64xf32> to vector<1x16x64xf32>
    %41 = arith.mulf %39, %40 : vector<1x16x64xf32>
    %42 = vector.shape_cast %23 : vector<1x64xf32> to vector<1x1x64xf32>
    %43 = vector.broadcast %42 : vector<1x1x64xf32> to vector<1x16x64xf32>
    %44 = arith.addf %43, %41 : vector<1x16x64xf32>
    %45 = vector.extract_strided_slice %25 {offsets = [1, 0], sizes = [1, 64], strides = [1, 1]} : vector<3x64xf32> to vector<1x64xf32>
    %46 = vector.shape_cast %45 : vector<1x64xf32> to vector<1x1x64xf32>
    %47 = vector.broadcast %13 : vector<1x16x1xf32> to vector<1x16x64xf32>
    %48 = vector.broadcast %46 : vector<1x1x64xf32> to vector<1x16x64xf32>
    %49 = arith.mulf %47, %48 : vector<1x16x64xf32>
    %50 = arith.addf %44, %49 : vector<1x16x64xf32>
    %cst_46 = arith.constant 0.000000e+00 : f32
    %51 = vector.broadcast %cst_46 : f32 to vector<1x1x1xf32>
    %52 = vector.extract_strided_slice %13 {offsets = [0, 1, 0], sizes = [1, 15, 1], strides = [1, 1, 1]} : vector<1x16x1xf32> to vector<1x15x1xf32>
    %53 = tpu.concatenate %52, %51 in 1 : vector<1x15x1xf32>, vector<1x1x1xf32> -> vector<1x16x1xf32>
    %54 = vector.extract_strided_slice %25 {offsets = [2, 0], sizes = [1, 64], strides = [1, 1]} : vector<3x64xf32> to vector<1x64xf32>
    %55 = vector.shape_cast %54 : vector<1x64xf32> to vector<1x1x64xf32>
    %56 = vector.broadcast %53 : vector<1x16x1xf32> to vector<1x16x64xf32>
    %57 = vector.broadcast %55 : vector<1x1x64xf32> to vector<1x16x64xf32>
    %58 = arith.mulf %56, %57 : vector<1x16x64xf32>
    %59 = arith.addf %50, %58 : vector<1x16x64xf32>
    %60 = arith.addf %33, %59 : vector<1x16x64xf32>
    %cst_47 = arith.constant 0.000000e+00 : f32
    %61 = vector.broadcast %cst_47 : f32 to vector<1x1x64xf32>
    %62 = vector.extract_strided_slice %60 {offsets = [0, 0, 0], sizes = [1, 15, 64], strides = [1, 1, 1]} : vector<1x16x64xf32> to vector<1x15x64xf32>
    %63 = tpu.concatenate %61, %62 in 1 : vector<1x1x64xf32>, vector<1x15x64xf32> -> vector<1x16x64xf32>
    %cst_48 = arith.constant 0.000000e+00 : f32
    %64 = vector.broadcast %cst_48 : f32 to vector<1x1x64xf32>
    %65 = vector.extract_strided_slice %60 {offsets = [0, 1, 0], sizes = [1, 15, 64], strides = [1, 1, 1]} : vector<1x16x64xf32> to vector<1x15x64xf32>
    %66 = tpu.concatenate %65, %64 in 1 : vector<1x15x64xf32>, vector<1x1x64xf32> -> vector<1x16x64xf32>
    %67 = tpu.concatenate %63, %60, %66 in 2 : vector<1x16x64xf32>, vector<1x16x64xf32>, vector<1x16x64xf32> -> vector<1x16x192xf32>
    %68 = vector.shape_cast %67 : vector<1x16x192xf32> to vector<16x192xf32>
    %69 = arith.truncf %68 : vector<16x192xf32> to vector<16x192xbf16>
    %70 = arith.truncf %2 : vector<192x64xf32> to vector<192x64xbf16>
    %cst_49 = arith.constant dense<0.000000e+00> : vector<16x64xf32>
    %71 = tpu.matmul %69, %70, %cst_49 {dimension_numbers = #tpu.dot_dimension_numbers<[1], [0], [0], [1], [0, 0, 1, 1], [], []>} : vector<16x192xbf16>, vector<192x64xbf16>, vector<16x64xf32> -> vector<16x64xf32>
    %72 = vector.shape_cast %71 : vector<16x64xf32> to vector<1x16x64xf32>
    %73 = vector.shape_cast %24 : vector<1x64xf32> to vector<1x1x64xf32>
    %74 = vector.broadcast %73 : vector<1x1x64xf32> to vector<1x16x64xf32>
    %75 = arith.addf %72, %74 : vector<1x16x64xf32>
    %76 = vector.broadcast %14 : vector<1x16x1xf32> to vector<1x16x64xf32>
    %77 = arith.mulf %75, %76 : vector<1x16x64xf32>
    %78 = vector.broadcast %14 : vector<1x16x1xf32> to vector<1x16x64xf32>
    %79 = arith.mulf %77, %78 : vector<1x16x64xf32>
    %80 = vector.extract_strided_slice %9 {offsets = [0, 0, 0], sizes = [1, 6, 64], strides = [1, 1, 1]} : vector<2x6x64xf32> to vector<1x6x64xf32>
    %81 = vector.shape_cast %80 : vector<1x6x64xf32> to vector<6x64xf32>
    %82 = vector.extract_strided_slice %3 {offsets = [0, 0, 0], sizes = [1, 64, 192], strides = [1, 1, 1]} : vector<2x64x192xf32> to vector<1x64x192xf32>
    %83 = vector.shape_cast %82 : vector<1x64x192xf32> to vector<64x192xf32>
    %84 = vector.extract_strided_slice %4 {offsets = [0, 0, 0], sizes = [1, 1, 192], strides = [1, 1, 1]} : vector<2x1x192xf32> to vector<1x1x192xf32>
    %85 = vector.shape_cast %84 : vector<1x1x192xf32> to vector<1x192xf32>
    %86 = vector.extract_strided_slice %5 {offsets = [0, 0, 0], sizes = [1, 64, 64], strides = [1, 1, 1]} : vector<2x64x64xf32> to vector<1x64x64xf32>
    %87 = vector.shape_cast %86 : vector<1x64x64xf32> to vector<64x64xf32>
    %88 = vector.extract_strided_slice %81 {offsets = [0, 0], sizes = [1, 64], strides = [1, 1]} : vector<6x64xf32> to vector<1x64xf32>
    %89 = vector.shape_cast %79 : vector<1x16x64xf32> to vector<16x64xf32>
    %90 = arith.truncf %89 : vector<16x64xf32> to vector<16x64xbf16>
    %91 = arith.truncf %83 : vector<64x192xf32> to vector<64x192xbf16>
    %cst_50 = arith.constant dense<0.000000e+00> : vector<16x192xf32>
    %92 = tpu.matmul %90, %91, %cst_50 {dimension_numbers = #tpu.dot_dimension_numbers<[1], [0], [0], [1], [0, 0, 1, 1], [], []>} : vector<16x64xbf16>, vector<64x192xbf16>, vector<16x192xf32> -> vector<16x192xf32>
    %93 = vector.shape_cast %92 : vector<16x192xf32> to vector<1x16x192xf32>
    %94 = vector.shape_cast %85 : vector<1x192xf32> to vector<1x1x192xf32>
    %95 = vector.broadcast %94 : vector<1x1x192xf32> to vector<1x16x192xf32>
    %96 = arith.addf %93, %95 : vector<1x16x192xf32>
    %97 = vector.extract_strided_slice %96 {offsets = [0, 0, 0], sizes = [1, 16, 32], strides = [1, 1, 1]} : vector<1x16x192xf32> to vector<1x16x32xf32>
    %98 = vector.extract_strided_slice %96 {offsets = [0, 0, 64], sizes = [1, 16, 32], strides = [1, 1, 1]} : vector<1x16x192xf32> to vector<1x16x32xf32>
    %99 = vector.extract_strided_slice %96 {offsets = [0, 0, 128], sizes = [1, 16, 32], strides = [1, 1, 1]} : vector<1x16x192xf32> to vector<1x16x32xf32>
    %cst_51 = arith.constant 0.176776692 : f32
    %100 = vector.broadcast %cst_51 : f32 to vector<1x16x32xf32>
    %101 = arith.mulf %97, %100 : vector<1x16x32xf32>
    %102 = arith.truncf %101 : vector<1x16x32xf32> to vector<1x16x32xbf16>
    %103 = arith.truncf %98 : vector<1x16x32xf32> to vector<1x16x32xbf16>
    "tpu.trace_start"() <{level = 10 : i32, message = "bqd,bkd->bqk"}> : () -> ()
    %cst_52 = arith.constant dense<0.000000e+00> : vector<1x16x16xf32>
    %104 = tpu.matmul %102, %103, %cst_52 {dimension_numbers = #tpu.dot_dimension_numbers<[2], [2], [1], [1], [0, 0, 0, 1, 1, 1], [0], [0]>} : vector<1x16x32xbf16>, vector<1x16x32xbf16>, vector<1x16x16xf32> -> vector<1x16x16xf32>
    "tpu.trace_stop"() : () -> ()
    %105 = vector.shape_cast %21 : vector<16x16xf32> to vector<1x16x16xf32>
    %106 = arith.addf %104, %105 : vector<1x16x16xf32>
    %cst_53 = arith.constant dense<0xFF800000> : vector<1x16xf32>
    %107 = vector.multi_reduction <maximumf>, %106, %cst_53 [2] : vector<1x16x16xf32> to vector<1x16xf32>
    %108 = vector.shape_cast %107 : vector<1x16xf32> to vector<1x16x1xf32>
    %109 = vector.broadcast %108 : vector<1x16x1xf32> to vector<1x16x16xf32>
    %110 = arith.subf %106, %109 : vector<1x16x16xf32>
    %111 = math.exp %110 : vector<1x16x16xf32>
    %cst_54 = arith.constant dense<0.000000e+00> : vector<1x16xf32>
    %112 = vector.multi_reduction <add>, %111, %cst_54 [2] : vector<1x16x16xf32> to vector<1x16xf32>
    %113 = vector.shape_cast %112 : vector<1x16xf32> to vector<1x16x1xf32>
    %114 = arith.truncf %111 : vector<1x16x16xf32> to vector<1x16x16xbf16>
    %115 = arith.truncf %99 : vector<1x16x32xf32> to vector<1x16x32xbf16>
    "tpu.trace_start"() <{level = 10 : i32, message = "bqk,bkd->bqd"}> : () -> ()
    %cst_55 = arith.constant dense<0.000000e+00> : vector<1x16x32xf32>
    %116 = tpu.matmul %114, %115, %cst_55 {dimension_numbers = #tpu.dot_dimension_numbers<[2], [1], [1], [2], [0, 0, 0, 1, 1, 2], [0], [0]>} : vector<1x16x16xbf16>, vector<1x16x32xbf16>, vector<1x16x32xf32> -> vector<1x16x32xf32>
    "tpu.trace_stop"() : () -> ()
    %117 = tpu.reciprocal %113 {approx = true} : vector<1x16x1xf32> -> vector<1x16x1xf32>
    %118 = vector.broadcast %117 : vector<1x16x1xf32> to vector<1x16x32xf32>
    %119 = arith.mulf %116, %118 : vector<1x16x32xf32>
    %120 = vector.extract_strided_slice %96 {offsets = [0, 0, 32], sizes = [1, 16, 32], strides = [1, 1, 1]} : vector<1x16x192xf32> to vector<1x16x32xf32>
    %121 = vector.extract_strided_slice %96 {offsets = [0, 0, 96], sizes = [1, 16, 32], strides = [1, 1, 1]} : vector<1x16x192xf32> to vector<1x16x32xf32>
    %122 = vector.extract_strided_slice %96 {offsets = [0, 0, 160], sizes = [1, 16, 32], strides = [1, 1, 1]} : vector<1x16x192xf32> to vector<1x16x32xf32>
    %cst_56 = arith.constant 0.176776692 : f32
    %123 = vector.broadcast %cst_56 : f32 to vector<1x16x32xf32>
    %124 = arith.mulf %120, %123 : vector<1x16x32xf32>
    %125 = arith.truncf %124 : vector<1x16x32xf32> to vector<1x16x32xbf16>
    %126 = arith.truncf %121 : vector<1x16x32xf32> to vector<1x16x32xbf16>
    "tpu.trace_start"() <{level = 10 : i32, message = "bqd,bkd->bqk"}> : () -> ()
    %cst_57 = arith.constant dense<0.000000e+00> : vector<1x16x16xf32>
    %127 = tpu.matmul %125, %126, %cst_57 {dimension_numbers = #tpu.dot_dimension_numbers<[2], [2], [1], [1], [0, 0, 0, 1, 1, 1], [0], [0]>} : vector<1x16x32xbf16>, vector<1x16x32xbf16>, vector<1x16x16xf32> -> vector<1x16x16xf32>
    "tpu.trace_stop"() : () -> ()
    %128 = vector.shape_cast %21 : vector<16x16xf32> to vector<1x16x16xf32>
    %129 = arith.addf %127, %128 : vector<1x16x16xf32>
    %cst_58 = arith.constant dense<0xFF800000> : vector<1x16xf32>
    %130 = vector.multi_reduction <maximumf>, %129, %cst_58 [2] : vector<1x16x16xf32> to vector<1x16xf32>
    %131 = vector.shape_cast %130 : vector<1x16xf32> to vector<1x16x1xf32>
    %132 = vector.broadcast %131 : vector<1x16x1xf32> to vector<1x16x16xf32>
    %133 = arith.subf %129, %132 : vector<1x16x16xf32>
    %134 = math.exp %133 : vector<1x16x16xf32>
    %cst_59 = arith.constant dense<0.000000e+00> : vector<1x16xf32>
    %135 = vector.multi_reduction <add>, %134, %cst_59 [2] : vector<1x16x16xf32> to vector<1x16xf32>
    %136 = vector.shape_cast %135 : vector<1x16xf32> to vector<1x16x1xf32>
    %137 = arith.truncf %134 : vector<1x16x16xf32> to vector<1x16x16xbf16>
    %138 = arith.truncf %122 : vector<1x16x32xf32> to vector<1x16x32xbf16>
    "tpu.trace_start"() <{level = 10 : i32, message = "bqk,bkd->bqd"}> : () -> ()
    %cst_60 = arith.constant dense<0.000000e+00> : vector<1x16x32xf32>
    %139 = tpu.matmul %137, %138, %cst_60 {dimension_numbers = #tpu.dot_dimension_numbers<[2], [1], [1], [2], [0, 0, 0, 1, 1, 2], [0], [0]>} : vector<1x16x16xbf16>, vector<1x16x32xbf16>, vector<1x16x32xf32> -> vector<1x16x32xf32>
    "tpu.trace_stop"() : () -> ()
    %140 = tpu.reciprocal %136 {approx = true} : vector<1x16x1xf32> -> vector<1x16x1xf32>
    %141 = vector.broadcast %140 : vector<1x16x1xf32> to vector<1x16x32xf32>
    %142 = arith.mulf %139, %141 : vector<1x16x32xf32>
    %143 = tpu.concatenate %119, %142 in 2 : vector<1x16x32xf32>, vector<1x16x32xf32> -> vector<1x16x64xf32>
    %144 = vector.shape_cast %143 : vector<1x16x64xf32> to vector<16x64xf32>
    %145 = arith.truncf %144 : vector<16x64xf32> to vector<16x64xbf16>
    %146 = arith.truncf %87 : vector<64x64xf32> to vector<64x64xbf16>
    %cst_61 = arith.constant dense<0.000000e+00> : vector<16x64xf32>
    %147 = tpu.matmul %145, %146, %cst_61 {dimension_numbers = #tpu.dot_dimension_numbers<[1], [0], [0], [1], [0, 0, 1, 1], [], []>} : vector<16x64xbf16>, vector<64x64xbf16>, vector<16x64xf32> -> vector<16x64xf32>
    %148 = vector.shape_cast %147 : vector<16x64xf32> to vector<1x16x64xf32>
    %149 = vector.shape_cast %88 : vector<1x64xf32> to vector<1x1x64xf32>
    %150 = vector.broadcast %149 : vector<1x1x64xf32> to vector<1x16x64xf32>
    %151 = arith.addf %148, %150 : vector<1x16x64xf32>
    %152 = arith.addf %79, %151 : vector<1x16x64xf32>
    %153 = vector.extract_strided_slice %81 {offsets = [1, 0], sizes = [1, 64], strides = [1, 1]} : vector<6x64xf32> to vector<1x64xf32>
    %154 = vector.extract_strided_slice %81 {offsets = [2, 0], sizes = [1, 64], strides = [1, 1]} : vector<6x64xf32> to vector<1x64xf32>
    %cst_62 = arith.constant dense<0.000000e+00> : vector<1x16xf32>
    %155 = vector.multi_reduction <add>, %152, %cst_62 [2] : vector<1x16x64xf32> to vector<1x16xf32>
    %156 = vector.shape_cast %155 : vector<1x16xf32> to vector<1x16x1xf32>
    %cst_63 = arith.constant 6.400000e+01 : f32
    %157 = vector.broadcast %cst_63 : f32 to vector<1x16x1xf32>
    %158 = arith.divf %156, %157 : vector<1x16x1xf32>
    %159 = vector.broadcast %158 : vector<1x16x1xf32> to vector<1x16x64xf32>
    %160 = arith.subf %152, %159 : vector<1x16x64xf32>
    %161 = arith.mulf %160, %160 : vector<1x16x64xf32>
    %cst_64 = arith.constant dense<0.000000e+00> : vector<1x16xf32>
    %162 = vector.multi_reduction <add>, %161, %cst_64 [2] : vector<1x16x64xf32> to vector<1x16xf32>
    %163 = vector.shape_cast %162 : vector<1x16xf32> to vector<1x16x1xf32>
    %cst_65 = arith.constant 6.400000e+01 : f32
    %164 = vector.broadcast %cst_65 : f32 to vector<1x16x1xf32>
    %165 = arith.divf %163, %164 : vector<1x16x1xf32>
    %166 = vector.broadcast %158 : vector<1x16x1xf32> to vector<1x16x64xf32>
    %167 = arith.subf %152, %166 : vector<1x16x64xf32>
    %cst_66 = arith.constant 9.99999974E-6 : f32
    %168 = vector.broadcast %cst_66 : f32 to vector<1x16x1xf32>
    %169 = arith.addf %165, %168 : vector<1x16x1xf32>
    %170 = math.rsqrt %169 : vector<1x16x1xf32>
    %171 = vector.broadcast %170 : vector<1x16x1xf32> to vector<1x16x64xf32>
    %172 = arith.mulf %167, %171 : vector<1x16x64xf32>
    %173 = vector.shape_cast %153 : vector<1x64xf32> to vector<1x1x64xf32>
    %174 = vector.broadcast %173 : vector<1x1x64xf32> to vector<1x16x64xf32>
    %175 = arith.mulf %172, %174 : vector<1x16x64xf32>
    %176 = vector.shape_cast %154 : vector<1x64xf32> to vector<1x1x64xf32>
    %177 = vector.broadcast %176 : vector<1x1x64xf32> to vector<1x16x64xf32>
    %178 = arith.addf %175, %177 : vector<1x16x64xf32>
    %179 = vector.extract_strided_slice %6 {offsets = [0, 0, 0], sizes = [1, 192, 128], strides = [1, 1, 1]} : vector<2x192x128xf32> to vector<1x192x128xf32>
    %180 = vector.shape_cast %179 : vector<1x192x128xf32> to vector<192x128xf32>
    %181 = vector.extract_strided_slice %7 {offsets = [0, 0, 0], sizes = [1, 1, 128], strides = [1, 1, 1]} : vector<2x1x128xf32> to vector<1x1x128xf32>
    %182 = vector.shape_cast %181 : vector<1x1x128xf32> to vector<1x128xf32>
    %183 = vector.extract_strided_slice %8 {offsets = [0, 0, 0, 0], sizes = [1, 3, 128, 64], strides = [1, 1, 1, 1]} : vector<2x3x128x64xf32> to vector<1x3x128x64xf32>
    %184 = vector.shape_cast %183 : vector<1x3x128x64xf32> to vector<3x128x64xf32>
    %185 = vector.extract_strided_slice %81 {offsets = [3, 0], sizes = [1, 64], strides = [1, 1]} : vector<6x64xf32> to vector<1x64xf32>
    %186 = vector.broadcast %14 : vector<1x16x1xf32> to vector<1x16x64xf32>
    %187 = arith.mulf %178, %186 : vector<1x16x64xf32>
    %cst_67 = arith.constant 0.000000e+00 : f32
    %188 = vector.broadcast %cst_67 : f32 to vector<1x2x64xf32>
    %189 = vector.extract_strided_slice %187 {offsets = [0, 0, 0], sizes = [1, 14, 64], strides = [1, 1, 1]} : vector<1x16x64xf32> to vector<1x14x64xf32>
    %190 = tpu.concatenate %188, %189 in 1 : vector<1x2x64xf32>, vector<1x14x64xf32> -> vector<1x16x64xf32>
    %cst_68 = arith.constant 0.000000e+00 : f32
    %191 = vector.broadcast %cst_68 : f32 to vector<1x1x64xf32>
    %192 = vector.extract_strided_slice %187 {offsets = [0, 0, 0], sizes = [1, 15, 64], strides = [1, 1, 1]} : vector<1x16x64xf32> to vector<1x15x64xf32>
    %193 = tpu.concatenate %191, %192 in 1 : vector<1x1x64xf32>, vector<1x15x64xf32> -> vector<1x16x64xf32>
    %194 = tpu.concatenate %190, %193, %187 in 2 : vector<1x16x64xf32>, vector<1x16x64xf32>, vector<1x16x64xf32> -> vector<1x16x192xf32>
    %195 = vector.shape_cast %194 : vector<1x16x192xf32> to vector<16x192xf32>
    %196 = arith.truncf %195 : vector<16x192xf32> to vector<16x192xbf16>
    %197 = arith.truncf %180 : vector<192x128xf32> to vector<192x128xbf16>
    %cst_69 = arith.constant dense<0.000000e+00> : vector<16x128xf32>
    %198 = tpu.matmul %196, %197, %cst_69 {dimension_numbers = #tpu.dot_dimension_numbers<[1], [0], [0], [1], [0, 0, 1, 1], [], []>} : vector<16x192xbf16>, vector<192x128xbf16>, vector<16x128xf32> -> vector<16x128xf32>
    %199 = vector.shape_cast %198 : vector<16x128xf32> to vector<1x16x128xf32>
    %200 = vector.shape_cast %182 : vector<1x128xf32> to vector<1x1x128xf32>
    %201 = vector.broadcast %200 : vector<1x1x128xf32> to vector<1x16x128xf32>
    %202 = arith.addf %199, %201 : vector<1x16x128xf32>
    %cst_70 = arith.constant 0.000000e+00 : f32
    %203 = vector.broadcast %cst_70 : f32 to vector<1x16x128xf32>
    %204 = arith.maximumf %202, %203 : vector<1x16x128xf32>
    %205 = vector.broadcast %14 : vector<1x16x1xf32> to vector<1x16x128xf32>
    %206 = arith.mulf %204, %205 : vector<1x16x128xf32>
    %cst_71 = arith.constant 0.000000e+00 : f32
    %207 = vector.broadcast %cst_71 : f32 to vector<1x2x128xf32>
    %208 = vector.extract_strided_slice %206 {offsets = [0, 0, 0], sizes = [1, 14, 128], strides = [1, 1, 1]} : vector<1x16x128xf32> to vector<1x14x128xf32>
    %209 = tpu.concatenate %207, %208 in 1 : vector<1x2x128xf32>, vector<1x14x128xf32> -> vector<1x16x128xf32>
    %210 = vector.shape_cast %209 : vector<1x16x128xf32> to vector<16x128xf32>
    %211 = vector.extract_strided_slice %184 {offsets = [0, 0, 0], sizes = [1, 128, 64], strides = [1, 1, 1]} : vector<3x128x64xf32> to vector<1x128x64xf32>
    %212 = vector.shape_cast %211 : vector<1x128x64xf32> to vector<128x64xf32>
    %213 = arith.truncf %210 : vector<16x128xf32> to vector<16x128xbf16>
    %214 = arith.truncf %212 : vector<128x64xf32> to vector<128x64xbf16>
    %cst_72 = arith.constant dense<0.000000e+00> : vector<16x64xf32>
    %215 = tpu.matmul %213, %214, %cst_72 {dimension_numbers = #tpu.dot_dimension_numbers<[1], [0], [0], [1], [0, 0, 1, 1], [], []>} : vector<16x128xbf16>, vector<128x64xbf16>, vector<16x64xf32> -> vector<16x64xf32>
    %cst_73 = arith.constant 0.000000e+00 : f32
    %216 = vector.broadcast %cst_73 : f32 to vector<1x1x128xf32>
    %217 = vector.extract_strided_slice %206 {offsets = [0, 0, 0], sizes = [1, 15, 128], strides = [1, 1, 1]} : vector<1x16x128xf32> to vector<1x15x128xf32>
    %218 = tpu.concatenate %216, %217 in 1 : vector<1x1x128xf32>, vector<1x15x128xf32> -> vector<1x16x128xf32>
    %219 = vector.shape_cast %218 : vector<1x16x128xf32> to vector<16x128xf32>
    %220 = vector.extract_strided_slice %184 {offsets = [1, 0, 0], sizes = [1, 128, 64], strides = [1, 1, 1]} : vector<3x128x64xf32> to vector<1x128x64xf32>
    %221 = vector.shape_cast %220 : vector<1x128x64xf32> to vector<128x64xf32>
    %222 = arith.truncf %219 : vector<16x128xf32> to vector<16x128xbf16>
    %223 = arith.truncf %221 : vector<128x64xf32> to vector<128x64xbf16>
    %cst_74 = arith.constant dense<0.000000e+00> : vector<16x64xf32>
    %224 = tpu.matmul %222, %223, %cst_74 {dimension_numbers = #tpu.dot_dimension_numbers<[1], [0], [0], [1], [0, 0, 1, 1], [], []>} : vector<16x128xbf16>, vector<128x64xbf16>, vector<16x64xf32> -> vector<16x64xf32>
    %225 = arith.addf %215, %224 : vector<16x64xf32>
    %226 = vector.shape_cast %206 : vector<1x16x128xf32> to vector<16x128xf32>
    %227 = vector.extract_strided_slice %184 {offsets = [2, 0, 0], sizes = [1, 128, 64], strides = [1, 1, 1]} : vector<3x128x64xf32> to vector<1x128x64xf32>
    %228 = vector.shape_cast %227 : vector<1x128x64xf32> to vector<128x64xf32>
    %229 = arith.truncf %226 : vector<16x128xf32> to vector<16x128xbf16>
    %230 = arith.truncf %228 : vector<128x64xf32> to vector<128x64xbf16>
    %cst_75 = arith.constant dense<0.000000e+00> : vector<16x64xf32>
    %231 = tpu.matmul %229, %230, %cst_75 {dimension_numbers = #tpu.dot_dimension_numbers<[1], [0], [0], [1], [0, 0, 1, 1], [], []>} : vector<16x128xbf16>, vector<128x64xbf16>, vector<16x64xf32> -> vector<16x64xf32>
    %232 = arith.addf %225, %231 : vector<16x64xf32>
    %233 = vector.shape_cast %232 : vector<16x64xf32> to vector<1x16x64xf32>
    %234 = vector.shape_cast %185 : vector<1x64xf32> to vector<1x1x64xf32>
    %235 = vector.broadcast %234 : vector<1x1x64xf32> to vector<1x16x64xf32>
    %236 = arith.addf %233, %235 : vector<1x16x64xf32>
    %237 = vector.broadcast %14 : vector<1x16x1xf32> to vector<1x16x64xf32>
    %238 = arith.mulf %236, %237 : vector<1x16x64xf32>
    %239 = arith.addf %178, %238 : vector<1x16x64xf32>
    %240 = vector.extract_strided_slice %81 {offsets = [4, 0], sizes = [1, 64], strides = [1, 1]} : vector<6x64xf32> to vector<1x64xf32>
    %241 = vector.extract_strided_slice %81 {offsets = [5, 0], sizes = [1, 64], strides = [1, 1]} : vector<6x64xf32> to vector<1x64xf32>
    %cst_76 = arith.constant dense<0.000000e+00> : vector<1x16xf32>
    %242 = vector.multi_reduction <add>, %239, %cst_76 [2] : vector<1x16x64xf32> to vector<1x16xf32>
    %243 = vector.shape_cast %242 : vector<1x16xf32> to vector<1x16x1xf32>
    %cst_77 = arith.constant 6.400000e+01 : f32
    %244 = vector.broadcast %cst_77 : f32 to vector<1x16x1xf32>
    %245 = arith.divf %243, %244 : vector<1x16x1xf32>
    %246 = vector.broadcast %245 : vector<1x16x1xf32> to vector<1x16x64xf32>
    %247 = arith.subf %239, %246 : vector<1x16x64xf32>
    %248 = arith.mulf %247, %247 : vector<1x16x64xf32>
    %cst_78 = arith.constant dense<0.000000e+00> : vector<1x16xf32>
    %249 = vector.multi_reduction <add>, %248, %cst_78 [2] : vector<1x16x64xf32> to vector<1x16xf32>
    %250 = vector.shape_cast %249 : vector<1x16xf32> to vector<1x16x1xf32>
    %cst_79 = arith.constant 6.400000e+01 : f32
    %251 = vector.broadcast %cst_79 : f32 to vector<1x16x1xf32>
    %252 = arith.divf %250, %251 : vector<1x16x1xf32>
    %253 = vector.broadcast %245 : vector<1x16x1xf32> to vector<1x16x64xf32>
    %254 = arith.subf %239, %253 : vector<1x16x64xf32>
    %cst_80 = arith.constant 9.99999974E-6 : f32
    %255 = vector.broadcast %cst_80 : f32 to vector<1x16x1xf32>
    %256 = arith.addf %252, %255 : vector<1x16x1xf32>
    %257 = math.rsqrt %256 : vector<1x16x1xf32>
    %258 = vector.broadcast %257 : vector<1x16x1xf32> to vector<1x16x64xf32>
    %259 = arith.mulf %254, %258 : vector<1x16x64xf32>
    %260 = vector.shape_cast %240 : vector<1x64xf32> to vector<1x1x64xf32>
    %261 = vector.broadcast %260 : vector<1x1x64xf32> to vector<1x16x64xf32>
    %262 = arith.mulf %259, %261 : vector<1x16x64xf32>
    %263 = vector.shape_cast %241 : vector<1x64xf32> to vector<1x1x64xf32>
    %264 = vector.broadcast %263 : vector<1x1x64xf32> to vector<1x16x64xf32>
    %265 = arith.addf %262, %264 : vector<1x16x64xf32>
    %266 = vector.extract_strided_slice %9 {offsets = [1, 0, 0], sizes = [1, 6, 64], strides = [1, 1, 1]} : vector<2x6x64xf32> to vector<1x6x64xf32>
    %267 = vector.shape_cast %266 : vector<1x6x64xf32> to vector<6x64xf32>
    %268 = vector.extract_strided_slice %3 {offsets = [1, 0, 0], sizes = [1, 64, 192], strides = [1, 1, 1]} : vector<2x64x192xf32> to vector<1x64x192xf32>
    %269 = vector.shape_cast %268 : vector<1x64x192xf32> to vector<64x192xf32>
    %270 = vector.extract_strided_slice %4 {offsets = [1, 0, 0], sizes = [1, 1, 192], strides = [1, 1, 1]} : vector<2x1x192xf32> to vector<1x1x192xf32>
    %271 = vector.shape_cast %270 : vector<1x1x192xf32> to vector<1x192xf32>
    %272 = vector.extract_strided_slice %5 {offsets = [1, 0, 0], sizes = [1, 64, 64], strides = [1, 1, 1]} : vector<2x64x64xf32> to vector<1x64x64xf32>
    %273 = vector.shape_cast %272 : vector<1x64x64xf32> to vector<64x64xf32>
    %274 = vector.extract_strided_slice %267 {offsets = [0, 0], sizes = [1, 64], strides = [1, 1]} : vector<6x64xf32> to vector<1x64xf32>
    %275 = vector.shape_cast %265 : vector<1x16x64xf32> to vector<16x64xf32>
    %276 = arith.truncf %275 : vector<16x64xf32> to vector<16x64xbf16>
    %277 = arith.truncf %269 : vector<64x192xf32> to vector<64x192xbf16>
    %cst_81 = arith.constant dense<0.000000e+00> : vector<16x192xf32>
    %278 = tpu.matmul %276, %277, %cst_81 {dimension_numbers = #tpu.dot_dimension_numbers<[1], [0], [0], [1], [0, 0, 1, 1], [], []>} : vector<16x64xbf16>, vector<64x192xbf16>, vector<16x192xf32> -> vector<16x192xf32>
    %279 = vector.shape_cast %278 : vector<16x192xf32> to vector<1x16x192xf32>
    %280 = vector.shape_cast %271 : vector<1x192xf32> to vector<1x1x192xf32>
    %281 = vector.broadcast %280 : vector<1x1x192xf32> to vector<1x16x192xf32>
    %282 = arith.addf %279, %281 : vector<1x16x192xf32>
    %283 = vector.extract_strided_slice %282 {offsets = [0, 0, 0], sizes = [1, 16, 32], strides = [1, 1, 1]} : vector<1x16x192xf32> to vector<1x16x32xf32>
    %284 = vector.extract_strided_slice %282 {offsets = [0, 0, 64], sizes = [1, 16, 32], strides = [1, 1, 1]} : vector<1x16x192xf32> to vector<1x16x32xf32>
    %285 = vector.extract_strided_slice %282 {offsets = [0, 0, 128], sizes = [1, 16, 32], strides = [1, 1, 1]} : vector<1x16x192xf32> to vector<1x16x32xf32>
    %cst_82 = arith.constant 0.176776692 : f32
    %286 = vector.broadcast %cst_82 : f32 to vector<1x16x32xf32>
    %287 = arith.mulf %283, %286 : vector<1x16x32xf32>
    %288 = arith.truncf %287 : vector<1x16x32xf32> to vector<1x16x32xbf16>
    %289 = arith.truncf %284 : vector<1x16x32xf32> to vector<1x16x32xbf16>
    "tpu.trace_start"() <{level = 10 : i32, message = "bqd,bkd->bqk"}> : () -> ()
    %cst_83 = arith.constant dense<0.000000e+00> : vector<1x16x16xf32>
    %290 = tpu.matmul %288, %289, %cst_83 {dimension_numbers = #tpu.dot_dimension_numbers<[2], [2], [1], [1], [0, 0, 0, 1, 1, 1], [0], [0]>} : vector<1x16x32xbf16>, vector<1x16x32xbf16>, vector<1x16x16xf32> -> vector<1x16x16xf32>
    "tpu.trace_stop"() : () -> ()
    %291 = vector.shape_cast %21 : vector<16x16xf32> to vector<1x16x16xf32>
    %292 = arith.addf %290, %291 : vector<1x16x16xf32>
    %cst_84 = arith.constant dense<0xFF800000> : vector<1x16xf32>
    %293 = vector.multi_reduction <maximumf>, %292, %cst_84 [2] : vector<1x16x16xf32> to vector<1x16xf32>
    %294 = vector.shape_cast %293 : vector<1x16xf32> to vector<1x16x1xf32>
    %295 = vector.broadcast %294 : vector<1x16x1xf32> to vector<1x16x16xf32>
    %296 = arith.subf %292, %295 : vector<1x16x16xf32>
    %297 = math.exp %296 : vector<1x16x16xf32>
    %cst_85 = arith.constant dense<0.000000e+00> : vector<1x16xf32>
    %298 = vector.multi_reduction <add>, %297, %cst_85 [2] : vector<1x16x16xf32> to vector<1x16xf32>
    %299 = vector.shape_cast %298 : vector<1x16xf32> to vector<1x16x1xf32>
    %300 = arith.truncf %297 : vector<1x16x16xf32> to vector<1x16x16xbf16>
    %301 = arith.truncf %285 : vector<1x16x32xf32> to vector<1x16x32xbf16>
    "tpu.trace_start"() <{level = 10 : i32, message = "bqk,bkd->bqd"}> : () -> ()
    %cst_86 = arith.constant dense<0.000000e+00> : vector<1x16x32xf32>
    %302 = tpu.matmul %300, %301, %cst_86 {dimension_numbers = #tpu.dot_dimension_numbers<[2], [1], [1], [2], [0, 0, 0, 1, 1, 2], [0], [0]>} : vector<1x16x16xbf16>, vector<1x16x32xbf16>, vector<1x16x32xf32> -> vector<1x16x32xf32>
    "tpu.trace_stop"() : () -> ()
    %303 = tpu.reciprocal %299 {approx = true} : vector<1x16x1xf32> -> vector<1x16x1xf32>
    %304 = vector.broadcast %303 : vector<1x16x1xf32> to vector<1x16x32xf32>
    %305 = arith.mulf %302, %304 : vector<1x16x32xf32>
    %306 = vector.extract_strided_slice %282 {offsets = [0, 0, 32], sizes = [1, 16, 32], strides = [1, 1, 1]} : vector<1x16x192xf32> to vector<1x16x32xf32>
    %307 = vector.extract_strided_slice %282 {offsets = [0, 0, 96], sizes = [1, 16, 32], strides = [1, 1, 1]} : vector<1x16x192xf32> to vector<1x16x32xf32>
    %308 = vector.extract_strided_slice %282 {offsets = [0, 0, 160], sizes = [1, 16, 32], strides = [1, 1, 1]} : vector<1x16x192xf32> to vector<1x16x32xf32>
    %cst_87 = arith.constant 0.176776692 : f32
    %309 = vector.broadcast %cst_87 : f32 to vector<1x16x32xf32>
    %310 = arith.mulf %306, %309 : vector<1x16x32xf32>
    %311 = arith.truncf %310 : vector<1x16x32xf32> to vector<1x16x32xbf16>
    %312 = arith.truncf %307 : vector<1x16x32xf32> to vector<1x16x32xbf16>
    "tpu.trace_start"() <{level = 10 : i32, message = "bqd,bkd->bqk"}> : () -> ()
    %cst_88 = arith.constant dense<0.000000e+00> : vector<1x16x16xf32>
    %313 = tpu.matmul %311, %312, %cst_88 {dimension_numbers = #tpu.dot_dimension_numbers<[2], [2], [1], [1], [0, 0, 0, 1, 1, 1], [0], [0]>} : vector<1x16x32xbf16>, vector<1x16x32xbf16>, vector<1x16x16xf32> -> vector<1x16x16xf32>
    "tpu.trace_stop"() : () -> ()
    %314 = vector.shape_cast %21 : vector<16x16xf32> to vector<1x16x16xf32>
    %315 = arith.addf %313, %314 : vector<1x16x16xf32>
    %cst_89 = arith.constant dense<0xFF800000> : vector<1x16xf32>
    %316 = vector.multi_reduction <maximumf>, %315, %cst_89 [2] : vector<1x16x16xf32> to vector<1x16xf32>
    %317 = vector.shape_cast %316 : vector<1x16xf32> to vector<1x16x1xf32>
    %318 = vector.broadcast %317 : vector<1x16x1xf32> to vector<1x16x16xf32>
    %319 = arith.subf %315, %318 : vector<1x16x16xf32>
    %320 = math.exp %319 : vector<1x16x16xf32>
    %cst_90 = arith.constant dense<0.000000e+00> : vector<1x16xf32>
    %321 = vector.multi_reduction <add>, %320, %cst_90 [2] : vector<1x16x16xf32> to vector<1x16xf32>
    %322 = vector.shape_cast %321 : vector<1x16xf32> to vector<1x16x1xf32>
    %323 = arith.truncf %320 : vector<1x16x16xf32> to vector<1x16x16xbf16>
    %324 = arith.truncf %308 : vector<1x16x32xf32> to vector<1x16x32xbf16>
    "tpu.trace_start"() <{level = 10 : i32, message = "bqk,bkd->bqd"}> : () -> ()
    %cst_91 = arith.constant dense<0.000000e+00> : vector<1x16x32xf32>
    %325 = tpu.matmul %323, %324, %cst_91 {dimension_numbers = #tpu.dot_dimension_numbers<[2], [1], [1], [2], [0, 0, 0, 1, 1, 2], [0], [0]>} : vector<1x16x16xbf16>, vector<1x16x32xbf16>, vector<1x16x32xf32> -> vector<1x16x32xf32>
    "tpu.trace_stop"() : () -> ()
    %326 = tpu.reciprocal %322 {approx = true} : vector<1x16x1xf32> -> vector<1x16x1xf32>
    %327 = vector.broadcast %326 : vector<1x16x1xf32> to vector<1x16x32xf32>
    %328 = arith.mulf %325, %327 : vector<1x16x32xf32>
    %329 = tpu.concatenate %305, %328 in 2 : vector<1x16x32xf32>, vector<1x16x32xf32> -> vector<1x16x64xf32>
    %330 = vector.shape_cast %329 : vector<1x16x64xf32> to vector<16x64xf32>
    %331 = arith.truncf %330 : vector<16x64xf32> to vector<16x64xbf16>
    %332 = arith.truncf %273 : vector<64x64xf32> to vector<64x64xbf16>
    %cst_92 = arith.constant dense<0.000000e+00> : vector<16x64xf32>
    %333 = tpu.matmul %331, %332, %cst_92 {dimension_numbers = #tpu.dot_dimension_numbers<[1], [0], [0], [1], [0, 0, 1, 1], [], []>} : vector<16x64xbf16>, vector<64x64xbf16>, vector<16x64xf32> -> vector<16x64xf32>
    %334 = vector.shape_cast %333 : vector<16x64xf32> to vector<1x16x64xf32>
    %335 = vector.shape_cast %274 : vector<1x64xf32> to vector<1x1x64xf32>
    %336 = vector.broadcast %335 : vector<1x1x64xf32> to vector<1x16x64xf32>
    %337 = arith.addf %334, %336 : vector<1x16x64xf32>
    %338 = arith.addf %265, %337 : vector<1x16x64xf32>
    %339 = vector.extract_strided_slice %267 {offsets = [1, 0], sizes = [1, 64], strides = [1, 1]} : vector<6x64xf32> to vector<1x64xf32>
    %340 = vector.extract_strided_slice %267 {offsets = [2, 0], sizes = [1, 64], strides = [1, 1]} : vector<6x64xf32> to vector<1x64xf32>
    %cst_93 = arith.constant dense<0.000000e+00> : vector<1x16xf32>
    %341 = vector.multi_reduction <add>, %338, %cst_93 [2] : vector<1x16x64xf32> to vector<1x16xf32>
    %342 = vector.shape_cast %341 : vector<1x16xf32> to vector<1x16x1xf32>
    %cst_94 = arith.constant 6.400000e+01 : f32
    %343 = vector.broadcast %cst_94 : f32 to vector<1x16x1xf32>
    %344 = arith.divf %342, %343 : vector<1x16x1xf32>
    %345 = vector.broadcast %344 : vector<1x16x1xf32> to vector<1x16x64xf32>
    %346 = arith.subf %338, %345 : vector<1x16x64xf32>
    %347 = arith.mulf %346, %346 : vector<1x16x64xf32>
    %cst_95 = arith.constant dense<0.000000e+00> : vector<1x16xf32>
    %348 = vector.multi_reduction <add>, %347, %cst_95 [2] : vector<1x16x64xf32> to vector<1x16xf32>
    %349 = vector.shape_cast %348 : vector<1x16xf32> to vector<1x16x1xf32>
    %cst_96 = arith.constant 6.400000e+01 : f32
    %350 = vector.broadcast %cst_96 : f32 to vector<1x16x1xf32>
    %351 = arith.divf %349, %350 : vector<1x16x1xf32>
    %352 = vector.broadcast %344 : vector<1x16x1xf32> to vector<1x16x64xf32>
    %353 = arith.subf %338, %352 : vector<1x16x64xf32>
    %cst_97 = arith.constant 9.99999974E-6 : f32
    %354 = vector.broadcast %cst_97 : f32 to vector<1x16x1xf32>
    %355 = arith.addf %351, %354 : vector<1x16x1xf32>
    %356 = math.rsqrt %355 : vector<1x16x1xf32>
    %357 = vector.broadcast %356 : vector<1x16x1xf32> to vector<1x16x64xf32>
    %358 = arith.mulf %353, %357 : vector<1x16x64xf32>
    %359 = vector.shape_cast %339 : vector<1x64xf32> to vector<1x1x64xf32>
    %360 = vector.broadcast %359 : vector<1x1x64xf32> to vector<1x16x64xf32>
    %361 = arith.mulf %358, %360 : vector<1x16x64xf32>
    %362 = vector.shape_cast %340 : vector<1x64xf32> to vector<1x1x64xf32>
    %363 = vector.broadcast %362 : vector<1x1x64xf32> to vector<1x16x64xf32>
    %364 = arith.addf %361, %363 : vector<1x16x64xf32>
    %365 = vector.extract_strided_slice %6 {offsets = [1, 0, 0], sizes = [1, 192, 128], strides = [1, 1, 1]} : vector<2x192x128xf32> to vector<1x192x128xf32>
    %366 = vector.shape_cast %365 : vector<1x192x128xf32> to vector<192x128xf32>
    %367 = vector.extract_strided_slice %7 {offsets = [1, 0, 0], sizes = [1, 1, 128], strides = [1, 1, 1]} : vector<2x1x128xf32> to vector<1x1x128xf32>
    %368 = vector.shape_cast %367 : vector<1x1x128xf32> to vector<1x128xf32>
    %369 = vector.extract_strided_slice %8 {offsets = [1, 0, 0, 0], sizes = [1, 3, 128, 64], strides = [1, 1, 1, 1]} : vector<2x3x128x64xf32> to vector<1x3x128x64xf32>
    %370 = vector.shape_cast %369 : vector<1x3x128x64xf32> to vector<3x128x64xf32>
    %371 = vector.extract_strided_slice %267 {offsets = [3, 0], sizes = [1, 64], strides = [1, 1]} : vector<6x64xf32> to vector<1x64xf32>
    %372 = vector.broadcast %14 : vector<1x16x1xf32> to vector<1x16x64xf32>
    %373 = arith.mulf %364, %372 : vector<1x16x64xf32>
    %cst_98 = arith.constant 0.000000e+00 : f32
    %374 = vector.broadcast %cst_98 : f32 to vector<1x2x64xf32>
    %375 = vector.extract_strided_slice %373 {offsets = [0, 0, 0], sizes = [1, 14, 64], strides = [1, 1, 1]} : vector<1x16x64xf32> to vector<1x14x64xf32>
    %376 = tpu.concatenate %374, %375 in 1 : vector<1x2x64xf32>, vector<1x14x64xf32> -> vector<1x16x64xf32>
    %cst_99 = arith.constant 0.000000e+00 : f32
    %377 = vector.broadcast %cst_99 : f32 to vector<1x1x64xf32>
    %378 = vector.extract_strided_slice %373 {offsets = [0, 0, 0], sizes = [1, 15, 64], strides = [1, 1, 1]} : vector<1x16x64xf32> to vector<1x15x64xf32>
    %379 = tpu.concatenate %377, %378 in 1 : vector<1x1x64xf32>, vector<1x15x64xf32> -> vector<1x16x64xf32>
    %380 = tpu.concatenate %376, %379, %373 in 2 : vector<1x16x64xf32>, vector<1x16x64xf32>, vector<1x16x64xf32> -> vector<1x16x192xf32>
    %381 = vector.shape_cast %380 : vector<1x16x192xf32> to vector<16x192xf32>
    %382 = arith.truncf %381 : vector<16x192xf32> to vector<16x192xbf16>
    %383 = arith.truncf %366 : vector<192x128xf32> to vector<192x128xbf16>
    %cst_100 = arith.constant dense<0.000000e+00> : vector<16x128xf32>
    %384 = tpu.matmul %382, %383, %cst_100 {dimension_numbers = #tpu.dot_dimension_numbers<[1], [0], [0], [1], [0, 0, 1, 1], [], []>} : vector<16x192xbf16>, vector<192x128xbf16>, vector<16x128xf32> -> vector<16x128xf32>
    %385 = vector.shape_cast %384 : vector<16x128xf32> to vector<1x16x128xf32>
    %386 = vector.shape_cast %368 : vector<1x128xf32> to vector<1x1x128xf32>
    %387 = vector.broadcast %386 : vector<1x1x128xf32> to vector<1x16x128xf32>
    %388 = arith.addf %385, %387 : vector<1x16x128xf32>
    %cst_101 = arith.constant 0.000000e+00 : f32
    %389 = vector.broadcast %cst_101 : f32 to vector<1x16x128xf32>
    %390 = arith.maximumf %388, %389 : vector<1x16x128xf32>
    %391 = vector.broadcast %14 : vector<1x16x1xf32> to vector<1x16x128xf32>
    %392 = arith.mulf %390, %391 : vector<1x16x128xf32>
    %cst_102 = arith.constant 0.000000e+00 : f32
    %393 = vector.broadcast %cst_102 : f32 to vector<1x2x128xf32>
    %394 = vector.extract_strided_slice %392 {offsets = [0, 0, 0], sizes = [1, 14, 128], strides = [1, 1, 1]} : vector<1x16x128xf32> to vector<1x14x128xf32>
    %395 = tpu.concatenate %393, %394 in 1 : vector<1x2x128xf32>, vector<1x14x128xf32> -> vector<1x16x128xf32>
    %396 = vector.shape_cast %395 : vector<1x16x128xf32> to vector<16x128xf32>
    %397 = vector.extract_strided_slice %370 {offsets = [0, 0, 0], sizes = [1, 128, 64], strides = [1, 1, 1]} : vector<3x128x64xf32> to vector<1x128x64xf32>
    %398 = vector.shape_cast %397 : vector<1x128x64xf32> to vector<128x64xf32>
    %399 = arith.truncf %396 : vector<16x128xf32> to vector<16x128xbf16>
    %400 = arith.truncf %398 : vector<128x64xf32> to vector<128x64xbf16>
    %cst_103 = arith.constant dense<0.000000e+00> : vector<16x64xf32>
    %401 = tpu.matmul %399, %400, %cst_103 {dimension_numbers = #tpu.dot_dimension_numbers<[1], [0], [0], [1], [0, 0, 1, 1], [], []>} : vector<16x128xbf16>, vector<128x64xbf16>, vector<16x64xf32> -> vector<16x64xf32>
    %cst_104 = arith.constant 0.000000e+00 : f32
    %402 = vector.broadcast %cst_104 : f32 to vector<1x1x128xf32>
    %403 = vector.extract_strided_slice %392 {offsets = [0, 0, 0], sizes = [1, 15, 128], strides = [1, 1, 1]} : vector<1x16x128xf32> to vector<1x15x128xf32>
    %404 = tpu.concatenate %402, %403 in 1 : vector<1x1x128xf32>, vector<1x15x128xf32> -> vector<1x16x128xf32>
    %405 = vector.shape_cast %404 : vector<1x16x128xf32> to vector<16x128xf32>
    %406 = vector.extract_strided_slice %370 {offsets = [1, 0, 0], sizes = [1, 128, 64], strides = [1, 1, 1]} : vector<3x128x64xf32> to vector<1x128x64xf32>
    %407 = vector.shape_cast %406 : vector<1x128x64xf32> to vector<128x64xf32>
    %408 = arith.truncf %405 : vector<16x128xf32> to vector<16x128xbf16>
    %409 = arith.truncf %407 : vector<128x64xf32> to vector<128x64xbf16>
    %cst_105 = arith.constant dense<0.000000e+00> : vector<16x64xf32>
    %410 = tpu.matmul %408, %409, %cst_105 {dimension_numbers = #tpu.dot_dimension_numbers<[1], [0], [0], [1], [0, 0, 1, 1], [], []>} : vector<16x128xbf16>, vector<128x64xbf16>, vector<16x64xf32> -> vector<16x64xf32>
    %411 = arith.addf %401, %410 : vector<16x64xf32>
    %412 = vector.shape_cast %392 : vector<1x16x128xf32> to vector<16x128xf32>
    %413 = vector.extract_strided_slice %370 {offsets = [2, 0, 0], sizes = [1, 128, 64], strides = [1, 1, 1]} : vector<3x128x64xf32> to vector<1x128x64xf32>
    %414 = vector.shape_cast %413 : vector<1x128x64xf32> to vector<128x64xf32>
    %415 = arith.truncf %412 : vector<16x128xf32> to vector<16x128xbf16>
    %416 = arith.truncf %414 : vector<128x64xf32> to vector<128x64xbf16>
    %cst_106 = arith.constant dense<0.000000e+00> : vector<16x64xf32>
    %417 = tpu.matmul %415, %416, %cst_106 {dimension_numbers = #tpu.dot_dimension_numbers<[1], [0], [0], [1], [0, 0, 1, 1], [], []>} : vector<16x128xbf16>, vector<128x64xbf16>, vector<16x64xf32> -> vector<16x64xf32>
    %418 = arith.addf %411, %417 : vector<16x64xf32>
    %419 = vector.shape_cast %418 : vector<16x64xf32> to vector<1x16x64xf32>
    %420 = vector.shape_cast %371 : vector<1x64xf32> to vector<1x1x64xf32>
    %421 = vector.broadcast %420 : vector<1x1x64xf32> to vector<1x16x64xf32>
    %422 = arith.addf %419, %421 : vector<1x16x64xf32>
    %423 = vector.broadcast %14 : vector<1x16x1xf32> to vector<1x16x64xf32>
    %424 = arith.mulf %422, %423 : vector<1x16x64xf32>
    %425 = arith.addf %364, %424 : vector<1x16x64xf32>
    %426 = vector.extract_strided_slice %267 {offsets = [4, 0], sizes = [1, 64], strides = [1, 1]} : vector<6x64xf32> to vector<1x64xf32>
    %427 = vector.extract_strided_slice %267 {offsets = [5, 0], sizes = [1, 64], strides = [1, 1]} : vector<6x64xf32> to vector<1x64xf32>
    %cst_107 = arith.constant dense<0.000000e+00> : vector<1x16xf32>
    %428 = vector.multi_reduction <add>, %425, %cst_107 [2] : vector<1x16x64xf32> to vector<1x16xf32>
    %429 = vector.shape_cast %428 : vector<1x16xf32> to vector<1x16x1xf32>
    %cst_108 = arith.constant 6.400000e+01 : f32
    %430 = vector.broadcast %cst_108 : f32 to vector<1x16x1xf32>
    %431 = arith.divf %429, %430 : vector<1x16x1xf32>
    %432 = vector.broadcast %431 : vector<1x16x1xf32> to vector<1x16x64xf32>
    %433 = arith.subf %425, %432 : vector<1x16x64xf32>
    %434 = arith.mulf %433, %433 : vector<1x16x64xf32>
    %cst_109 = arith.constant dense<0.000000e+00> : vector<1x16xf32>
    %435 = vector.multi_reduction <add>, %434, %cst_109 [2] : vector<1x16x64xf32> to vector<1x16xf32>
    %436 = vector.shape_cast %435 : vector<1x16xf32> to vector<1x16x1xf32>
    %cst_110 = arith.constant 6.400000e+01 : f32
    %437 = vector.broadcast %cst_110 : f32 to vector<1x16x1xf32>
    %438 = arith.divf %436, %437 : vector<1x16x1xf32>
    %439 = vector.broadcast %431 : vector<1x16x1xf32> to vector<1x16x64xf32>
    %440 = arith.subf %425, %439 : vector<1x16x64xf32>
    %cst_111 = arith.constant 9.99999974E-6 : f32
    %441 = vector.broadcast %cst_111 : f32 to vector<1x16x1xf32>
    %442 = arith.addf %438, %441 : vector<1x16x1xf32>
    %443 = math.rsqrt %442 : vector<1x16x1xf32>
    %444 = vector.broadcast %443 : vector<1x16x1xf32> to vector<1x16x64xf32>
    %445 = arith.mulf %440, %444 : vector<1x16x64xf32>
    %446 = vector.shape_cast %426 : vector<1x64xf32> to vector<1x1x64xf32>
    %447 = vector.broadcast %446 : vector<1x1x64xf32> to vector<1x16x64xf32>
    %448 = arith.mulf %445, %447 : vector<1x16x64xf32>
    %449 = vector.shape_cast %427 : vector<1x64xf32> to vector<1x1x64xf32>
    %450 = vector.broadcast %449 : vector<1x1x64xf32> to vector<1x16x64xf32>
    %451 = arith.addf %448, %450 : vector<1x16x64xf32>
    %452 = vector.broadcast %14 : vector<1x16x1xf32> to vector<1x16x64xf32>
    %453 = arith.mulf %451, %452 : vector<1x16x64xf32>
    %454 = vector.shape_cast %453 : vector<1x16x64xf32> to vector<16x64xf32>
    %455 = arith.truncf %454 : vector<16x64xf32> to vector<16x64xbf16>
    %456 = arith.truncf %10 : vector<64x2xf32> to vector<64x2xbf16>
    %cst_112 = arith.constant dense<0.000000e+00> : vector<16x2xf32>
    %457 = tpu.matmul %455, %456, %cst_112 {dimension_numbers = #tpu.dot_dimension_numbers<[1], [0], [0], [1], [0, 0, 1, 1], [], []>} : vector<16x64xbf16>, vector<64x2xbf16>, vector<16x2xf32> -> vector<16x2xf32>
    %458 = vector.shape_cast %457 : vector<16x2xf32> to vector<1x16x2xf32>
    %459 = vector.shape_cast %11 : vector<1x2xf32> to vector<1x1x2xf32>
    %460 = vector.broadcast %459 : vector<1x1x2xf32> to vector<1x16x2xf32>
    %461 = arith.addf %458, %460 : vector<1x16x2xf32>
    %462 = vector.broadcast %14 : vector<1x16x1xf32> to vector<1x16x2xf32>
    %463 = arith.mulf %461, %462 : vector<1x16x2xf32>
    %c0_113 = arith.constant 0 : index
    %c0_114 = arith.constant 0 : index
    %c0_115 = arith.constant 0 : index
    %464 = vector.load %arg17[%c0_113, %c0_114, %c0_115] : memref<1x16x2xf32, #tpu.memory_space<vmem>>, vector<1x16x2xf32>
    tpu.vector_store %arg17[%c0_113, %c0_114, %c0_115], %463 {strides = array<i32>} : memref<1x16x2xf32, #tpu.memory_space<vmem>>, vector<1x16x2xf32>,
    return
  }
  func.func @transform_0(%arg0: i32) -> (i32, i32, i32) {
    %c0_i32 = arith.constant 0 : i32
    %c0_i32_0 = arith.constant 0 : i32
    %c0_i32_1 = arith.constant 0 : i32
    return %arg0, %c0_i32, %c0_i32_0 : i32, i32, i32
  }
  func.func @transform_1(%arg0: i32) -> (i32, i32, i32) {
    %c0_i32 = arith.constant 0 : i32
    %c0_i32_0 = arith.constant 0 : i32
    %c0_i32_1 = arith.constant 0 : i32
    return %arg0, %c0_i32, %c0_i32_0 : i32, i32, i32
  }
  func.func @transform_2(%arg0: i32) -> (i32, i32, i32) {
    %c0_i32 = arith.constant 0 : i32
    %c0_i32_0 = arith.constant 0 : i32
    %c0_i32_1 = arith.constant 0 : i32
    return %arg0, %c0_i32, %c0_i32_0 : i32, i32, i32
  }
  func.func @transform_3(%arg0: i32) -> (i32, i32, i32) {
    %c0_i32 = arith.constant 0 : i32
    %c0_i32_0 = arith.constant 0 : i32
    %c0_i32_1 = arith.constant 0 : i32
    return %arg0, %c0_i32, %c0_i32_0 : i32, i32, i32
  }
  func.func @transform_4(%arg0: i32) -> (i32, i32) {
    %c0_i32 = arith.constant 0 : i32
    %c0_i32_0 = arith.constant 0 : i32
    %c0_i32_1 = arith.constant 0 : i32
    return %c0_i32, %c0_i32_0 : i32, i32
  }
  func.func @transform_5(%arg0: i32) -> (i32, i32) {
    %c0_i32 = arith.constant 0 : i32
    %c0_i32_0 = arith.constant 0 : i32
    %c0_i32_1 = arith.constant 0 : i32
    return %c0_i32, %c0_i32_0 : i32, i32
  }
  func.func @transform_6(%arg0: i32) -> (i32, i32) {
    %c0_i32 = arith.constant 0 : i32
    %c0_i32_0 = arith.constant 0 : i32
    %c0_i32_1 = arith.constant 0 : i32
    return %c0_i32, %c0_i32_0 : i32, i32
  }
  func.func @transform_7(%arg0: i32) -> (i32, i32, i32) {
    %c0_i32 = arith.constant 0 : i32
    %c0_i32_0 = arith.constant 0 : i32
    %c0_i32_1 = arith.constant 0 : i32
    %c0_i32_2 = arith.constant 0 : i32
    return %c0_i32, %c0_i32_0, %c0_i32_1 : i32, i32, i32
  }
  func.func @transform_8(%arg0: i32) -> (i32, i32, i32) {
    %c0_i32 = arith.constant 0 : i32
    %c0_i32_0 = arith.constant 0 : i32
    %c0_i32_1 = arith.constant 0 : i32
    %c0_i32_2 = arith.constant 0 : i32
    return %c0_i32, %c0_i32_0, %c0_i32_1 : i32, i32, i32
  }
  func.func @transform_9(%arg0: i32) -> (i32, i32, i32) {
    %c0_i32 = arith.constant 0 : i32
    %c0_i32_0 = arith.constant 0 : i32
    %c0_i32_1 = arith.constant 0 : i32
    %c0_i32_2 = arith.constant 0 : i32
    return %c0_i32, %c0_i32_0, %c0_i32_1 : i32, i32, i32
  }
  func.func @transform_10(%arg0: i32) -> (i32, i32, i32) {
    %c0_i32 = arith.constant 0 : i32
    %c0_i32_0 = arith.constant 0 : i32
    %c0_i32_1 = arith.constant 0 : i32
    %c0_i32_2 = arith.constant 0 : i32
    return %c0_i32, %c0_i32_0, %c0_i32_1 : i32, i32, i32
  }
  func.func @transform_11(%arg0: i32) -> (i32, i32, i32) {
    %c0_i32 = arith.constant 0 : i32
    %c0_i32_0 = arith.constant 0 : i32
    %c0_i32_1 = arith.constant 0 : i32
    %c0_i32_2 = arith.constant 0 : i32
    return %c0_i32, %c0_i32_0, %c0_i32_1 : i32, i32, i32
  }
  func.func @transform_12(%arg0: i32) -> (i32, i32, i32, i32) {
    %c0_i32 = arith.constant 0 : i32
    %c0_i32_0 = arith.constant 0 : i32
    %c0_i32_1 = arith.constant 0 : i32
    %c0_i32_2 = arith.constant 0 : i32
    %c0_i32_3 = arith.constant 0 : i32
    return %c0_i32, %c0_i32_0, %c0_i32_1, %c0_i32_2 : i32, i32, i32, i32
  }
  func.func @transform_13(%arg0: i32) -> (i32, i32, i32) {
    %c0_i32 = arith.constant 0 : i32
    %c0_i32_0 = arith.constant 0 : i32
    %c0_i32_1 = arith.constant 0 : i32
    %c0_i32_2 = arith.constant 0 : i32
    return %c0_i32, %c0_i32_0, %c0_i32_1 : i32, i32, i32
  }
  func.func @transform_14(%arg0: i32) -> (i32, i32) {
    %c0_i32 = arith.constant 0 : i32
    %c0_i32_0 = arith.constant 0 : i32
    %c0_i32_1 = arith.constant 0 : i32
    return %c0_i32, %c0_i32_0 : i32, i32
  }
  func.func @transform_15(%arg0: i32) -> (i32, i32) {
    %c0_i32 = arith.constant 0 : i32
    %c0_i32_0 = arith.constant 0 : i32
    %c0_i32_1 = arith.constant 0 : i32
    return %c0_i32, %c0_i32_0 : i32, i32
  }
  func.func @transform_16(%arg0: i32) -> (i32, i32, i32) {
    %c0_i32 = arith.constant 0 : i32
    %c0_i32_0 = arith.constant 0 : i32
    %c0_i32_1 = arith.constant 0 : i32
    return %arg0, %c0_i32, %c0_i32_0 : i32, i32, i32
  }
}

</mosaic_0001>

<llo_original>
// kernel: tpu_custom_call.1
$region0: #{tpu_custom_call.1}
  #allocation0 [shape = 'u32[]', space=smem, size = 0x4, offset = 0x4, fixed_abs, tag = 'smem constant byte address 0x4 - core index']
  #allocation1 [shape = 'u32[144,128]{1,0:T(1,128)}', space=vmem, size = 0x12000, scoped, tag = 'internal scratch']
  %s0 = inlined_call_operand.vmem [shape: f32[2,16,64], index: 0, kind: input, shape index: {}]
  %s1 = inlined_call_operand.vmem [shape: f32[2,16,1], index: 1, kind: input, shape index: {}]
  %s2 = inlined_call_operand.vmem [shape: f32[2,16,1], index: 2, kind: input, shape index: {}]
  %s3 = inlined_call_operand.vmem [shape: f32[2,1,8], index: 3, kind: input, shape index: {}]
  %s4 = inlined_call_operand.vmem [shape: f32[8,64], index: 4, kind: input, shape index: {}]
  %s5 = inlined_call_operand.vmem [shape: f32[6,64], index: 5, kind: input, shape index: {}]
  %s6 = inlined_call_operand.vmem [shape: f32[192,64], index: 6, kind: input, shape index: {}]
  %s7 = inlined_call_operand.vmem [shape: f32[2,64,192], index: 7, kind: input, shape index: {}]
  %s8 = inlined_call_operand.vmem [shape: f32[2,1,192], index: 8, kind: input, shape index: {}]
  %s9 = inlined_call_operand.vmem [shape: f32[2,64,64], index: 9, kind: input, shape index: {}]
  %s10 = inlined_call_operand.vmem [shape: f32[2,192,128], index: 10, kind: input, shape index: {}]
  %s11 = inlined_call_operand.vmem [shape: f32[2,1,128], index: 11, kind: input, shape index: {}]
  %s12 = inlined_call_operand.vmem [shape: f32[2,3,128,64], index: 12, kind: input, shape index: {}]
  %s13 = inlined_call_operand.vmem [shape: f32[2,6,64], index: 13, kind: input, shape index: {}]
  %s14 = inlined_call_operand.vmem [shape: f32[64,2], index: 14, kind: input, shape index: {}]
  %s15 = inlined_call_operand.vmem [shape: f32[1,2], index: 15, kind: input, shape index: {}]
  %s16 = inlined_call_operand.vmem [shape: f32[2,16,2], index: 16, kind: output, shape index: {}]
  %s17 = sld [smem:[#allocation0]]
  $region97: #{tpu_custom_call.1} parent=0
    _
  %s19 = ssub.s32 1, %s17
  %s20 = scalar_select 0, %s19, %s17
  loop: start=0, step=1, limit=4
  $region2: #{tpu_custom_call.1} parent=0 // loop_pre_header
    _
  $region3: #{tpu_custom_call.1} parent=0 // loop_header
    %s22 = sphi 0, %s26
    %p23 = scmp.ge.s32.totalorder %s22, 4
    %s32 = sphi 0, %s34
    %s35 = sphi 0, %s32
    %s36 = sphi 0, %s35
    %s52 = sphi 0, %s36
    %s58 = sphi 0, %s60
    %s61 = sphi 0, %s58
    %s62 = sphi 0, %s61
    %s78 = sphi 0, %s62
    %s84 = sphi 0, %s86
    %s87 = sphi 0, %s84
    %s88 = sphi 0, %s87
    %s104 = sphi 0, %s88
    %s110 = sphi 0, %s112
    %s113 = sphi 0, %s110
    %s114 = sphi 0, %s113
    %s130 = sphi 0, %s114
    %s134 = sphi 0, %s134
    %s136 = sphi 0, %s134
    %s137 = sphi 0, %s136
    %s151 = sphi 0, %s137
    %s155 = sphi 0, %s155
    %s157 = sphi 0, %s155
    %s158 = sphi 0, %s157
    %s172 = sphi 0, %s158
    %s176 = sphi 0, %s176
    %s178 = sphi 0, %s176
    %s179 = sphi 0, %s178
    %s193 = sphi 0, %s179
    %s197 = sphi 0, %s197
    %s199 = sphi 0, %s197
    %s200 = sphi 0, %s199
    %s214 = sphi 0, %s200
    %s218 = sphi 0, %s218
    %s220 = sphi 0, %s218
    %s221 = sphi 0, %s220
    %s235 = sphi 0, %s221
    %s239 = sphi 0, %s239
    %s241 = sphi 0, %s239
    %s242 = sphi 0, %s241
    %s256 = sphi 0, %s242
    %s260 = sphi 0, %s260
    %s262 = sphi 0, %s260
    %s263 = sphi 0, %s262
    %s277 = sphi 0, %s263
    %s281 = sphi 0, %s281
    %s283 = sphi 0, %s281
    %s284 = sphi 0, %s283
    %s298 = sphi 0, %s284
    %s302 = sphi 0, %s302
    %s304 = sphi 0, %s302
    %s305 = sphi 0, %s304
    %s319 = sphi 0, %s305
    %s323 = sphi 0, %s323
    %s325 = sphi 0, %s323
    %s326 = sphi 0, %s325
    %s340 = sphi 0, %s326
    %s344 = sphi 0, %s344
    %s346 = sphi 0, %s344
    %s347 = sphi 0, %s346
    %s361 = sphi 0, %s347
    %s365 = sphi 0, %s365
    %s367 = sphi 0, %s365
    %s368 = sphi 0, %s367
    %s382 = sphi 0, %s368
    %s388 = sphi 0, %s390
    %s391 = sphi 0, %s388
    %s392 = sphi 0, %s391
    %s408 = sphi 0, %s392
  $region4: #{tpu_custom_call.1} parent=0 // loop_header_branch
    %25 = sbr.rel (%p23) target = $region8
  $region5: #{tpu_custom_call.1} parent=0 // loop_body
    %s27 = ssub.s32 %s22, 1
    %s28 = ssub.s32 %s22, 2
    %s29 = sadd.s32 %s22, 1
    %s30 = ssub.s32 %s22, %s29
    %p31 = scmp.eq.s32.totalorder %s30, 0
    %s33 = sadd.s32 %s32, 1
    %s34 = scalar_select %p31, %s32, %s33
    %p37 = pneg %p31
    %p38 = scmp.eq.s32.totalorder %s22, 1
    %p39 = por %p37, %p38
    %p40 = scmp.ne.s32.totalorder %s32, %s35
    %p41 = scmp.eq.s32.totalorder %s22, 0
    %p42 = por %p40, %p41
    %p43 = scmp.ne.s32.totalorder %s32, %s35
    %p44 = scmp.eq.s32.totalorder %s27, 1
    %p45 = por %p43, %p44
    %p46 = scmp.ne.s32.totalorder %s35, %s36
    %p47 = scmp.eq.s32.totalorder %s27, 0
    %p48 = por %p46, %p47
    %p49 = scmp.ne.s32.totalorder %s35, %s36
    %p50 = scmp.eq.s32.totalorder %s28, 1
    %p51 = por %p49, %p50
    %p53 = scmp.ne.s32.totalorder %s36, %s52
    %p54 = scmp.eq.s32.totalorder %s28, 0
    %p55 = por %p53, %p54
    %s56 = ssub.s32 %s22, %s29
    %p57 = scmp.eq.s32.totalorder %s56, 0
    %s59 = sadd.s32 %s58, 1
    %s60 = scalar_select %p57, %s58, %s59
    %p63 = pneg %p57
    %p64 = scmp.eq.s32.totalorder %s22, 1
    %p65 = por %p63, %p64
    %p66 = scmp.ne.s32.totalorder %s58, %s61
    %p67 = scmp.eq.s32.totalorder %s22, 0
    %p68 = por %p66, %p67
    %p69 = scmp.ne.s32.totalorder %s58, %s61
    %p70 = scmp.eq.s32.totalorder %s27, 1
    %p71 = por %p69, %p70
    %p72 = scmp.ne.s32.totalorder %s61, %s62
    %p73 = scmp.eq.s32.totalorder %s27, 0
    %p74 = por %p72, %p73
    %p75 = scmp.ne.s32.totalorder %s61, %s62
    %p76 = scmp.eq.s32.totalorder %s28, 1
    %p77 = por %p75, %p76
    %p79 = scmp.ne.s32.totalorder %s62, %s78
    %p80 = scmp.eq.s32.totalorder %s28, 0
    %p81 = por %p79, %p80
    %s82 = ssub.s32 %s22, %s29
    %p83 = scmp.eq.s32.totalorder %s82, 0
    %s85 = sadd.s32 %s84, 1
    %s86 = scalar_select %p83, %s84, %s85
    %p89 = pneg %p83
    %p90 = scmp.eq.s32.totalorder %s22, 1
    %p91 = por %p89, %p90
    %p92 = scmp.ne.s32.totalorder %s84, %s87
    %p93 = scmp.eq.s32.totalorder %s22, 0
    %p94 = por %p92, %p93
    %p95 = scmp.ne.s32.totalorder %s84, %s87
    %p96 = scmp.eq.s32.totalorder %s27, 1
    %p97 = por %p95, %p96
    %p98 = scmp.ne.s32.totalorder %s87, %s88
    %p99 = scmp.eq.s32.totalorder %s27, 0
    %p100 = por %p98, %p99
    %p101 = scmp.ne.s32.totalorder %s87, %s88
    %p102 = scmp.eq.s32.totalorder %s28, 1
    %p103 = por %p101, %p102
    %p105 = scmp.ne.s32.totalorder %s88, %s104
    %p106 = scmp.eq.s32.totalorder %s28, 0
    %p107 = por %p105, %p106
    %s108 = ssub.s32 %s22, %s29
    %p109 = scmp.eq.s32.totalorder %s108, 0
    %s111 = sadd.s32 %s110, 1
    %s112 = scalar_select %p109, %s110, %s111
    %p115 = pneg %p109
    %p116 = scmp.eq.s32.totalorder %s22, 1
    %p117 = por %p115, %p116
    %p118 = scmp.ne.s32.totalorder %s110, %s113
    %p119 = scmp.eq.s32.totalorder %s22, 0
    %p120 = por %p118, %p119
    %p121 = scmp.ne.s32.totalorder %s110, %s113
    %p122 = scmp.eq.s32.totalorder %s27, 1
    %p123 = por %p121, %p122
    %p124 = scmp.ne.s32.totalorder %s113, %s114
    %p125 = scmp.eq.s32.totalorder %s27, 0
    %p126 = por %p124, %p125
    %p127 = scmp.ne.s32.totalorder %s113, %s114
    %p128 = scmp.eq.s32.totalorder %s28, 1
    %p129 = por %p127, %p128
    %p131 = scmp.ne.s32.totalorder %s114, %s130
    %p132 = scmp.eq.s32.totalorder %s28, 0
    %p133 = por %p131, %p132
    %s135 = sadd.s32 %s134, 1
    %p138 = scmp.eq.s32.totalorder %s22, 1
    %p139 = scmp.ne.s32.totalorder %s134, %s136
    %p140 = scmp.eq.s32.totalorder %s22, 0
    %p141 = por %p139, %p140
    %p142 = scmp.ne.s32.totalorder %s134, %s136
    %p143 = scmp.eq.s32.totalorder %s27, 1
    %p144 = por %p142, %p143
    %p145 = scmp.ne.s32.totalorder %s136, %s137
    %p146 = scmp.eq.s32.totalorder %s27, 0
    %p147 = por %p145, %p146
    %p148 = scmp.ne.s32.totalorder %s136, %s137
    %p149 = scmp.eq.s32.totalorder %s28, 1
    %p150 = por %p148, %p149
    %p152 = scmp.ne.s32.totalorder %s137, %s151
    %p153 = scmp.eq.s32.totalorder %s28, 0
    %p154 = por %p152, %p153
    %s156 = sadd.s32 %s155, 1
    %p159 = scmp.eq.s32.totalorder %s22, 1
    %p160 = scmp.ne.s32.totalorder %s155, %s157
    %p161 = scmp.eq.s32.totalorder %s22, 0
    %p162 = por %p160, %p161
    %p163 = scmp.ne.s32.totalorder %s155, %s157
    %p164 = scmp.eq.s32.totalorder %s27, 1
    %p165 = por %p163, %p164
    %p166 = scmp.ne.s32.totalorder %s157, %s158
    %p167 = scmp.eq.s32.totalorder %s27, 0
    %p168 = por %p166, %p167
    %p169 = scmp.ne.s32.totalorder %s157, %s158
    %p170 = scmp.eq.s32.totalorder %s28, 1
    %p171 = por %p169, %p170
    %p173 = scmp.ne.s32.totalorder %s158, %s172
    %p174 = scmp.eq.s32.totalorder %s28, 0
    %p175 = por %p173, %p174
    %s177 = sadd.s32 %s176, 1
    %p180 = scmp.eq.s32.totalorder %s22, 1
    %p181 = scmp.ne.s32.totalorder %s176, %s178
    %p182 = scmp.eq.s32.totalorder %s22, 0
    %p183 = por %p181, %p182
    %p184 = scmp.ne.s32.totalorder %s176, %s178
    %p185 = scmp.eq.s32.totalorder %s27, 1
    %p186 = por %p184, %p185
    %p187 = scmp.ne.s32.totalorder %s178, %s179
    %p188 = scmp.eq.s32.totalorder %s27, 0
    %p189 = por %p187, %p188
    %p190 = scmp.ne.s32.totalorder %s178, %s179
    %p191 = scmp.eq.s32.totalorder %s28, 1
    %p192 = por %p190, %p191
    %p194 = scmp.ne.s32.totalorder %s179, %s193
    %p195 = scmp.eq.s32.totalorder %s28, 0
    %p196 = por %p194, %p195
    %s198 = sadd.s32 %s197, 1
    %p201 = scmp.eq.s32.totalorder %s22, 1
    %p202 = scmp.ne.s32.totalorder %s197, %s199
    %p203 = scmp.eq.s32.totalorder %s22, 0
    %p204 = por %p202, %p203
    %p205 = scmp.ne.s32.totalorder %s197, %s199
    %p206 = scmp.eq.s32.totalorder %s27, 1
    %p207 = por %p205, %p206
    %p208 = scmp.ne.s32.totalorder %s199, %s200
    %p209 = scmp.eq.s32.totalorder %s27, 0
    %p210 = por %p208, %p209
    %p211 = scmp.ne.s32.totalorder %s199, %s200
    %p212 = scmp.eq.s32.totalorder %s28, 1
    %p213 = por %p211, %p212
    %p215 = scmp.ne.s32.totalorder %s200, %s214
    %p216 = scmp.eq.s32.totalorder %s28, 0
    %p217 = por %p215, %p216
    %s219 = sadd.s32 %s218, 1
    %p222 = scmp.eq.s32.totalorder %s22, 1
    %p223 = scmp.ne.s32.totalorder %s218, %s220
    %p224 = scmp.eq.s32.totalorder %s22, 0
    %p225 = por %p223, %p224
    %p226 = scmp.ne.s32.totalorder %s218, %s220
    %p227 = scmp.eq.s32.totalorder %s27, 1
    %p228 = por %p226, %p227
    %p229 = scmp.ne.s32.totalorder %s220, %s221
    %p230 = scmp.eq.s32.totalorder %s27, 0
    %p231 = por %p229, %p230
    %p232 = scmp.ne.s32.totalorder %s220, %s221
    %p233 = scmp.eq.s32.totalorder %s28, 1
    %p234 = por %p232, %p233
    %p236 = scmp.ne.s32.totalorder %s221, %s235
    %p237 = scmp.eq.s32.totalorder %s28, 0
    %p238 = por %p236, %p237
    %s240 = sadd.s32 %s239, 1
    %p243 = scmp.eq.s32.totalorder %s22, 1
    %p244 = scmp.ne.s32.totalorder %s239, %s241
    %p245 = scmp.eq.s32.totalorder %s22, 0
    %p246 = por %p244, %p245
    %p247 = scmp.ne.s32.totalorder %s239, %s241
    %p248 = scmp.eq.s32.totalorder %s27, 1
    %p249 = por %p247, %p248
    %p250 = scmp.ne.s32.totalorder %s241, %s242
    %p251 = scmp.eq.s32.totalorder %s27, 0
    %p252 = por %p250, %p251
    %p253 = scmp.ne.s32.totalorder %s241, %s242
    %p254 = scmp.eq.s32.totalorder %s28, 1
    %p255 = por %p253, %p254
    %p257 = scmp.ne.s32.totalorder %s242, %s256
    %p258 = scmp.eq.s32.totalorder %s28, 0
    %p259 = por %p257, %p258
    %s261 = sadd.s32 %s260, 1
    %p264 = scmp.eq.s32.totalorder %s22, 1
    %p265 = scmp.ne.s32.totalorder %s260, %s262
    %p266 = scmp.eq.s32.totalorder %s22, 0
    %p267 = por %p265, %p266
    %p268 = scmp.ne.s32.totalorder %s260, %s262
    %p269 = scmp.eq.s32.totalorder %s27, 1
    %p270 = por %p268, %p269
    %p271 = scmp.ne.s32.totalorder %s262, %s263
    %p272 = scmp.eq.s32.totalorder %s27, 0
    %p273 = por %p271, %p272
    %p274 = scmp.ne.s32.totalorder %s262, %s263
    %p275 = scmp.eq.s32.totalorder %s28, 1
    %p276 = por %p274, %p275
    %p278 = scmp.ne.s32.totalorder %s263, %s277
    %p279 = scmp.eq.s32.totalorder %s28, 0
    %p280 = por %p278, %p279
    %s282 = sadd.s32 %s281, 1
    %p285 = scmp.eq.s32.totalorder %s22, 1
    %p286 = scmp.ne.s32.totalorder %s281, %s283
    %p287 = scmp.eq.s32.totalorder %s22, 0
    %p288 = por %p286, %p287
    %p289 = scmp.ne.s32.totalorder %s281, %s283
    %p290 = scmp.eq.s32.totalorder %s27, 1
    %p291 = por %p289, %p290
    %p292 = scmp.ne.s32.totalorder %s283, %s284
    %p293 = scmp.eq.s32.totalorder %s27, 0
    %p294 = por %p292, %p293
    %p295 = scmp.ne.s32.totalorder %s283, %s284
    %p296 = scmp.eq.s32.totalorder %s28, 1
    %p297 = por %p295, %p296
    %p299 = scmp.ne.s32.totalorder %s284, %s298
    %p300 = scmp.eq.s32.totalorder %s28, 0
    %p301 = por %p299, %p300
    %s303 = sadd.s32 %s302, 1
    %p306 = scmp.eq.s32.totalorder %s22, 1
    %p307 = scmp.ne.s32.totalorder %s302, %s304
    %p308 = scmp.eq.s32.totalorder %s22, 0
    %p309 = por %p307, %p308
    %p310 = scmp.ne.s32.totalorder %s302, %s304
    %p311 = scmp.eq.s32.totalorder %s27, 1
    %p312 = por %p310, %p311
    %p313 = scmp.ne.s32.totalorder %s304, %s305
    %p314 = scmp.eq.s32.totalorder %s27, 0
    %p315 = por %p313, %p314
    %p316 = scmp.ne.s32.totalorder %s304, %s305
    %p317 = scmp.eq.s32.totalorder %s28, 1
    %p318 = por %p316, %p317
    %p320 = scmp.ne.s32.totalorder %s305, %s319
    %p321 = scmp.eq.s32.totalorder %s28, 0
    %p322 = por %p320, %p321
    %s324 = sadd.s32 %s323, 1
    %p327 = scmp.eq.s32.totalorder %s22, 1
    %p328 = scmp.ne.s32.totalorder %s323, %s325
    %p329 = scmp.eq.s32.totalorder %s22, 0
    %p330 = por %p328, %p329
    %p331 = scmp.ne.s32.totalorder %s323, %s325
    %p332 = scmp.eq.s32.totalorder %s27, 1
    %p333 = por %p331, %p332
    %p334 = scmp.ne.s32.totalorder %s325, %s326
    %p335 = scmp.eq.s32.totalorder %s27, 0
    %p336 = por %p334, %p335
    %p337 = scmp.ne.s32.totalorder %s325, %s326
    %p338 = scmp.eq.s32.totalorder %s28, 1
    %p339 = por %p337, %p338
    %p341 = scmp.ne.s32.totalorder %s326, %s340
    %p342 = scmp.eq.s32.totalorder %s28, 0
    %p343 = por %p341, %p342
    %s345 = sadd.s32 %s344, 1
    %p348 = scmp.eq.s32.totalorder %s22, 1
    %p349 = scmp.ne.s32.totalorder %s344, %s346
    %p350 = scmp.eq.s32.totalorder %s22, 0
    %p351 = por %p349, %p350
    %p352 = scmp.ne.s32.totalorder %s344, %s346
    %p353 = scmp.eq.s32.totalorder %s27, 1
    %p354 = por %p352, %p353
    %p355 = scmp.ne.s32.totalorder %s346, %s347
    %p356 = scmp.eq.s32.totalorder %s27, 0
    %p357 = por %p355, %p356
    %p358 = scmp.ne.s32.totalorder %s346, %s347
    %p359 = scmp.eq.s32.totalorder %s28, 1
    %p360 = por %p358, %p359
    %p362 = scmp.ne.s32.totalorder %s347, %s361
    %p363 = scmp.eq.s32.totalorder %s28, 0
    %p364 = por %p362, %p363
    %s366 = sadd.s32 %s365, 1
    %p369 = scmp.eq.s32.totalorder %s22, 1
    %p370 = scmp.ne.s32.totalorder %s365, %s367
    %p371 = scmp.eq.s32.totalorder %s22, 0
    %p372 = por %p370, %p371
    %p373 = scmp.ne.s32.totalorder %s365, %s367
    %p374 = scmp.eq.s32.totalorder %s27, 1
    %p375 = por %p373, %p374
    %p376 = scmp.ne.s32.totalorder %s367, %s368
    %p377 = scmp.eq.s32.totalorder %s27, 0
    %p378 = por %p376, %p377
    %p379 = scmp.ne.s32.totalorder %s367, %s368
    %p380 = scmp.eq.s32.totalorder %s28, 1
    %p381 = por %p379, %p380
    %p383 = scmp.ne.s32.totalorder %s368, %s382
    %p384 = scmp.eq.s32.totalorder %s28, 0
    %p385 = por %p383, %p384
    %s386 = ssub.s32 %s22, %s29
    %p387 = scmp.eq.s32.totalorder %s386, 0
    %s389 = sadd.s32 %s388, 1
    %s390 = scalar_select %p387, %s388, %s389
    %p393 = pneg %p387
    %p394 = scmp.eq.s32.totalorder %s22, 1
    %p395 = por %p393, %p394
    %p396 = scmp.ne.s32.totalorder %s388, %s391
    %p397 = scmp.eq.s32.totalorder %s22, 0
    %p398 = por %p396, %p397
    %p399 = scmp.ne.s32.totalorder %s388, %s391
    %p400 = scmp.eq.s32.totalorder %s27, 1
    %p401 = por %p399, %p400
    %p402 = scmp.ne.s32.totalorder %s391, %s392
    %p403 = scmp.eq.s32.totalorder %s27, 0
    %p404 = por %p402, %p403
    %p405 = scmp.ne.s32.totalorder %s391, %s392
    %p406 = scmp.eq.s32.totalorder %s28, 1
    %p407 = por %p405, %p406
    %p409 = scmp.ne.s32.totalorder %s392, %s408
    %p410 = scmp.eq.s32.totalorder %s28, 0
    %p411 = por %p409, %p410
    %p412 = scmp.le.s32.totalorder 1, %s22
    %p413 = scmp.lt.s32.totalorder %s22, 3
    %p414 = pnand %p412, %p413
    %p415 = pneg %p414
    // Predicated region
    $region9: #{tpu_custom_call.1} parent=5 // pred_check
      _
    $region10: #{tpu_custom_call.1} parent=5 // pred_check_branch
      %417 = sbr.rel (%p414) target = $region12
    $region11: #{tpu_custom_call.1} parent=5 // pred_region
      %s418 = ssub.s32 %s22, 1
      // Predicated region
      $region13: #{tpu_custom_call.1} parent=11 // pred_check
        %p419 = pneg %p147
      $region14: #{tpu_custom_call.1} parent=11 // pred_check_branch
        %421 = sbr.rel (%p419) target = $region16
      $region15: #{tpu_custom_call.1} parent=11 // pred_region
        _
      $region16: #{tpu_custom_call.1} parent=11 // pred_fallthru
        _
      // Predicated region
      $region17: #{tpu_custom_call.1} parent=11 // pred_check
        %p422 = pneg %p168
      $region18: #{tpu_custom_call.1} parent=11 // pred_check_branch
        %424 = sbr.rel (%p422) target = $region20
      $region19: #{tpu_custom_call.1} parent=11 // pred_region
        _
      $region20: #{tpu_custom_call.1} parent=11 // pred_fallthru
        _
      // Predicated region
      $region21: #{tpu_custom_call.1} parent=11 // pred_check
        %p425 = pneg %p189
      $region22: #{tpu_custom_call.1} parent=11 // pred_check_branch
        %427 = sbr.rel (%p425) target = $region24
      $region23: #{tpu_custom_call.1} parent=11 // pred_region
        _
      $region24: #{tpu_custom_call.1} parent=11 // pred_fallthru
        _
      // Predicated region
      $region25: #{tpu_custom_call.1} parent=11 // pred_check
        %p428 = pneg %p210
      $region26: #{tpu_custom_call.1} parent=11 // pred_check_branch
        %430 = sbr.rel (%p428) target = $region28
      $region27: #{tpu_custom_call.1} parent=11 // pred_region
        _
      $region28: #{tpu_custom_call.1} parent=11 // pred_fallthru
        _
      // Predicated region
      $region29: #{tpu_custom_call.1} parent=11 // pred_check
        %p431 = pneg %p231
      $region30: #{tpu_custom_call.1} parent=11 // pred_check_branch
        %433 = sbr.rel (%p431) target = $region32
      $region31: #{tpu_custom_call.1} parent=11 // pred_region
        _
      $region32: #{tpu_custom_call.1} parent=11 // pred_fallthru
        _
      // Predicated region
      $region33: #{tpu_custom_call.1} parent=11 // pred_check
        %p434 = pneg %p252
      $region34: #{tpu_custom_call.1} parent=11 // pred_check_branch
        %436 = sbr.rel (%p434) target = $region36
      $region35: #{tpu_custom_call.1} parent=11 // pred_region
        _
      $region36: #{tpu_custom_call.1} parent=11 // pred_fallthru
        _
      // Predicated region
      $region37: #{tpu_custom_call.1} parent=11 // pred_check
        %p437 = pneg %p273
      $region38: #{tpu_custom_call.1} parent=11 // pred_check_branch
        %439 = sbr.rel (%p437) target = $region40
      $region39: #{tpu_custom_call.1} parent=11 // pred_region
        _
      $region40: #{tpu_custom_call.1} parent=11 // pred_fallthru
        _
      // Predicated region
      $region41: #{tpu_custom_call.1} parent=11 // pred_check
        %p440 = pneg %p294
      $region42: #{tpu_custom_call.1} parent=11 // pred_check_branch
        %442 = sbr.rel (%p440) target = $region44
      $region43: #{tpu_custom_call.1} parent=11 // pred_region
        _
      $region44: #{tpu_custom_call.1} parent=11 // pred_fallthru
        _
      // Predicated region
      $region45: #{tpu_custom_call.1} parent=11 // pred_check
        %p443 = pneg %p315
      $region46: #{tpu_custom_call.1} parent=11 // pred_check_branch
        %445 = sbr.rel (%p443) target = $region48
      $region47: #{tpu_custom_call.1} parent=11 // pred_region
        _
      $region48: #{tpu_custom_call.1} parent=11 // pred_fallthru
        _
      // Predicated region
      $region49: #{tpu_custom_call.1} parent=11 // pred_check
        %p446 = pneg %p336
      $region50: #{tpu_custom_call.1} parent=11 // pred_check_branch
        %448 = sbr.rel (%p446) target = $region52
      $region51: #{tpu_custom_call.1} parent=11 // pred_region
        _
      $region52: #{tpu_custom_call.1} parent=11 // pred_fallthru
        _
      // Predicated region
      $region53: #{tpu_custom_call.1} parent=11 // pred_check
        %p449 = pneg %p357
      $region54: #{tpu_custom_call.1} parent=11 // pred_check_branch
        %451 = sbr.rel (%p449) target = $region56
      $region55: #{tpu_custom_call.1} parent=11 // pred_region
        _
      $region56: #{tpu_custom_call.1} parent=11 // pred_fallthru
        _
      // Predicated region
      $region57: #{tpu_custom_call.1} parent=11 // pred_check
        %p452 = pneg %p378
      $region58: #{tpu_custom_call.1} parent=11 // pred_check_branch
        %454 = sbr.rel (%p452) target = $region60
      $region59: #{tpu_custom_call.1} parent=11 // pred_region
        _
      $region60: #{tpu_custom_call.1} parent=11 // pred_fallthru
        _
    $region12: #{tpu_custom_call.1} parent=5 // pred_fallthru
      _
    %p455 = scmp.lt.s32.totalorder %s22, 2
    // Predicated region
    $region61: #{tpu_custom_call.1} parent=5 // pred_check
      %p456 = pneg %p455
    $region62: #{tpu_custom_call.1} parent=5 // pred_check_branch
      %458 = sbr.rel (%p456) target = $region64
    $region63: #{tpu_custom_call.1} parent=5 // pred_region
      // Predicated region
      $region65: #{tpu_custom_call.1} parent=63 // pred_check
        %p459 = pneg %p42
      $region66: #{tpu_custom_call.1} parent=63 // pred_check_branch
        %461 = sbr.rel (%p459) target = $region68
      $region67: #{tpu_custom_call.1} parent=63 // pred_region
        %p462 = scmp.lt.s32.totalorder %s22, 1
        %s463 = scalar_select %p462, %s22, 1
        %s464 = smul.addr %s463, 2
        %s465 = smul.addr %s464, 8
        %s466 = scalar_lea.vmem %s0, %s465
      $region68: #{tpu_custom_call.1} parent=63 // pred_fallthru
        _
      // Predicated region
      $region69: #{tpu_custom_call.1} parent=63 // pred_check
        %p467 = pneg %p68
      $region70: #{tpu_custom_call.1} parent=63 // pred_check_branch
        %469 = sbr.rel (%p467) target = $region72
      $region71: #{tpu_custom_call.1} parent=63 // pred_region
        %p470 = scmp.lt.s32.totalorder %s22, 1
        %s471 = scalar_select %p470, %s22, 1
        %s472 = smul.addr %s471, 2
        %s473 = smul.addr %s472, 8
        %s474 = scalar_lea.vmem %s1, %s473
      $region72: #{tpu_custom_call.1} parent=63 // pred_fallthru
        _
      // Predicated region
      $region73: #{tpu_custom_call.1} parent=63 // pred_check
        %p475 = pneg %p94
      $region74: #{tpu_custom_call.1} parent=63 // pred_check_branch
        %477 = sbr.rel (%p475) target = $region76
      $region75: #{tpu_custom_call.1} parent=63 // pred_region
        %p478 = scmp.lt.s32.totalorder %s22, 1
        %s479 = scalar_select %p478, %s22, 1
        %s480 = smul.addr %s479, 2
        %s481 = smul.addr %s480, 8
        %s482 = scalar_lea.vmem %s2, %s481
      $region76: #{tpu_custom_call.1} parent=63 // pred_fallthru
        _
      // Predicated region
      $region77: #{tpu_custom_call.1} parent=63 // pred_check
        %p483 = pneg %p120
      $region78: #{tpu_custom_call.1} parent=63 // pred_check_branch
        %485 = sbr.rel (%p483) target = $region80
      $region79: #{tpu_custom_call.1} parent=63 // pred_region
        %p486 = scmp.lt.s32.totalorder %s22, 1
        %s487 = scalar_select %p486, %s22, 1
        %s488 = scalar_lea.vmem %s3, %s487
      $region80: #{tpu_custom_call.1} parent=63 // pred_fallthru
        _
    $region64: #{tpu_custom_call.1} parent=5 // pred_fallthru
      _
    %p489 = scmp.le.s32.totalorder 1, %s22
    %p490 = scmp.lt.s32.totalorder %s22, 3
    %p491 = pnand %p489, %p490
    %p492 = pneg %p491
    // Predicated region
    $region81: #{tpu_custom_call.1} parent=5 // pred_check
      _
    $region82: #{tpu_custom_call.1} parent=5 // pred_check_branch
      %494 = sbr.rel (%p491) target = $region84
    $region83: #{tpu_custom_call.1} parent=5 // pred_region
      %s495 = ssub.s32 %s22, 1
      %p496 = scmp.lt.s32.totalorder %s27, 1
      %s497 = scalar_select %p496, %s27, 1
      %s498 = smul.addr %s497, 2
      %s499 = smul.addr %s498, 8
      %s500 = scalar_lea.vmem %s0, %s499
      %p501 = pneg %p48
      %p502 = pneg %p45
      %p503 = scmp.lt.s32.totalorder %s27, 1
      %s504 = scalar_select %p503, %s27, 1
      %s505 = smul.addr %s504, 2
      %s506 = smul.addr %s505, 8
      %s507 = scalar_lea.vmem %s1, %s506
      %p508 = pneg %p74
      %p509 = pneg %p71
      %p510 = scmp.lt.s32.totalorder %s27, 1
      %s511 = scalar_select %p510, %s27, 1
      %s512 = smul.addr %s511, 2
      %s513 = smul.addr %s512, 8
      %s514 = scalar_lea.vmem %s2, %s513
      %p515 = pneg %p100
      %p516 = pneg %p97
      %p517 = scmp.lt.s32.totalorder %s27, 1
      %s518 = scalar_select %p517, %s27, 1
      %s519 = scalar_lea.vmem %s3, %s518
      %p520 = pneg %p126
      %p521 = pneg %p123
      %p522 = pneg %p147
      %p523 = pneg %p144
      %p524 = pneg %p168
      %p525 = pneg %p165
      %p526 = pneg %p189
      %p527 = pneg %p186
      %p528 = pneg %p210
      %p529 = pneg %p207
      %p530 = pneg %p231
      %p531 = pneg %p228
      %p532 = pneg %p252
      %p533 = pneg %p249
      %p534 = pneg %p273
      %p535 = pneg %p270
      %p536 = pneg %p294
      %p537 = pneg %p291
      %p538 = pneg %p315
      %p539 = pneg %p312
      %p540 = pneg %p336
      %p541 = pneg %p333
      %p542 = pneg %p357
      %p543 = pneg %p354
      %p544 = pneg %p378
      %p545 = pneg %p375
      %p546 = pneg %p404
      %p547 = pneg %p401
      %p548 = scmp.lt.s32.totalorder %s27, 1
      %s549 = scalar_select %p548, %s27, 1
      %s550 = smul.addr %s549, 2
      %s551 = smul.addr %s550, 8
      %s552 = scalar_lea.vmem %s16, %s551
      %p553 = scmp.lt.s32.totalorder %s27, 1
      %s554 = scalar_select %p553, %s27, 1
      %s555 = smul.addr %s554, 2
      %s556 = smul.addr %s555, 8
      %s557 = scalar_lea.vmem %s0, %s556
      %p558 = scmp.lt.s32.totalorder %s27, 1
      %s559 = scalar_select %p558, %s27, 1
      %s560 = smul.addr %s559, 2
      %s561 = smul.addr %s560, 8
      %s562 = scalar_lea.vmem %s1, %s561
      %p563 = scmp.lt.s32.totalorder %s27, 1
      %s564 = scalar_select %p563, %s27, 1
      %s565 = smul.addr %s564, 2
      %s566 = smul.addr %s565, 8
      %s567 = scalar_lea.vmem %s2, %s566
      %p568 = scmp.lt.s32.totalorder %s27, 1
      %s569 = scalar_select %p568, %s27, 1
      %s570 = scalar_lea.vmem %s3, %s569
      %p571 = scmp.lt.s32.totalorder %s27, 1
      %s572 = scalar_select %p571, %s27, 1
      %s573 = smul.addr %s572, 2
      %s574 = smul.addr %s573, 8
      %s575 = scalar_lea.vmem %s16, %s574
      %v577 = vld [vmem:[%s4] sm:$0xff]
      %v578 = vld [vmem:[%s5] sm:$0x3f]
      %v579 = vld [vmem:[%s6] sm:$0xff]
      %v580 = vld [vmem:[%s6 + $0x8] sm:$0xff]
      %v581 = vld [vmem:[%s6 + $0x10] sm:$0xff]
      %v582 = vld [vmem:[%s6 + $0x18] sm:$0xff]
      %v583 = vld [vmem:[%s6 + $0x20] sm:$0xff]
      %v584 = vld [vmem:[%s6 + $0x28] sm:$0xff]
      %v585 = vld [vmem:[%s6 + $0x30] sm:$0xff]
      %v586 = vld [vmem:[%s6 + $0x38] sm:$0xff]
      %v587 = vld [vmem:[%s6 + $0x40] sm:$0xff]
      %v588 = vld [vmem:[%s6 + $0x48] sm:$0xff]
      %v589 = vld [vmem:[%s6 + $0x50] sm:$0xff]
      %v590 = vld [vmem:[%s6 + $0x58] sm:$0xff]
      %v591 = vld [vmem:[%s6 + $0x60] sm:$0xff]
      %v592 = vld [vmem:[%s6 + $0x68] sm:$0xff]
      %v593 = vld [vmem:[%s6 + $0x70] sm:$0xff]
      %v594 = vld [vmem:[%s6 + $0x78] sm:$0xff]
      %v595 = vld [vmem:[%s6 + $0x80] sm:$0xff]
      %v596 = vld [vmem:[%s6 + $0x88] sm:$0xff]
      %v597 = vld [vmem:[%s6 + $0x90] sm:$0xff]
      %v598 = vld [vmem:[%s6 + $0x98] sm:$0xff]
      %v599 = vld [vmem:[%s6 + $0xa0] sm:$0xff]
      %v600 = vld [vmem:[%s6 + $0xa8] sm:$0xff]
      %v601 = vld [vmem:[%s6 + $0xb0] sm:$0xff]
      %v602 = vld [vmem:[%s6 + $0xb8] sm:$0xff]
      %v603 = vld [vmem:[%s7] sm:$0xff]
      %v604 = vld [vmem:[%s7 + $0x8] sm:$0xff]
      %v605 = vld [vmem:[%s7 + $0x10] sm:$0xff]
      %v606 = vld [vmem:[%s7 + $0x18] sm:$0xff]
      %v607 = vld [vmem:[%s7 + $0x20] sm:$0xff]
      %v608 = vld [vmem:[%s7 + $0x28] sm:$0xff]
      %v609 = vld [vmem:[%s7 + $0x30] sm:$0xff]
      %v610 = vld [vmem:[%s7 + $0x38] sm:$0xff]
      %v611 = vld [vmem:[%s7 + $0x40] sm:$0xff]
      %v612 = vld [vmem:[%s7 + $0x48] sm:$0xff]
      %v613 = vld [vmem:[%s7 + $0x50] sm:$0xff]
      %v614 = vld [vmem:[%s7 + $0x58] sm:$0xff]
      %v615 = vld [vmem:[%s7 + $0x60] sm:$0xff]
      %v616 = vld [vmem:[%s7 + $0x68] sm:$0xff]
      %v617 = vld [vmem:[%s7 + $0x70] sm:$0xff]
      %v618 = vld [vmem:[%s7 + $0x78] sm:$0xff]
      %v619 = vld [vmem:[%s7 + $0x80] sm:$0xff]
      %v620 = vld [vmem:[%s7 + $0x88] sm:$0xff]
      %v621 = vld [vmem:[%s7 + $0x90] sm:$0xff]
      %v622 = vld [vmem:[%s7 + $0x98] sm:$0xff]
      %v623 = vld [vmem:[%s7 + $0xa0] sm:$0xff]
      %v624 = vld [vmem:[%s7 + $0xa8] sm:$0xff]
      %v625 = vld [vmem:[%s7 + $0xb0] sm:$0xff]
      %v626 = vld [vmem:[%s7 + $0xb8] sm:$0xff]
      %v627 = vld [vmem:[%s7 + $0xc0] sm:$0xff]
      %v628 = vld [vmem:[%s7 + $0xc8] sm:$0xff]
      %v629 = vld [vmem:[%s7 + $0xd0] sm:$0xff]
      %v630 = vld [vmem:[%s7 + $0xd8] sm:$0xff]
      %v631 = vld [vmem:[%s7 + $0xe0] sm:$0xff]
      %v632 = vld [vmem:[%s7 + $0xe8] sm:$0xff]
      %v633 = vld [vmem:[%s7 + $0xf0] sm:$0xff]
      %v634 = vld [vmem:[%s7 + $0xf8] sm:$0xff]
      %v635 = vld [vmem:[%s8] sm:$0x3]
      %v636 = vld [vmem:[%s8 + $0x2] sm:$0x3]
      %v637 = vld [vmem:[%s9] sm:$0xff]
      %v638 = vld [vmem:[%s9 + $0x8] sm:$0xff]
      %v639 = vld [vmem:[%s9 + $0x10] sm:$0xff]
      %v640 = vld [vmem:[%s9 + $0x18] sm:$0xff]
      %v641 = vld [vmem:[%s9 + $0x20] sm:$0xff]
      %v642 = vld [vmem:[%s9 + $0x28] sm:$0xff]
      %v643 = vld [vmem:[%s9 + $0x30] sm:$0xff]
      %v644 = vld [vmem:[%s9 + $0x38] sm:$0xff]
      %v645 = vld [vmem:[%s9 + $0x40] sm:$0xff]
      %v646 = vld [vmem:[%s9 + $0x48] sm:$0xff]
      %v647 = vld [vmem:[%s9 + $0x50] sm:$0xff]
      %v648 = vld [vmem:[%s9 + $0x58] sm:$0xff]
      %v649 = vld [vmem:[%s9 + $0x60] sm:$0xff]
      %v650 = vld [vmem:[%s9 + $0x68] sm:$0xff]
      %v651 = vld [vmem:[%s9 + $0x70] sm:$0xff]
      %v652 = vld [vmem:[%s9 + $0x78] sm:$0xff]
      %v653 = vld [vmem:[%s10] sm:$0xff]
      %v654 = vld [vmem:[%s10 + $0x8] sm:$0xff]
      %v655 = vld [vmem:[%s10 + $0x10] sm:$0xff]
      %v656 = vld [vmem:[%s10 + $0x18] sm:$0xff]
      %v657 = vld [vmem:[%s10 + $0x20] sm:$0xff]
      %v658 = vld [vmem:[%s10 + $0x28] sm:$0xff]
      %v659 = vld [vmem:[%s10 + $0x30] sm:$0xff]
      %v660 = vld [vmem:[%s10 + $0x38] sm:$0xff]
      %v661 = vld [vmem:[%s10 + $0x40] sm:$0xff]
      %v662 = vld [vmem:[%s10 + $0x48] sm:$0xff]
      %v663 = vld [vmem:[%s10 + $0x50] sm:$0xff]
      %v664 = vld [vmem:[%s10 + $0x58] sm:$0xff]
      %v665 = vld [vmem:[%s10 + $0x60] sm:$0xff]
      %v666 = vld [vmem:[%s10 + $0x68] sm:$0xff]
      %v667 = vld [vmem:[%s10 + $0x70] sm:$0xff]
      %v668 = vld [vmem:[%s10 + $0x78] sm:$0xff]
      %v669 = vld [vmem:[%s10 + $0x80] sm:$0xff]
      %v670 = vld [vmem:[%s10 + $0x88] sm:$0xff]
      %v671 = vld [vmem:[%s10 + $0x90] sm:$0xff]
      %v672 = vld [vmem:[%s10 + $0x98] sm:$0xff]
      %v673 = vld [vmem:[%s10 + $0xa0] sm:$0xff]
      %v674 = vld [vmem:[%s10 + $0xa8] sm:$0xff]
      %v675 = vld [vmem:[%s10 + $0xb0] sm:$0xff]
      %v676 = vld [vmem:[%s10 + $0xb8] sm:$0xff]
      %v677 = vld [vmem:[%s10 + $0xc0] sm:$0xff]
      %v678 = vld [vmem:[%s10 + $0xc8] sm:$0xff]
      %v679 = vld [vmem:[%s10 + $0xd0] sm:$0xff]
      %v680 = vld [vmem:[%s10 + $0xd8] sm:$0xff]
      %v681 = vld [vmem:[%s10 + $0xe0] sm:$0xff]
      %v682 = vld [vmem:[%s10 + $0xe8] sm:$0xff]
      %v683 = vld [vmem:[%s10 + $0xf0] sm:$0xff]
      %v684 = vld [vmem:[%s10 + $0xf8] sm:$0xff]
      %v685 = vld [vmem:[%s10 + $0x100] sm:$0xff]
      %v686 = vld [vmem:[%s10 + $0x108] sm:$0xff]
      %v687 = vld [vmem:[%s10 + $0x110] sm:$0xff]
      %v688 = vld [vmem:[%s10 + $0x118] sm:$0xff]
      %v689 = vld [vmem:[%s10 + $0x120] sm:$0xff]
      %v690 = vld [vmem:[%s10 + $0x128] sm:$0xff]
      %v691 = vld [vmem:[%s10 + $0x130] sm:$0xff]
      %v692 = vld [vmem:[%s10 + $0x138] sm:$0xff]
      %v693 = vld [vmem:[%s10 + $0x140] sm:$0xff]
      %v694 = vld [vmem:[%s10 + $0x148] sm:$0xff]
      %v695 = vld [vmem:[%s10 + $0x150] sm:$0xff]
      %v696 = vld [vmem:[%s10 + $0x158] sm:$0xff]
      %v697 = vld [vmem:[%s10 + $0x160] sm:$0xff]
      %v698 = vld [vmem:[%s10 + $0x168] sm:$0xff]
      %v699 = vld [vmem:[%s10 + $0x170] sm:$0xff]
      %v700 = vld [vmem:[%s10 + $0x178] sm:$0xff]
      %v701 = vld [vmem:[%s11] sm:$0x1]
      %v702 = vld [vmem:[%s11 + $0x1] sm:$0x1]
      %v703 = vld [vmem:[%s12] sm:$0xff]
      %v704 = vld [vmem:[%s12 + $0x8] sm:$0xff]
      %v705 = vld [vmem:[%s12 + $0x10] sm:$0xff]
      %v706 = vld [vmem:[%s12 + $0x18] sm:$0xff]
      %v707 = vld [vmem:[%s12 + $0x20] sm:$0xff]
      %v708 = vld [vmem:[%s12 + $0x28] sm:$0xff]
      %v709 = vld [vmem:[%s12 + $0x30] sm:$0xff]
      %v710 = vld [vmem:[%s12 + $0x38] sm:$0xff]
      %v711 = vld [vmem:[%s12 + $0x40] sm:$0xff]
      %v712 = vld [vmem:[%s12 + $0x48] sm:$0xff]
      %v713 = vld [vmem:[%s12 + $0x50] sm:$0xff]
      %v714 = vld [vmem:[%s12 + $0x58] sm:$0xff]
      %v715 = vld [vmem:[%s12 + $0x60] sm:$0xff]
      %v716 = vld [vmem:[%s12 + $0x68] sm:$0xff]
      %v717 = vld [vmem:[%s12 + $0x70] sm:$0xff]
      %v718 = vld [vmem:[%s12 + $0x78] sm:$0xff]
      %v719 = vld [vmem:[%s12 + $0x80] sm:$0xff]
      %v720 = vld [vmem:[%s12 + $0x88] sm:$0xff]
      %v721 = vld [vmem:[%s12 + $0x90] sm:$0xff]
      %v722 = vld [vmem:[%s12 + $0x98] sm:$0xff]
      %v723 = vld [vmem:[%s12 + $0xa0] sm:$0xff]
      %v724 = vld [vmem:[%s12 + $0xa8] sm:$0xff]
      %v725 = vld [vmem:[%s12 + $0xb0] sm:$0xff]
      %v726 = vld [vmem:[%s12 + $0xb8] sm:$0xff]
      %v727 = vld [vmem:[%s12 + $0xc0] sm:$0xff]
      %v728 = vld [vmem:[%s12 + $0xc8] sm:$0xff]
      %v729 = vld [vmem:[%s12 + $0xd0] sm:$0xff]
      %v730 = vld [vmem:[%s12 + $0xd8] sm:$0xff]
      %v731 = vld [vmem:[%s12 + $0xe0] sm:$0xff]
      %v732 = vld [vmem:[%s12 + $0xe8] sm:$0xff]
      %v733 = vld [vmem:[%s12 + $0xf0] sm:$0xff]
      %v734 = vld [vmem:[%s12 + $0xf8] sm:$0xff]
      %v735 = vld [vmem:[%s12 + $0x100] sm:$0xff]
      %v736 = vld [vmem:[%s12 + $0x108] sm:$0xff]
      %v737 = vld [vmem:[%s12 + $0x110] sm:$0xff]
      %v738 = vld [vmem:[%s12 + $0x118] sm:$0xff]
      %v739 = vld [vmem:[%s12 + $0x120] sm:$0xff]
      %v740 = vld [vmem:[%s12 + $0x128] sm:$0xff]
      %v741 = vld [vmem:[%s12 + $0x130] sm:$0xff]
      %v742 = vld [vmem:[%s12 + $0x138] sm:$0xff]
      %v743 = vld [vmem:[%s12 + $0x140] sm:$0xff]
      %v744 = vld [vmem:[%s12 + $0x148] sm:$0xff]
      %v745 = vld [vmem:[%s12 + $0x150] sm:$0xff]
      %v746 = vld [vmem:[%s12 + $0x158] sm:$0xff]
      %v747 = vld [vmem:[%s12 + $0x160] sm:$0xff]
      %v748 = vld [vmem:[%s12 + $0x168] sm:$0xff]
      %v749 = vld [vmem:[%s12 + $0x170] sm:$0xff]
      %v750 = vld [vmem:[%s12 + $0x178] sm:$0xff]
      %v751 = vld [vmem:[%s12 + $0x180] sm:$0xff]
      %v752 = vld [vmem:[%s12 + $0x188] sm:$0xff]
      %v753 = vld [vmem:[%s12 + $0x190] sm:$0xff]
      %v754 = vld [vmem:[%s12 + $0x198] sm:$0xff]
      %v755 = vld [vmem:[%s12 + $0x1a0] sm:$0xff]
      %v756 = vld [vmem:[%s12 + $0x1a8] sm:$0xff]
      %v757 = vld [vmem:[%s12 + $0x1b0] sm:$0xff]
      %v758 = vld [vmem:[%s12 + $0x1b8] sm:$0xff]
      %v759 = vld [vmem:[%s12 + $0x1c0] sm:$0xff]
      %v760 = vld [vmem:[%s12 + $0x1c8] sm:$0xff]
      %v761 = vld [vmem:[%s12 + $0x1d0] sm:$0xff]
      %v762 = vld [vmem:[%s12 + $0x1d8] sm:$0xff]
      %v763 = vld [vmem:[%s12 + $0x1e0] sm:$0xff]
      %v764 = vld [vmem:[%s12 + $0x1e8] sm:$0xff]
      %v765 = vld [vmem:[%s12 + $0x1f0] sm:$0xff]
      %v766 = vld [vmem:[%s12 + $0x1f8] sm:$0xff]
      %v767 = vld [vmem:[%s12 + $0x200] sm:$0xff]
      %v768 = vld [vmem:[%s12 + $0x208] sm:$0xff]
      %v769 = vld [vmem:[%s12 + $0x210] sm:$0xff]
      %v770 = vld [vmem:[%s12 + $0x218] sm:$0xff]
      %v771 = vld [vmem:[%s12 + $0x220] sm:$0xff]
      %v772 = vld [vmem:[%s12 + $0x228] sm:$0xff]
      %v773 = vld [vmem:[%s12 + $0x230] sm:$0xff]
      %v774 = vld [vmem:[%s12 + $0x238] sm:$0xff]
      %v775 = vld [vmem:[%s12 + $0x240] sm:$0xff]
      %v776 = vld [vmem:[%s12 + $0x248] sm:$0xff]
      %v777 = vld [vmem:[%s12 + $0x250] sm:$0xff]
      %v778 = vld [vmem:[%s12 + $0x258] sm:$0xff]
      %v779 = vld [vmem:[%s12 + $0x260] sm:$0xff]
      %v780 = vld [vmem:[%s12 + $0x268] sm:$0xff]
      %v781 = vld [vmem:[%s12 + $0x270] sm:$0xff]
      %v782 = vld [vmem:[%s12 + $0x278] sm:$0xff]
      %v783 = vld [vmem:[%s12 + $0x280] sm:$0xff]
      %v784 = vld [vmem:[%s12 + $0x288] sm:$0xff]
      %v785 = vld [vmem:[%s12 + $0x290] sm:$0xff]
      %v786 = vld [vmem:[%s12 + $0x298] sm:$0xff]
      %v787 = vld [vmem:[%s12 + $0x2a0] sm:$0xff]
      %v788 = vld [vmem:[%s12 + $0x2a8] sm:$0xff]
      %v789 = vld [vmem:[%s12 + $0x2b0] sm:$0xff]
      %v790 = vld [vmem:[%s12 + $0x2b8] sm:$0xff]
      %v791 = vld [vmem:[%s12 + $0x2c0] sm:$0xff]
      %v792 = vld [vmem:[%s12 + $0x2c8] sm:$0xff]
      %v793 = vld [vmem:[%s12 + $0x2d0] sm:$0xff]
      %v794 = vld [vmem:[%s12 + $0x2d8] sm:$0xff]
      %v795 = vld [vmem:[%s12 + $0x2e0] sm:$0xff]
      %v796 = vld [vmem:[%s12 + $0x2e8] sm:$0xff]
      %v797 = vld [vmem:[%s12 + $0x2f0] sm:$0xff]
      %v798 = vld [vmem:[%s12 + $0x2f8] sm:$0xff]
      %v799 = vld [vmem:[%s13] sm:$0x3f]
      %v800 = vld [vmem:[%s13 + $0x8] sm:$0x3f]
      %v801 = vld [vmem:[%s14] sm:$0xff]
      %v802 = vld [vmem:[%s14 + $0x8] sm:$0xff]
      %v803 = vld [vmem:[%s14 + $0x10] sm:$0xff]
      %v804 = vld [vmem:[%s14 + $0x18] sm:$0xff]
      %v805 = vld [vmem:[%s14 + $0x20] sm:$0xff]
      %v806 = vld [vmem:[%s14 + $0x28] sm:$0xff]
      %v807 = vld [vmem:[%s14 + $0x30] sm:$0xff]
      %v808 = vld [vmem:[%s14 + $0x38] sm:$0xff]
      %v809 = vld [vmem:[%s15] sm:$0x1]
      %v810 = vld [vmem:[%s557] sm:$0xff]
      %v811 = vld [vmem:[%s557 + $0x8] sm:$0xff]
      %v812 = vld [vmem:[%s562] sm:$0xff]
      %v813 = vld [vmem:[%s562 + $0x8] sm:$0xff]
      %v814 = vld [vmem:[%s567] sm:$0xff]
      %v815 = vld [vmem:[%s567 + $0x8] sm:$0xff]
      %v816 = vld [vmem:[%s570] sm:$0x1]
      %v817 = vlaneseq
      %v818 = vshrl.u32 %v817, 7
      %v819 = vadd.s32 %v818, 8
      %v820 = vlaneseq
      %v821 = vand.u32 %v820, 127
      %vm822 = vcmp.ge.s32.totalorder %v818, %v821
      %vm823 = vcmp.ge.s32.totalorder %v819, %v821
      %v824 = vsel %vm822, 0.0, -10000.0
      %v825 = vsel %vm823, 0.0, -10000.0
      %v826 = vpack.c.bf16 %v816, %v816
      %v827 = vpack.c.bf16 %v577, %v577
      %vm828 = vcmask 64512
      %v830 = vsel %vm828, %v826, 0
      %vm832 = vcmask 1043456
      %v834 = vsel %vm832, %v827, 0
      %836 = vmatprep.subr.bf16.mxu0 0
      %837 = vmatpush1.bf16.msra.mxu0 %v834
      %838 = vmatprep.subr.bf16.mxu0 0
      %839 = vmatpush1.bf16.msra.mxu0 0
      %840 = vmatprep.subr.bf16.mxu0 0
      %841 = vmatpush1.bf16.msra.mxu0 0
      %842 = vmatprep.subr.bf16.mxu0 0
      %843 = vmatpush1.bf16.msra.mxu0 0
      %844 = vmatprep.subr.bf16.mxu0 0
      %845 = vmatpush1.bf16.msra.mxu0 0
      %846 = vmatprep.subr.bf16.mxu0 0
      %847 = vmatpush1.bf16.msra.mxu0 0
      %848 = vmatprep.subr.bf16.mxu0 0
      %849 = vmatpush1.bf16.msra.mxu0 0
      %850 = vmatprep.subr.bf16.mxu0 0
      %851 = vmatpush1.bf16.msra.mxu0 0
      %852 = vmatprep.subr.bf16.mxu0 0
      %853 = vmatpush1.bf16.msra.mxu0 0
      %854 = vmatprep.subr.bf16.mxu0 0
      %855 = vmatpush1.bf16.msra.mxu0 0
      %856 = vmatprep.subr.bf16.mxu0 0
      %857 = vmatpush1.bf16.msra.mxu0 0
      %858 = vmatprep.subr.bf16.mxu0 0
      %859 = vmatpush1.bf16.msra.mxu0 0
      %860 = vmatprep.subr.bf16.mxu0 0
      %861 = vmatpush1.bf16.msra.mxu0 0
      %862 = vmatprep.subr.bf16.mxu0 0
      %863 = vmatpush1.bf16.msra.mxu0 0
      %864 = vmatprep.subr.bf16.mxu0 0
      %865 = vmatpush1.bf16.msra.mxu0 0
      %866 = vmatprep.subr.bf16.mxu0 0
      %867 = vmatpush1.bf16.msra.mxu0 0
      %868 = vmatprep.mubr.bf16.mxu0 0
      %869 = vmatmul.mubr.bf16.gmra.mrb[0].mxu0 %v830
      %v870 = vpop.f32.mrb[0].mxu0
      %v871 = vadd.f32 %v578, %v870
      %v872 = vpop.f32.mrb[0].mxu0
      %v873 = vpop.f32.mrb[0].mxu0
      %v874 = vpop.f32.mrb[0].mxu0
      %875 = vdwg.mxu0
      %v876 = vlaneseq
      %v877 = vshrl.u32 %v876, 7
      %v878 = vsub.s32 0, %v877
      %v879 = vrot.slane %v871, %v878
      %v880 = vadd.f32 %v810, %v879
      %v881 = vadd.f32 %v811, %v879
      %vm884 = vcmask 1040384
      %v885 = vrot.slane %v812, 7
      %v886 = vrot.slane %v813, 7
      %v887 = vsel %vm884, %v885, %v886
      %v889 = vsel %vm884, 0.0, %v885
      %891 = vset.pattern.permute.xlu0 0
      %892 = vperm.xlu0 %891, %v889
      %v893 = vpop.permute.xlu0 %892
      %895 = vset.pattern.permute.xlu0 0
      %896 = vperm.xlu0 %895, %v887
      %v897 = vpop.permute.xlu0 %896
      %v899 = vlaneseq
      %v900 = vshrl.u32 %v899, 7
      %v901 = vsub.s32 3, %v900
      %v902 = vrot.slane %v578, %v901
      %v903 = vmul.f32 %v893, %v902
      %v904 = vmul.f32 %v897, %v902
      %v905 = vlaneseq
      %v906 = vshrl.u32 %v905, 7
      %v907 = vsub.s32 1, %v906
      %v908 = vrot.slane %v578, %v907
      %v909 = vadd.f32 %v908, %v903
      %v910 = vadd.f32 %v908, %v904
      %911 = vset.pattern.permute.xlu0 0
      %912 = vperm.xlu0 %911, %v812
      %v913 = vpop.permute.xlu0 %912
      %915 = vset.pattern.permute.xlu0 0
      %916 = vperm.xlu0 %915, %v813
      %v917 = vpop.permute.xlu0 %916
      %v919 = vlaneseq
      %v920 = vshrl.u32 %v919, 7
      %v921 = vsub.s32 4, %v920
      %v922 = vrot.slane %v578, %v921
      %v923 = vmul.f32 %v913, %v922
      %v924 = vmul.f32 %v917, %v922
      %v925 = vadd.f32 %v909, %v923
      %v926 = vadd.f32 %v910, %v924
      %vm927 = vcmask 1046528
      %v928 = vrot.slane %v812, 1
      %v929 = vrot.slane %v813, 1
      %v930 = vsel %vm927, %v928, %v929
      %v932 = vsel %vm927, %v929, 0.0
      %933 = vset.pattern.permute.xlu0 0
      %934 = vperm.xlu0 %933, %v930
      %v935 = vpop.permute.xlu0 %934
      %938 = vset.pattern.permute.xlu0 0
      %939 = vperm.xlu0 %938, %v932
      %v940 = vpop.permute.xlu0 %939
      %v942 = vlaneseq
      %v943 = vshrl.u32 %v942, 7
      %v944 = vsub.s32 5, %v943
      %v945 = vrot.slane %v578, %v944
      %v946 = vmul.f32 %v935, %v945
      %v947 = vmul.f32 %v940, %v945
      %v948 = vadd.f32 %v925, %v946
      %v949 = vadd.f32 %v926, %v947
      %v950 = vadd.f32 %v880, %v948
      %v951 = vadd.f32 %v881, %v949
      %v954 = vrot.slane %v950, 7
      %v955 = vrot.slane %v951, 7
      %v956 = vsel %vm884, %v954, %v955
      %v959 = vsel %vm884, 0.0, %v954
      %v960 = vrot.slane %v950, 1
      %v961 = vrot.slane %v951, 1
      %v962 = vsel %vm927, %v960, %v961
      %v965 = vsel %vm927, %v961, 0.0
      %966 = vrot.lane.b32.xlu0 %v950, 64
      %v967 = vpop.permute.xlu0 %966
      %968 = vrot.lane.b32.xlu0 %v951, 64
      %v969 = vpop.permute.xlu0 %968
      %vm972 = vcmask 523264
      %v973 = vsel %vm972, %v959, %v967
      %v974 = vsel %vm972, %v956, %v969
      %v975 = vpack.c.bf16 %v974, %v973
      %v976 = vpack.c.bf16 %v965, %v962
      %v977 = vpack.c.bf16 %v580, %v579
      %v978 = vpack.c.bf16 %v582, %v581
      %v979 = vpack.c.bf16 %v584, %v583
      %v980 = vpack.c.bf16 %v586, %v585
      %v981 = vpack.c.bf16 %v588, %v587
      %v982 = vpack.c.bf16 %v590, %v589
      %v983 = vpack.c.bf16 %v592, %v591
      %v984 = vpack.c.bf16 %v594, %v593
      %v985 = vpack.c.bf16 %v596, %v595
      %v986 = vpack.c.bf16 %v598, %v597
      %v987 = vpack.c.bf16 %v600, %v599
      %v988 = vpack.c.bf16 %v602, %v601
      %v990 = vsel %vm972, %v976, 0
      %992 = vmatprep.subr.bf16.mxu0 0
      %993 = vmatpush1.bf16.msra.mxu0 %v977
      %994 = vmatprep.subr.bf16.mxu0 0
      %995 = vmatpush1.bf16.msra.mxu0 %v978
      %996 = vmatprep.subr.bf16.mxu0 0
      %997 = vmatpush1.bf16.msra.mxu0 %v979
      %998 = vmatprep.subr.bf16.mxu0 0
      %999 = vmatpush1.bf16.msra.mxu0 %v980
      %1000 = vmatprep.subr.bf16.mxu0 0
      %1001 = vmatpush1.bf16.msra.mxu0 %v981
      %1002 = vmatprep.subr.bf16.mxu0 0
      %1003 = vmatpush1.bf16.msra.mxu0 %v982
      %1004 = vmatprep.subr.bf16.mxu0 0
      %1005 = vmatpush1.bf16.msra.mxu0 %v983
      %1006 = vmatprep.subr.bf16.mxu0 0
      %1007 = vmatpush1.bf16.msra.mxu0 %v984
      %1008 = vmatprep.subr.bf16.mxu0 0
      %1009 = vmatpush1.bf16.msra.mxu0 %v985
      %1010 = vmatprep.subr.bf16.mxu0 0
      %1011 = vmatpush1.bf16.msra.mxu0 %v986
      %1012 = vmatprep.subr.bf16.mxu0 0
      %1013 = vmatpush1.bf16.msra.mxu0 %v987
      %1014 = vmatprep.subr.bf16.mxu0 0
      %1015 = vmatpush1.bf16.msra.mxu0 %v988
      %1016 = vmatprep.subr.bf16.mxu0 0
      %1017 = vmatpush1.bf16.msra.mxu0 0
      %1018 = vmatprep.subr.bf16.mxu0 0
      %1019 = vmatpush1.bf16.msra.mxu0 0
      %1020 = vmatprep.subr.bf16.mxu0 0
      %1021 = vmatpush1.bf16.msra.mxu0 0
      %1022 = vmatprep.subr.bf16.mxu0 0
      %1023 = vmatpush1.bf16.msra.mxu0 0
      %1024 = vmatprep.mubr.bf16.mxu0 %v990
      %1025 = vmatmul.mubr.bf16.gmra.mrb[0].mxu0 %v975
      %v1026 = vpop.f32.mrb[0].mxu0
      %v1027 = vadd.f32 0.0, %v1026
      %v1028 = vpop.f32.mrb[0].mxu0
      %v1029 = vpop.f32.mrb[0].mxu0
      %v1030 = vadd.f32 0.0, %v1029
      %v1031 = vpop.f32.mrb[0].mxu0
      %1032 = vdwg.mxu0
      %v1033 = vlaneseq
      %v1034 = vshrl.u32 %v1033, 7
      %v1035 = vsub.s32 2, %v1034
      %v1036 = vrot.slane %v578, %v1035
      %v1037 = vadd.f32 %v1027, %v1036
      %v1038 = vadd.f32 %v1030, %v1036
      %1040 = vset.pattern.permute.xlu0 0
      %1041 = vperm.xlu0 %1040, %v814
      %v1042 = vpop.permute.xlu0 %1041
      %1045 = vset.pattern.permute.xlu0 0
      %1046 = vperm.xlu0 %1045, %v815
      %v1047 = vpop.permute.xlu0 %1046
      %v1049 = vmul.f32 %v1037, %v1042
      %v1050 = vmul.f32 %v1038, %v1047
      %v1051 = vmul.f32 %v1049, %v1042
      %v1052 = vmul.f32 %v1050, %v1047
      %v1053 = vpack.c.bf16 %v1052, %v1051
      %v1054 = vpack.c.bf16 %v605, %v603
      %v1055 = vpack.c.bf16 %v606, %v604
      %v1056 = vpack.c.bf16 %v609, %v607
      %v1057 = vpack.c.bf16 %v610, %v608
      %v1058 = vpack.c.bf16 %v613, %v611
      %v1059 = vpack.c.bf16 %v614, %v612
      %v1060 = vpack.c.bf16 %v617, %v615
      %v1061 = vpack.c.bf16 %v618, %v616
      %v1063 = vsel %vm972, %v1053, 0
      %1065 = vmatprep.subr.bf16.mxu0 %v1055
      %1066 = vmatpush1.bf16.msra.mxu0 %v1054
      %1067 = vmatprep.subr.bf16.mxu0 %v1057
      %1068 = vmatpush1.bf16.msra.mxu0 %v1056
      %1069 = vmatprep.subr.bf16.mxu0 %v1059
      %1070 = vmatpush1.bf16.msra.mxu0 %v1058
      %1071 = vmatprep.subr.bf16.mxu0 %v1061
      %1072 = vmatpush1.bf16.msra.mxu0 %v1060
      %1073 = vmatprep.subr.bf16.mxu0 0
      %1074 = vmatpush1.bf16.msra.mxu0 0
      %1075 = vmatprep.subr.bf16.mxu0 0
      %1076 = vmatpush1.bf16.msra.mxu0 0
      %1077 = vmatprep.subr.bf16.mxu0 0
      %1078 = vmatpush1.bf16.msra.mxu0 0
      %1079 = vmatprep.subr.bf16.mxu0 0
      %1080 = vmatpush1.bf16.msra.mxu0 0
      %1081 = vmatprep.subr.bf16.mxu0 0
      %1082 = vmatpush1.bf16.msra.mxu0 0
      %1083 = vmatprep.subr.bf16.mxu0 0
      %1084 = vmatpush1.bf16.msra.mxu0 0
      %1085 = vmatprep.subr.bf16.mxu0 0
      %1086 = vmatpush1.bf16.msra.mxu0 0
      %1087 = vmatprep.subr.bf16.mxu0 0
      %1088 = vmatpush1.bf16.msra.mxu0 0
      %1089 = vmatprep.subr.bf16.mxu0 0
      %1090 = vmatpush1.bf16.msra.mxu0 0
      %1091 = vmatprep.subr.bf16.mxu0 0
      %1092 = vmatpush1.bf16.msra.mxu0 0
      %1093 = vmatprep.subr.bf16.mxu0 0
      %1094 = vmatpush1.bf16.msra.mxu0 0
      %1095 = vmatprep.subr.bf16.mxu0 0
      %1096 = vmatpush1.bf16.msra.mxu0 0
      %1097 = vmatprep.mubr.bf16.mxu0 0
      %1098 = vmatmul.mubr.bf16.gmra.mrb[0].mxu0 %v1063
      %v1099 = vpop.f32.mrb[0].mxu0
      %v1100 = vadd.f32 0.0, %v1099
      %v1101 = vpop.f32.mrb[0].mxu0
      %v1102 = vadd.f32 0.0, %v1101
      %v1103 = vpop.f32.mrb[0].mxu0
      %v1104 = vadd.f32 0.0, %v1103
      %v1105 = vpop.f32.mrb[0].mxu0
      %v1106 = vadd.f32 0.0, %v1105
      %1107 = vdwg.mxu0
      %v1109 = vlaneseq
      %v1110 = vshrl.u32 %v1109, 7
      %v1111 = vsub.s32 0, %v1110
      %v1112 = vrot.slane %v635, %v1111
      %v1113 = vlaneseq
      %v1114 = vshrl.u32 %v1113, 7
      %v1115 = vsub.s32 1, %v1114
      %v1116 = vrot.slane %v635, %v1115
      %v1119 = vadd.f32 %v1100, %v1112
      %v1120 = vadd.f32 %v1102, %v1116
      %v1121 = vadd.f32 %v1104, %v1112
      %v1122 = vadd.f32 %v1106, %v1116
      %v1123 = vmul.f32 %v1119, 0.17677669
      %v1124 = vmul.f32 %v1121, 0.17677669
      %v1125 = vpack.c.bf16 %v1124, %v1123
      %v1126 = vpack.c.bf16 %v1121, %v1119
      %1128 = vrot.lane.b32.xlu0 %v1126, 64
      %v1129 = vpop.permute.xlu0 %1128
      %vm1130 = vcmask 261120
      %v1132 = vsel %vm1130, %v1125, 0
      %v1135 = vsel %vm1130, %v1129, 0
      %1137 = vmatprep.subr.bf16.mxu0 0
      %1138 = vmatpush1.bf16.xpose.msra.mxu0 %v1135
      %1139 = vmatprep.subr.bf16.mxu0 0
      %1140 = vmatpush1.bf16.xpose.msra.mxu0 0
      %1141 = vmatprep.subr.bf16.mxu0 0
      %1142 = vmatpush1.bf16.xpose.msra.mxu0 0
      %1143 = vmatprep.subr.bf16.mxu0 0
      %1144 = vmatpush1.bf16.xpose.msra.mxu0 0
      %1145 = vmatprep.subr.bf16.mxu0 0
      %1146 = vmatpush1.bf16.xpose.msra.mxu0 0
      %1147 = vmatprep.subr.bf16.mxu0 0
      %1148 = vmatpush1.bf16.xpose.msra.mxu0 0
      %1149 = vmatprep.subr.bf16.mxu0 0
      %1150 = vmatpush1.bf16.xpose.msra.mxu0 0
      %1151 = vmatprep.subr.bf16.mxu0 0
      %1152 = vmatpush1.bf16.xpose.msra.mxu0 0
      %1153 = vmatprep.subr.bf16.mxu0 0
      %1154 = vmatpush1.bf16.xpose.msra.mxu0 0
      %1155 = vmatprep.subr.bf16.mxu0 0
      %1156 = vmatpush1.bf16.xpose.msra.mxu0 0
      %1157 = vmatprep.subr.bf16.mxu0 0
      %1158 = vmatpush1.bf16.xpose.msra.mxu0 0
      %1159 = vmatprep.subr.bf16.mxu0 0
      %1160 = vmatpush1.bf16.xpose.msra.mxu0 0
      %1161 = vmatprep.subr.bf16.mxu0 0
      %1162 = vmatpush1.bf16.xpose.msra.mxu0 0
      %1163 = vmatprep.subr.bf16.mxu0 0
      %1164 = vmatpush1.bf16.xpose.msra.mxu0 0
      %1165 = vmatprep.subr.bf16.mxu0 0
      %1166 = vmatpush1.bf16.xpose.msra.mxu0 0
      %1167 = vmatprep.subr.bf16.mxu0 0
      %1168 = vmatpush1.bf16.xpose.msra.mxu0 0
      %1169 = vmatprep.mubr.bf16.mxu0 0
      %1170 = vmatmul.mubr.bf16.gmra.mrb[0].mxu0 %v1132
      %v1171 = vpop.f32.mrb[0].mxu0
      %v1172 = vadd.f32 %v824, %v1171
      %v1173 = vpop.f32.mrb[0].mxu0
      %v1174 = vpop.f32.mrb[0].mxu0
      %v1175 = vadd.f32 %v825, %v1174
      %v1176 = vpop.f32.mrb[0].mxu0
      %1177 = vdwg.mxu0
      %vm1178 = vcmask 130048
      %v1179 = vsel %vm1178, %v1172, -inf
      %1180 = vmax.xlane.f32.xlu0 %v1179
      %v1181 = vpop.xlane.xlu0 %1180
      %v1182 = vsel %vm1178, %v1175, -inf
      %1183 = vmax.xlane.f32.xlu0 %v1182
      %v1184 = vpop.xlane.xlu0 %1183
      %v1185 = vsub.f32 %v1172, %v1181
      %v1186 = vsub.f32 %v1175, %v1184
      %v1187 = vmul.f32 %v1185, 1.442695
      %v1188 = vpow.pop %v1187
      %v1189 = vmul.f32 %v1186, 1.442695
      %v1190 = vpow.pop %v1189
      %v1191 = vsel %vm1178, %v1188, 0.0
      %1192 = vadd.xlane.f32.xlu0 %v1191
      %v1193 = vpop.xlane.xlu0 %1192
      %v1194 = vsel %vm1178, %v1190, 0.0
      %1195 = vadd.xlane.f32.xlu0 %v1194
      %v1196 = vpop.xlane.xlu0 %1195
      %v1197 = vpack.c.bf16 %v1190, %v1188
      %v1198 = vpack.c.bf16 %v1122, %v1120
      %v1200 = vsel %vm1178, %v1197, 0
      %1202 = vmatprep.subr.bf16.mxu0 0
      %1203 = vmatpush1.bf16.msra.mxu0 %v1198
      %1204 = vmatprep.subr.bf16.mxu0 0
      %1205 = vmatpush1.bf16.msra.mxu0 0
      %1206 = vmatprep.subr.bf16.mxu0 0
      %1207 = vmatpush1.bf16.msra.mxu0 0
      %1208 = vmatprep.subr.bf16.mxu0 0
      %1209 = vmatpush1.bf16.msra.mxu0 0
      %1210 = vmatprep.subr.bf16.mxu0 0
      %1211 = vmatpush1.bf16.msra.mxu0 0
      %1212 = vmatprep.subr.bf16.mxu0 0
      %1213 = vmatpush1.bf16.msra.mxu0 0
      %1214 = vmatprep.subr.bf16.mxu0 0
      %1215 = vmatpush1.bf16.msra.mxu0 0
      %1216 = vmatprep.subr.bf16.mxu0 0
      %1217 = vmatpush1.bf16.msra.mxu0 0
      %1218 = vmatprep.subr.bf16.mxu0 0
      %1219 = vmatpush1.bf16.msra.mxu0 0
      %1220 = vmatprep.subr.bf16.mxu0 0
      %1221 = vmatpush1.bf16.msra.mxu0 0
      %1222 = vmatprep.subr.bf16.mxu0 0
      %1223 = vmatpush1.bf16.msra.mxu0 0
      %1224 = vmatprep.subr.bf16.mxu0 0
      %1225 = vmatpush1.bf16.msra.mxu0 0
      %1226 = vmatprep.subr.bf16.mxu0 0
      %1227 = vmatpush1.bf16.msra.mxu0 0
      %1228 = vmatprep.subr.bf16.mxu0 0
      %1229 = vmatpush1.bf16.msra.mxu0 0
      %1230 = vmatprep.subr.bf16.mxu0 0
      %1231 = vmatpush1.bf16.msra.mxu0 0
      %1232 = vmatprep.subr.bf16.mxu0 0
      %1233 = vmatpush1.bf16.msra.mxu0 0
      %1234 = vmatprep.mubr.bf16.mxu0 0
      %1235 = vmatmul.mubr.bf16.gmra.mrb[0].mxu0 %v1200
      %v1236 = vpop.f32.mrb[0].mxu0
      %v1237 = vadd.f32 0.0, %v1236
      %v1238 = vpop.f32.mrb[0].mxu0
      %v1239 = vpop.f32.mrb[0].mxu0
      %v1240 = vadd.f32 0.0, %v1239
      %v1241 = vpop.f32.mrb[0].mxu0
      %1242 = vdwg.mxu0
      %v1243 = vrcp.pop %v1193
      %v1244 = vrcp.pop %v1196
      %v1245 = vmul.f32 %v1237, %v1243
      %v1246 = vmul.f32 %v1240, %v1244
      %1248 = vrot.lane.b32.xlu0 %v1125, 96
      %v1249 = vpop.permute.xlu0 %1248
      %1250 = vrot.lane.b32.xlu0 %v1126, 32
      %v1251 = vpop.permute.xlu0 %1250
      %v1253 = vsel %vm1130, %v1249, 0
      %v1256 = vsel %vm1130, %v1251, 0
      %1258 = vmatprep.subr.bf16.mxu0 0
      %1259 = vmatpush1.bf16.xpose.msra.mxu0 %v1256
      %1260 = vmatprep.subr.bf16.mxu0 0
      %1261 = vmatpush1.bf16.xpose.msra.mxu0 0
      %1262 = vmatprep.subr.bf16.mxu0 0
      %1263 = vmatpush1.bf16.xpose.msra.mxu0 0
      %1264 = vmatprep.subr.bf16.mxu0 0
      %1265 = vmatpush1.bf16.xpose.msra.mxu0 0
      %1266 = vmatprep.subr.bf16.mxu0 0
      %1267 = vmatpush1.bf16.xpose.msra.mxu0 0
      %1268 = vmatprep.subr.bf16.mxu0 0
      %1269 = vmatpush1.bf16.xpose.msra.mxu0 0
      %1270 = vmatprep.subr.bf16.mxu0 0
      %1271 = vmatpush1.bf16.xpose.msra.mxu0 0
      %1272 = vmatprep.subr.bf16.mxu0 0
      %1273 = vmatpush1.bf16.xpose.msra.mxu0 0
      %1274 = vmatprep.subr.bf16.mxu0 0
      %1275 = vmatpush1.bf16.xpose.msra.mxu0 0
      %1276 = vmatprep.subr.bf16.mxu0 0
      %1277 = vmatpush1.bf16.xpose.msra.mxu0 0
      %1278 = vmatprep.subr.bf16.mxu0 0
      %1279 = vmatpush1.bf16.xpose.msra.mxu0 0
      %1280 = vmatprep.subr.bf16.mxu0 0
      %1281 = vmatpush1.bf16.xpose.msra.mxu0 0
      %1282 = vmatprep.subr.bf16.mxu0 0
      %1283 = vmatpush1.bf16.xpose.msra.mxu0 0
      %1284 = vmatprep.subr.bf16.mxu0 0
      %1285 = vmatpush1.bf16.xpose.msra.mxu0 0
      %1286 = vmatprep.subr.bf16.mxu0 0
      %1287 = vmatpush1.bf16.xpose.msra.mxu0 0
      %1288 = vmatprep.subr.bf16.mxu0 0
      %1289 = vmatpush1.bf16.xpose.msra.mxu0 0
      %1290 = vmatprep.mubr.bf16.mxu0 0
      %1291 = vmatmul.mubr.bf16.gmra.mrb[0].mxu0 %v1253
      %v1292 = vpop.f32.mrb[0].mxu0
      %v1293 = vadd.f32 %v824, %v1292
      %v1294 = vpop.f32.mrb[0].mxu0
      %v1295 = vpop.f32.mrb[0].mxu0
      %v1296 = vadd.f32 %v825, %v1295
      %v1297 = vpop.f32.mrb[0].mxu0
      %1298 = vdwg.mxu0
      %v1299 = vsel %vm1178, %v1293, -inf
      %1300 = vmax.xlane.f32.xlu0 %v1299
      %v1301 = vpop.xlane.xlu0 %1300
      %v1302 = vsel %vm1178, %v1296, -inf
      %1303 = vmax.xlane.f32.xlu0 %v1302
      %v1304 = vpop.xlane.xlu0 %1303
      %v1305 = vsub.f32 %v1293, %v1301
      %v1306 = vsub.f32 %v1296, %v1304
      %v1307 = vmul.f32 %v1305, 1.442695
      %v1308 = vpow.pop %v1307
      %v1309 = vmul.f32 %v1306, 1.442695
      %v1310 = vpow.pop %v1309
      %v1311 = vsel %vm1178, %v1308, 0.0
      %1312 = vadd.xlane.f32.xlu0 %v1311
      %v1313 = vpop.xlane.xlu0 %1312
      %v1314 = vsel %vm1178, %v1310, 0.0
      %1315 = vadd.xlane.f32.xlu0 %v1314
      %v1316 = vpop.xlane.xlu0 %1315
      %v1317 = vpack.c.bf16 %v1310, %v1308
      %1319 = vrot.lane.b32.xlu0 %v1198, 96
      %v1320 = vpop.permute.xlu0 %1319
      %v1323 = vsel %vm1178, %v1317, 0
      %1325 = vmatprep.subr.bf16.mxu0 0
      %1326 = vmatpush1.bf16.msra.mxu0 %v1320
      %1327 = vmatprep.subr.bf16.mxu0 0
      %1328 = vmatpush1.bf16.msra.mxu0 0
      %1329 = vmatprep.subr.bf16.mxu0 0
      %1330 = vmatpush1.bf16.msra.mxu0 0
      %1331 = vmatprep.subr.bf16.mxu0 0
      %1332 = vmatpush1.bf16.msra.mxu0 0
      %1333 = vmatprep.subr.bf16.mxu0 0
      %1334 = vmatpush1.bf16.msra.mxu0 0
      %1335 = vmatprep.subr.bf16.mxu0 0
      %1336 = vmatpush1.bf16.msra.mxu0 0
      %1337 = vmatprep.subr.bf16.mxu0 0
      %1338 = vmatpush1.bf16.msra.mxu0 0
      %1339 = vmatprep.subr.bf16.mxu0 0
      %1340 = vmatpush1.bf16.msra.mxu0 0
      %1341 = vmatprep.subr.bf16.mxu0 0
      %1342 = vmatpush1.bf16.msra.mxu0 0
      %1343 = vmatprep.subr.bf16.mxu0 0
      %1344 = vmatpush1.bf16.msra.mxu0 0
      %1345 = vmatprep.subr.bf16.mxu0 0
      %1346 = vmatpush1.bf16.msra.mxu0 0
      %1347 = vmatprep.subr.bf16.mxu0 0
      %1348 = vmatpush1.bf16.msra.mxu0 0
      %1349 = vmatprep.subr.bf16.mxu0 0
      %1350 = vmatpush1.bf16.msra.mxu0 0
      %1351 = vmatprep.subr.bf16.mxu0 0
      %1352 = vmatpush1.bf16.msra.mxu0 0
      %1353 = vmatprep.subr.bf16.mxu0 0
      %1354 = vmatpush1.bf16.msra.mxu0 0
      %1355 = vmatprep.subr.bf16.mxu0 0
      %1356 = vmatpush1.bf16.msra.mxu0 0
      %1357 = vmatprep.mubr.bf16.mxu0 0
      %1358 = vmatmul.mubr.bf16.gmra.mrb[0].mxu0 %v1323
      %v1359 = vpop.f32.mrb[0].mxu0
      %v1360 = vadd.f32 0.0, %v1359
      %v1361 = vpop.f32.mrb[0].mxu0
      %v1362 = vpop.f32.mrb[0].mxu0
      %v1363 = vadd.f32 0.0, %v1362
      %v1364 = vpop.f32.mrb[0].mxu0
      %1365 = vdwg.mxu0
      %v1366 = vrcp.pop %v1313
      %v1367 = vrcp.pop %v1316
      %v1368 = vmul.f32 %v1360, %v1366
      %v1369 = vmul.f32 %v1363, %v1367
      %1372 = vrot.lane.b32.xlu0 %v1368, 32
      %v1373 = vpop.permute.xlu0 %1372
      %1374 = vrot.lane.b32.xlu0 %v1369, 32
      %v1375 = vpop.permute.xlu0 %1374
      %v1378 = vsel %vm1130, %v1245, %v1373
      %v1379 = vsel %vm1130, %v1246, %v1375
      %v1380 = vpack.c.bf16 %v1379, %v1378
      %v1381 = vpack.c.bf16 %v638, %v637
      %v1382 = vpack.c.bf16 %v640, %v639
      %v1383 = vpack.c.bf16 %v642, %v641
      %v1384 = vpack.c.bf16 %v644, %v643
      %v1386 = vsel %vm972, %v1380, 0
      %1388 = vmatprep.subr.bf16.mxu0 0
      %1389 = vmatpush1.bf16.msra.mxu0 %v1381
      %1390 = vmatprep.subr.bf16.mxu0 0
      %1391 = vmatpush1.bf16.msra.mxu0 %v1382
      %1392 = vmatprep.subr.bf16.mxu0 0
      %1393 = vmatpush1.bf16.msra.mxu0 %v1383
      %1394 = vmatprep.subr.bf16.mxu0 0
      %1395 = vmatpush1.bf16.msra.mxu0 %v1384
      %1396 = vmatprep.subr.bf16.mxu0 0
      %1397 = vmatpush1.bf16.msra.mxu0 0
      %1398 = vmatprep.subr.bf16.mxu0 0
      %1399 = vmatpush1.bf16.msra.mxu0 0
      %1400 = vmatprep.subr.bf16.mxu0 0
      %1401 = vmatpush1.bf16.msra.mxu0 0
      %1402 = vmatprep.subr.bf16.mxu0 0
      %1403 = vmatpush1.bf16.msra.mxu0 0
      %1404 = vmatprep.subr.bf16.mxu0 0
      %1405 = vmatpush1.bf16.msra.mxu0 0
      %1406 = vmatprep.subr.bf16.mxu0 0
      %1407 = vmatpush1.bf16.msra.mxu0 0
      %1408 = vmatprep.subr.bf16.mxu0 0
      %1409 = vmatpush1.bf16.msra.mxu0 0
      %1410 = vmatprep.subr.bf16.mxu0 0
      %1411 = vmatpush1.bf16.msra.mxu0 0
      %1412 = vmatprep.subr.bf16.mxu0 0
      %1413 = vmatpush1.bf16.msra.mxu0 0
      %1414 = vmatprep.subr.bf16.mxu0 0
      %1415 = vmatpush1.bf16.msra.mxu0 0
      %1416 = vmatprep.subr.bf16.mxu0 0
      %1417 = vmatpush1.bf16.msra.mxu0 0
      %1418 = vmatprep.subr.bf16.mxu0 0
      %1419 = vmatpush1.bf16.msra.mxu0 0
      %1420 = vmatprep.mubr.bf16.mxu0 0
      %1421 = vmatmul.mubr.bf16.gmra.mrb[0].mxu0 %v1386
      %v1422 = vpop.f32.mrb[0].mxu0
      %v1423 = vadd.f32 0.0, %v1422
      %v1424 = vpop.f32.mrb[0].mxu0
      %v1425 = vpop.f32.mrb[0].mxu0
      %v1426 = vadd.f32 0.0, %v1425
      %v1427 = vpop.f32.mrb[0].mxu0
      %1428 = vdwg.mxu0
      %v1429 = vlaneseq
      %v1430 = vshrl.u32 %v1429, 7
      %v1431 = vsub.s32 0, %v1430
      %v1432 = vrot.slane %v799, %v1431
      %v1433 = vadd.f32 %v1423, %v1432
      %v1434 = vadd.f32 %v1426, %v1432
      %v1435 = vadd.f32 %v1051, %v1433
      %v1436 = vadd.f32 %v1052, %v1434
      %v1437 = vsel %vm972, %v1435, 0.0
      %1438 = vadd.xlane.f32.xlu0 %v1437
      %v1439 = vpop.xlane.xlu0 %1438
      %v1440 = vsel %vm972, %v1436, 0.0
      %1441 = vadd.xlane.f32.xlu0 %v1440
      %v1442 = vpop.xlane.xlu0 %1441
      %v1443 = vrcp.pop 64.0
      %v1444 = vmul.f32 %v1439, %v1443
      %v1445 = vmul.f32 %v1442, %v1443
      %v1446 = vsub.f32 %v1435, %v1444
      %v1447 = vsub.f32 %v1436, %v1445
      %v1448 = vmul.f32 %v1446, %v1446
      %v1449 = vmul.f32 %v1447, %v1447
      %v1450 = vsel %vm972, %v1448, 0.0
      %1451 = vadd.xlane.f32.xlu0 %v1450
      %v1452 = vpop.xlane.xlu0 %1451
      %v1453 = vsel %vm972, %v1449, 0.0
      %1454 = vadd.xlane.f32.xlu0 %v1453
      %v1455 = vpop.xlane.xlu0 %1454
      %v1456 = vmul.f32 %v1452, %v1443
      %v1457 = vmul.f32 %v1455, %v1443
      %v1458 = vadd.f32 %v1456, 1e-05
      %v1459 = vadd.f32 %v1457, 1e-05
      %v1460 = vrsqrt.pop %v1458
      %v1461 = vrsqrt.pop %v1459
      %v1462 = vmul.f32 %v1446, %v1460
      %v1463 = vmul.f32 %v1447, %v1461
      %v1464 = vlaneseq
      %v1465 = vshrl.u32 %v1464, 7
      %v1466 = vsub.s32 1, %v1465
      %v1467 = vrot.slane %v799, %v1466
      %v1468 = vmul.f32 %v1462, %v1467
      %v1469 = vmul.f32 %v1463, %v1467
      %v1470 = vlaneseq
      %v1471 = vshrl.u32 %v1470, 7
      %v1472 = vsub.s32 2, %v1471
      %v1473 = vrot.slane %v799, %v1472
      %v1474 = vadd.f32 %v1468, %v1473
      %v1475 = vadd.f32 %v1469, %v1473
      %v1476 = vmul.f32 %v1474, %v1042
      %v1477 = vmul.f32 %v1475, %v1047
      %vm1480 = vcmask 1041408
      %v1481 = vrot.slane %v1476, 6
      %v1482 = vrot.slane %v1477, 6
      %v1483 = vsel %vm1480, %v1481, %v1482
      %v1486 = vsel %vm1480, 0.0, %v1481
      %v1487 = vrot.slane %v1476, 7
      %v1488 = vrot.slane %v1477, 7
      %v1489 = vsel %vm884, %v1487, %v1488
      %v1491 = vsel %vm884, 0.0, %v1487
      %1493 = vrot.lane.b32.xlu0 %v1491, 64
      %v1494 = vpop.permute.xlu0 %1493
      %1495 = vrot.lane.b32.xlu0 %v1489, 64
      %v1496 = vpop.permute.xlu0 %1495
      %v1499 = vsel %vm972, %v1486, %v1494
      %v1500 = vsel %vm972, %v1483, %v1496
      %v1501 = vpack.c.bf16 %v1500, %v1499
      %v1502 = vpack.c.bf16 %v1477, %v1476
      %v1503 = vpack.c.bf16 %v654, %v653
      %v1504 = vpack.c.bf16 %v656, %v655
      %v1505 = vpack.c.bf16 %v658, %v657
      %v1506 = vpack.c.bf16 %v660, %v659
      %v1507 = vpack.c.bf16 %v662, %v661
      %v1508 = vpack.c.bf16 %v664, %v663
      %v1509 = vpack.c.bf16 %v666, %v665
      %v1510 = vpack.c.bf16 %v668, %v667
      %v1511 = vpack.c.bf16 %v670, %v669
      %v1512 = vpack.c.bf16 %v672, %v671
      %v1513 = vpack.c.bf16 %v674, %v673
      %v1514 = vpack.c.bf16 %v676, %v675
      %v1516 = vsel %vm972, %v1502, 0
      %1518 = vmatprep.subr.bf16.mxu0 0
      %1519 = vmatpush1.bf16.msra.mxu0 %v1503
      %1520 = vmatprep.subr.bf16.mxu0 0
      %1521 = vmatpush1.bf16.msra.mxu0 %v1504
      %1522 = vmatprep.subr.bf16.mxu0 0
      %1523 = vmatpush1.bf16.msra.mxu0 %v1505
      %1524 = vmatprep.subr.bf16.mxu0 0
      %1525 = vmatpush1.bf16.msra.mxu0 %v1506
      %1526 = vmatprep.subr.bf16.mxu0 0
      %1527 = vmatpush1.bf16.msra.mxu0 %v1507
      %1528 = vmatprep.subr.bf16.mxu0 0
      %1529 = vmatpush1.bf16.msra.mxu0 %v1508
      %1530 = vmatprep.subr.bf16.mxu0 0
      %1531 = vmatpush1.bf16.msra.mxu0 %v1509
      %1532 = vmatprep.subr.bf16.mxu0 0
      %1533 = vmatpush1.bf16.msra.mxu0 %v1510
      %1534 = vmatprep.subr.bf16.mxu0 0
      %1535 = vmatpush1.bf16.msra.mxu0 %v1511
      %1536 = vmatprep.subr.bf16.mxu0 0
      %1537 = vmatpush1.bf16.msra.mxu0 %v1512
      %1538 = vmatprep.subr.bf16.mxu0 0
      %1539 = vmatpush1.bf16.msra.mxu0 %v1513
      %1540 = vmatprep.subr.bf16.mxu0 0
      %1541 = vmatpush1.bf16.msra.mxu0 %v1514
      %1542 = vmatprep.subr.bf16.mxu0 0
      %1543 = vmatpush1.bf16.msra.mxu0 0
      %1544 = vmatprep.subr.bf16.mxu0 0
      %1545 = vmatpush1.bf16.msra.mxu0 0
      %1546 = vmatprep.subr.bf16.mxu0 0
      %1547 = vmatpush1.bf16.msra.mxu0 0
      %1548 = vmatprep.subr.bf16.mxu0 0
      %1549 = vmatpush1.bf16.msra.mxu0 0
      %1550 = vmatprep.mubr.bf16.mxu0 %v1516
      %1551 = vmatmul.mubr.bf16.gmra.mrb[0].mxu0 %v1501
      %v1552 = vpop.f32.mrb[0].mxu0
      %v1553 = vadd.f32 0.0, %v1552
      %v1554 = vpop.f32.mrb[0].mxu0
      %v1555 = vpop.f32.mrb[0].mxu0
      %v1556 = vadd.f32 0.0, %v1555
      %v1557 = vpop.f32.mrb[0].mxu0
      %1558 = vdwg.mxu0
      %v1560 = vlaneseq
      %v1561 = vshrl.u32 %v1560, 7
      %v1562 = vsub.s32 0, %v1561
      %v1563 = vrot.slane %v701, %v1562
      %v1565 = vadd.f32 %v1553, %v1563
      %v1566 = vadd.f32 %v1556, %v1563
      %v1567 = vmax.f32 %v1565, 0.0
      %v1568 = vmax.f32 %v1566, 0.0
      %v1569 = vmul.f32 %v1567, %v1042
      %v1570 = vmul.f32 %v1568, %v1047
      %v1573 = vrot.slane %v1569, 6
      %v1574 = vrot.slane %v1570, 6
      %v1575 = vsel %vm1480, %v1573, %v1574
      %v1578 = vsel %vm1480, 0.0, %v1573
      %v1579 = vpack.c.bf16 %v1575, %v1578
      %v1580 = vpack.c.bf16 %v704, %v703
      %v1581 = vpack.c.bf16 %v706, %v705
      %v1582 = vpack.c.bf16 %v708, %v707
      %v1583 = vpack.c.bf16 %v710, %v709
      %v1584 = vpack.c.bf16 %v712, %v711
      %v1585 = vpack.c.bf16 %v714, %v713
      %v1586 = vpack.c.bf16 %v716, %v715
      %v1587 = vpack.c.bf16 %v718, %v717
      %v1588 = vrot.slane %v1569, 7
      %v1589 = vrot.slane %v1570, 7
      %v1590 = vsel %vm884, %v1588, %v1589
      %v1593 = vsel %vm884, 0.0, %v1588
      %v1594 = vpack.c.bf16 %v1590, %v1593
      %v1595 = vpack.c.bf16 %v720, %v719
      %v1596 = vpack.c.bf16 %v722, %v721
      %v1597 = vpack.c.bf16 %v724, %v723
      %v1598 = vpack.c.bf16 %v726, %v725
      %v1599 = vpack.c.bf16 %v728, %v727
      %v1600 = vpack.c.bf16 %v730, %v729
      %v1601 = vpack.c.bf16 %v732, %v731
      %v1602 = vpack.c.bf16 %v734, %v733
      %1603 = vmatprep.subr.bf16.mxu0 0
      %1604 = vmatpush1.bf16.msra.mxu0 %v1595
      %1605 = vmatprep.subr.bf16.mxu0 0
      %1606 = vmatpush1.bf16.msra.mxu0 %v1596
      %1607 = vmatprep.subr.bf16.mxu0 0
      %1608 = vmatpush1.bf16.msra.mxu0 %v1597
      %1609 = vmatprep.subr.bf16.mxu0 0
      %1610 = vmatpush1.bf16.msra.mxu0 %v1598
      %1611 = vmatprep.subr.bf16.mxu0 0
      %1612 = vmatpush1.bf16.msra.mxu0 %v1599
      %1613 = vmatprep.subr.bf16.mxu0 0
      %1614 = vmatpush1.bf16.msra.mxu0 %v1600
      %1615 = vmatprep.subr.bf16.mxu0 0
      %1616 = vmatpush1.bf16.msra.mxu0 %v1601
      %1617 = vmatprep.subr.bf16.mxu0 0
      %1618 = vmatpush1.bf16.msra.mxu0 %v1602
      %1619 = vmatprep.subr.bf16.mxu0 0
      %1620 = vmatpush1.bf16.msra.mxu0 0
      %1621 = vmatprep.subr.bf16.mxu0 0
      %1622 = vmatpush1.bf16.msra.mxu0 0
      %1623 = vmatprep.subr.bf16.mxu0 0
      %1624 = vmatpush1.bf16.msra.mxu0 0
      %1625 = vmatprep.subr.bf16.mxu0 0
      %1626 = vmatpush1.bf16.msra.mxu0 0
      %1627 = vmatprep.subr.bf16.mxu0 0
      %1628 = vmatpush1.bf16.msra.mxu0 0
      %1629 = vmatprep.subr.bf16.mxu0 0
      %1630 = vmatpush1.bf16.msra.mxu0 0
      %1631 = vmatprep.subr.bf16.mxu0 0
      %1632 = vmatpush1.bf16.msra.mxu0 0
      %1633 = vmatprep.subr.bf16.mxu0 0
      %1634 = vmatpush1.bf16.msra.mxu0 0
      %1635 = vmatprep.mubr.bf16.mxu0 0
      %1636 = vmatmul.mubr.bf16.gmra.mrb[0].mxu0 %v1594
      %v1637 = vpop.f32.mrb[0].mxu0
      %v1638 = vadd.f32 0.0, %v1637
      %v1639 = vpop.f32.mrb[0].mxu0
      %v1640 = vpop.f32.mrb[0].mxu0
      %v1641 = vadd.f32 0.0, %v1640
      %v1642 = vpop.f32.mrb[0].mxu0
      %1643 = vdwg.mxu0
      %1644 = vmatprep.subr.bf16.mxu0 0
      %1645 = vmatpush1.bf16.msra.mxu0 %v1580
      %1646 = vmatprep.subr.bf16.mxu0 0
      %1647 = vmatpush1.bf16.msra.mxu0 %v1581
      %1648 = vmatprep.subr.bf16.mxu0 0
      %1649 = vmatpush1.bf16.msra.mxu0 %v1582
      %1650 = vmatprep.subr.bf16.mxu0 0
      %1651 = vmatpush1.bf16.msra.mxu0 %v1583
      %1652 = vmatprep.subr.bf16.mxu0 0
      %1653 = vmatpush1.bf16.msra.mxu0 %v1584
      %1654 = vmatprep.subr.bf16.mxu0 0
      %1655 = vmatpush1.bf16.msra.mxu0 %v1585
      %1656 = vmatprep.subr.bf16.mxu0 0
      %1657 = vmatpush1.bf16.msra.mxu0 %v1586
      %1658 = vmatprep.subr.bf16.mxu0 0
      %1659 = vmatpush1.bf16.msra.mxu0 %v1587
      %1660 = vmatprep.subr.bf16.mxu0 0
      %1661 = vmatpush1.bf16.msra.mxu0 0
      %1662 = vmatprep.subr.bf16.mxu0 0
      %1663 = vmatpush1.bf16.msra.mxu0 0
      %1664 = vmatprep.subr.bf16.mxu0 0
      %1665 = vmatpush1.bf16.msra.mxu0 0
      %1666 = vmatprep.subr.bf16.mxu0 0
      %1667 = vmatpush1.bf16.msra.mxu0 0
      %1668 = vmatprep.subr.bf16.mxu0 0
      %1669 = vmatpush1.bf16.msra.mxu0 0
      %1670 = vmatprep.subr.bf16.mxu0 0
      %1671 = vmatpush1.bf16.msra.mxu0 0
      %1672 = vmatprep.subr.bf16.mxu0 0
      %1673 = vmatpush1.bf16.msra.mxu0 0
      %1674 = vmatprep.subr.bf16.mxu0 0
      %1675 = vmatpush1.bf16.msra.mxu0 0
      %1676 = vmatprep.mubr.bf16.mxu0 0
      %1677 = vmatmul.mubr.bf16.gmra.mrb[0].mxu0 %v1579
      %v1678 = vpop.f32.mrb[0].mxu0
      %v1679 = vadd.f32 %v1638, %v1678
      %v1680 = vpop.f32.mrb[0].mxu0
      %v1681 = vpop.f32.mrb[0].mxu0
      %v1682 = vadd.f32 %v1641, %v1681
      %v1683 = vpop.f32.mrb[0].mxu0
      %1684 = vdwg.mxu0
      %v1685 = vpack.c.bf16 %v1570, %v1569
      %v1686 = vpack.c.bf16 %v736, %v735
      %v1687 = vpack.c.bf16 %v738, %v737
      %v1688 = vpack.c.bf16 %v740, %v739
      %v1689 = vpack.c.bf16 %v742, %v741
      %v1690 = vpack.c.bf16 %v744, %v743
      %v1691 = vpack.c.bf16 %v746, %v745
      %v1692 = vpack.c.bf16 %v748, %v747
      %v1693 = vpack.c.bf16 %v750, %v749
      %1694 = vmatprep.subr.bf16.mxu0 0
      %1695 = vmatpush1.bf16.msra.mxu0 %v1686
      %1696 = vmatprep.subr.bf16.mxu0 0
      %1697 = vmatpush1.bf16.msra.mxu0 %v1687
      %1698 = vmatprep.subr.bf16.mxu0 0
      %1699 = vmatpush1.bf16.msra.mxu0 %v1688
      %1700 = vmatprep.subr.bf16.mxu0 0
      %1701 = vmatpush1.bf16.msra.mxu0 %v1689
      %1702 = vmatprep.subr.bf16.mxu0 0
      %1703 = vmatpush1.bf16.msra.mxu0 %v1690
      %1704 = vmatprep.subr.bf16.mxu0 0
      %1705 = vmatpush1.bf16.msra.mxu0 %v1691
      %1706 = vmatprep.subr.bf16.mxu0 0
      %1707 = vmatpush1.bf16.msra.mxu0 %v1692
      %1708 = vmatprep.subr.bf16.mxu0 0
      %1709 = vmatpush1.bf16.msra.mxu0 %v1693
      %1710 = vmatprep.subr.bf16.mxu0 0
      %1711 = vmatpush1.bf16.msra.mxu0 0
      %1712 = vmatprep.subr.bf16.mxu0 0
      %1713 = vmatpush1.bf16.msra.mxu0 0
      %1714 = vmatprep.subr.bf16.mxu0 0
      %1715 = vmatpush1.bf16.msra.mxu0 0
      %1716 = vmatprep.subr.bf16.mxu0 0
      %1717 = vmatpush1.bf16.msra.mxu0 0
      %1718 = vmatprep.subr.bf16.mxu0 0
      %1719 = vmatpush1.bf16.msra.mxu0 0
      %1720 = vmatprep.subr.bf16.mxu0 0
      %1721 = vmatpush1.bf16.msra.mxu0 0
      %1722 = vmatprep.subr.bf16.mxu0 0
      %1723 = vmatpush1.bf16.msra.mxu0 0
      %1724 = vmatprep.subr.bf16.mxu0 0
      %1725 = vmatpush1.bf16.msra.mxu0 0
      %1726 = vmatprep.mubr.bf16.mxu0 0
      %1727 = vmatmul.mubr.bf16.gmra.mrb[0].mxu0 %v1685
      %v1728 = vpop.f32.mrb[0].mxu0
      %v1729 = vadd.f32 0.0, %v1728
      %v1730 = vpop.f32.mrb[0].mxu0
      %v1731 = vpop.f32.mrb[0].mxu0
      %v1732 = vadd.f32 0.0, %v1731
      %v1733 = vpop.f32.mrb[0].mxu0
      %1734 = vdwg.mxu0
      %v1735 = vadd.f32 %v1679, %v1729
      %v1736 = vadd.f32 %v1682, %v1732
      %v1737 = vlaneseq
      %v1738 = vshrl.u32 %v1737, 7
      %v1739 = vsub.s32 3, %v1738
      %v1740 = vrot.slane %v799, %v1739
      %v1741 = vadd.f32 %v1735, %v1740
      %v1742 = vadd.f32 %v1736, %v1740
      %v1743 = vmul.f32 %v1741, %v1042
      %v1744 = vmul.f32 %v1742, %v1047
      %v1745 = vadd.f32 %v1474, %v1743
      %v1746 = vadd.f32 %v1475, %v1744
      %v1747 = vsel %vm972, %v1745, 0.0
      %1748 = vadd.xlane.f32.xlu0 %v1747
      %v1749 = vpop.xlane.xlu0 %1748
      %v1750 = vsel %vm972, %v1746, 0.0
      %1751 = vadd.xlane.f32.xlu0 %v1750
      %v1752 = vpop.xlane.xlu0 %1751
      %v1753 = vmul.f32 %v1749, %v1443
      %v1754 = vmul.f32 %v1752, %v1443
      %v1755 = vsub.f32 %v1745, %v1753
      %v1756 = vsub.f32 %v1746, %v1754
      %v1757 = vmul.f32 %v1755, %v1755
      %v1758 = vmul.f32 %v1756, %v1756
      %v1759 = vsel %vm972, %v1757, 0.0
      %1760 = vadd.xlane.f32.xlu0 %v1759
      %v1761 = vpop.xlane.xlu0 %1760
      %v1762 = vsel %vm972, %v1758, 0.0
      %1763 = vadd.xlane.f32.xlu0 %v1762
      %v1764 = vpop.xlane.xlu0 %1763
      %v1765 = vmul.f32 %v1761, %v1443
      %v1766 = vmul.f32 %v1764, %v1443
      %v1767 = vadd.f32 %v1765, 1e-05
      %v1768 = vadd.f32 %v1766, 1e-05
      %v1769 = vrsqrt.pop %v1767
      %v1770 = vrsqrt.pop %v1768
      %v1771 = vmul.f32 %v1755, %v1769
      %v1772 = vmul.f32 %v1756, %v1770
      %v1773 = vlaneseq
      %v1774 = vshrl.u32 %v1773, 7
      %v1775 = vsub.s32 4, %v1774
      %v1776 = vrot.slane %v799, %v1775
      %v1777 = vmul.f32 %v1771, %v1776
      %v1778 = vmul.f32 %v1772, %v1776
      %v1779 = vlaneseq
      %v1780 = vshrl.u32 %v1779, 7
      %v1781 = vsub.s32 5, %v1780
      %v1782 = vrot.slane %v799, %v1781
      %v1783 = vadd.f32 %v1777, %v1782
      %v1784 = vadd.f32 %v1778, %v1782
      %v1785 = vpack.c.bf16 %v1784, %v1783
      %v1786 = vpack.c.bf16 %v621, %v619
      %v1787 = vpack.c.bf16 %v622, %v620
      %v1788 = vpack.c.bf16 %v625, %v623
      %v1789 = vpack.c.bf16 %v626, %v624
      %v1790 = vpack.c.bf16 %v629, %v627
      %v1791 = vpack.c.bf16 %v630, %v628
      %v1792 = vpack.c.bf16 %v633, %v631
      %v1793 = vpack.c.bf16 %v634, %v632
      %v1795 = vsel %vm972, %v1785, 0
      %1797 = vmatprep.subr.bf16.mxu0 %v1787
      %1798 = vmatpush1.bf16.msra.mxu0 %v1786
      %1799 = vmatprep.subr.bf16.mxu0 %v1789
      %1800 = vmatpush1.bf16.msra.mxu0 %v1788
      %1801 = vmatprep.subr.bf16.mxu0 %v1791
      %1802 = vmatpush1.bf16.msra.mxu0 %v1790
      %1803 = vmatprep.subr.bf16.mxu0 %v1793
      %1804 = vmatpush1.bf16.msra.mxu0 %v1792
      %1805 = vmatprep.subr.bf16.mxu0 0
      %1806 = vmatpush1.bf16.msra.mxu0 0
      %1807 = vmatprep.subr.bf16.mxu0 0
      %1808 = vmatpush1.bf16.msra.mxu0 0
      %1809 = vmatprep.subr.bf16.mxu0 0
      %1810 = vmatpush1.bf16.msra.mxu0 0
      %1811 = vmatprep.subr.bf16.mxu0 0
      %1812 = vmatpush1.bf16.msra.mxu0 0
      %1813 = vmatprep.subr.bf16.mxu0 0
      %1814 = vmatpush1.bf16.msra.mxu0 0
      %1815 = vmatprep.subr.bf16.mxu0 0
      %1816 = vmatpush1.bf16.msra.mxu0 0
      %1817 = vmatprep.subr.bf16.mxu0 0
      %1818 = vmatpush1.bf16.msra.mxu0 0
      %1819 = vmatprep.subr.bf16.mxu0 0
      %1820 = vmatpush1.bf16.msra.mxu0 0
      %1821 = vmatprep.subr.bf16.mxu0 0
      %1822 = vmatpush1.bf16.msra.mxu0 0
      %1823 = vmatprep.subr.bf16.mxu0 0
      %1824 = vmatpush1.bf16.msra.mxu0 0
      %1825 = vmatprep.subr.bf16.mxu0 0
      %1826 = vmatpush1.bf16.msra.mxu0 0
      %1827 = vmatprep.subr.bf16.mxu0 0
      %1828 = vmatpush1.bf16.msra.mxu0 0
      %1829 = vmatprep.mubr.bf16.mxu0 0
      %1830 = vmatmul.mubr.bf16.gmra.mrb[0].mxu0 %v1795
      %v1831 = vpop.f32.mrb[0].mxu0
      %v1832 = vadd.f32 0.0, %v1831
      %v1833 = vpop.f32.mrb[0].mxu0
      %v1834 = vadd.f32 0.0, %v1833
      %v1835 = vpop.f32.mrb[0].mxu0
      %v1836 = vadd.f32 0.0, %v1835
      %v1837 = vpop.f32.mrb[0].mxu0
      %v1838 = vadd.f32 0.0, %v1837
      %1839 = vdwg.mxu0
      %v1841 = vlaneseq
      %v1842 = vshrl.u32 %v1841, 7
      %v1843 = vsub.s32 0, %v1842
      %v1844 = vrot.slane %v636, %v1843
      %v1845 = vlaneseq
      %v1846 = vshrl.u32 %v1845, 7
      %v1847 = vsub.s32 1, %v1846
      %v1848 = vrot.slane %v636, %v1847
      %v1851 = vadd.f32 %v1832, %v1844
      %v1852 = vadd.f32 %v1834, %v1848
      %v1853 = vadd.f32 %v1836, %v1844
      %v1854 = vadd.f32 %v1838, %v1848
      %v1855 = vmul.f32 %v1851, 0.17677669
      %v1856 = vmul.f32 %v1853, 0.17677669
      %v1857 = vpack.c.bf16 %v1856, %v1855
      %v1858 = vpack.c.bf16 %v1853, %v1851
      %1860 = vrot.lane.b32.xlu0 %v1858, 64
      %v1861 = vpop.permute.xlu0 %1860
      %v1863 = vsel %vm1130, %v1857, 0
      %v1866 = vsel %vm1130, %v1861, 0
      %1868 = vmatprep.subr.bf16.mxu0 0
      %1869 = vmatpush1.bf16.xpose.msra.mxu0 %v1866
      %1870 = vmatprep.subr.bf16.mxu0 0
      %1871 = vmatpush1.bf16.xpose.msra.mxu0 0
      %1872 = vmatprep.subr.bf16.mxu0 0
      %1873 = vmatpush1.bf16.xpose.msra.mxu0 0
      %1874 = vmatprep.subr.bf16.mxu0 0
      %1875 = vmatpush1.bf16.xpose.msra.mxu0 0
      %1876 = vmatprep.subr.bf16.mxu0 0
      %1877 = vmatpush1.bf16.xpose.msra.mxu0 0
      %1878 = vmatprep.subr.bf16.mxu0 0
      %1879 = vmatpush1.bf16.xpose.msra.mxu0 0
      %1880 = vmatprep.subr.bf16.mxu0 0
      %1881 = vmatpush1.bf16.xpose.msra.mxu0 0
      %1882 = vmatprep.subr.bf16.mxu0 0
      %1883 = vmatpush1.bf16.xpose.msra.mxu0 0
      %1884 = vmatprep.subr.bf16.mxu0 0
      %1885 = vmatpush1.bf16.xpose.msra.mxu0 0
      %1886 = vmatprep.subr.bf16.mxu0 0
      %1887 = vmatpush1.bf16.xpose.msra.mxu0 0
      %1888 = vmatprep.subr.bf16.mxu0 0
      %1889 = vmatpush1.bf16.xpose.msra.mxu0 0
      %1890 = vmatprep.subr.bf16.mxu0 0
      %1891 = vmatpush1.bf16.xpose.msra.mxu0 0
      %1892 = vmatprep.subr.bf16.mxu0 0
      %1893 = vmatpush1.bf16.xpose.msra.mxu0 0
      %1894 = vmatprep.subr.bf16.mxu0 0
      %1895 = vmatpush1.bf16.xpose.msra.mxu0 0
      %1896 = vmatprep.subr.bf16.mxu0 0
      %1897 = vmatpush1.bf16.xpose.msra.mxu0 0
      %1898 = vmatprep.subr.bf16.mxu0 0
      %1899 = vmatpush1.bf16.xpose.msra.mxu0 0
      %1900 = vmatprep.mubr.bf16.mxu0 0
      %1901 = vmatmul.mubr.bf16.gmra.mrb[0].mxu0 %v1863
      %v1902 = vpop.f32.mrb[0].mxu0
      %v1903 = vadd.f32 %v824, %v1902
      %v1904 = vpop.f32.mrb[0].mxu0
      %v1905 = vpop.f32.mrb[0].mxu0
      %v1906 = vadd.f32 %v825, %v1905
      %v1907 = vpop.f32.mrb[0].mxu0
      %1908 = vdwg.mxu0
      %v1909 = vsel %vm1178, %v1903, -inf
      %1910 = vmax.xlane.f32.xlu0 %v1909
      %v1911 = vpop.xlane.xlu0 %1910
      %v1912 = vsel %vm1178, %v1906, -inf
      %1913 = vmax.xlane.f32.xlu0 %v1912
      %v1914 = vpop.xlane.xlu0 %1913
      %v1915 = vsub.f32 %v1903, %v1911
      %v1916 = vsub.f32 %v1906, %v1914
      %v1917 = vmul.f32 %v1915, 1.442695
      %v1918 = vpow.pop %v1917
      %v1919 = vmul.f32 %v1916, 1.442695
      %v1920 = vpow.pop %v1919
      %v1921 = vsel %vm1178, %v1918, 0.0
      %1922 = vadd.xlane.f32.xlu0 %v1921
      %v1923 = vpop.xlane.xlu0 %1922
      %v1924 = vsel %vm1178, %v1920, 0.0
      %1925 = vadd.xlane.f32.xlu0 %v1924
      %v1926 = vpop.xlane.xlu0 %1925
      %v1927 = vpack.c.bf16 %v1920, %v1918
      %v1928 = vpack.c.bf16 %v1854, %v1852
      %v1930 = vsel %vm1178, %v1927, 0
      %1932 = vmatprep.subr.bf16.mxu0 0
      %1933 = vmatpush1.bf16.msra.mxu0 %v1928
      %1934 = vmatprep.subr.bf16.mxu0 0
      %1935 = vmatpush1.bf16.msra.mxu0 0
      %1936 = vmatprep.subr.bf16.mxu0 0
      %1937 = vmatpush1.bf16.msra.mxu0 0
      %1938 = vmatprep.subr.bf16.mxu0 0
      %1939 = vmatpush1.bf16.msra.mxu0 0
      %1940 = vmatprep.subr.bf16.mxu0 0
      %1941 = vmatpush1.bf16.msra.mxu0 0
      %1942 = vmatprep.subr.bf16.mxu0 0
      %1943 = vmatpush1.bf16.msra.mxu0 0
      %1944 = vmatprep.subr.bf16.mxu0 0
      %1945 = vmatpush1.bf16.msra.mxu0 0
      %1946 = vmatprep.subr.bf16.mxu0 0
      %1947 = vmatpush1.bf16.msra.mxu0 0
      %1948 = vmatprep.subr.bf16.mxu0 0
      %1949 = vmatpush1.bf16.msra.mxu0 0
      %1950 = vmatprep.subr.bf16.mxu0 0
      %1951 = vmatpush1.bf16.msra.mxu0 0
      %1952 = vmatprep.subr.bf16.mxu0 0
      %1953 = vmatpush1.bf16.msra.mxu0 0
      %1954 = vmatprep.subr.bf16.mxu0 0
      %1955 = vmatpush1.bf16.msra.mxu0 0
      %1956 = vmatprep.subr.bf16.mxu0 0
      %1957 = vmatpush1.bf16.msra.mxu0 0
      %1958 = vmatprep.subr.bf16.mxu0 0
      %1959 = vmatpush1.bf16.msra.mxu0 0
      %1960 = vmatprep.subr.bf16.mxu0 0
      %1961 = vmatpush1.bf16.msra.mxu0 0
      %1962 = vmatprep.subr.bf16.mxu0 0
      %1963 = vmatpush1.bf16.msra.mxu0 0
      %1964 = vmatprep.mubr.bf16.mxu0 0
      %1965 = vmatmul.mubr.bf16.gmra.mrb[0].mxu0 %v1930
      %v1966 = vpop.f32.mrb[0].mxu0
      %v1967 = vadd.f32 0.0, %v1966
      %v1968 = vpop.f32.mrb[0].mxu0
      %v1969 = vpop.f32.mrb[0].mxu0
      %v1970 = vadd.f32 0.0, %v1969
      %v1971 = vpop.f32.mrb[0].mxu0
      %1972 = vdwg.mxu0
      %v1973 = vrcp.pop %v1923
      %v1974 = vrcp.pop %v1926
      %v1975 = vmul.f32 %v1967, %v1973
      %v1976 = vmul.f32 %v1970, %v1974
      %1978 = vrot.lane.b32.xlu0 %v1857, 96
      %v1979 = vpop.permute.xlu0 %1978
      %1980 = vrot.lane.b32.xlu0 %v1858, 32
      %v1981 = vpop.permute.xlu0 %1980
      %v1983 = vsel %vm1130, %v1979, 0
      %v1986 = vsel %vm1130, %v1981, 0
      %1988 = vmatprep.subr.bf16.mxu0 0
      %1989 = vmatpush1.bf16.xpose.msra.mxu0 %v1986
      %1990 = vmatprep.subr.bf16.mxu0 0
      %1991 = vmatpush1.bf16.xpose.msra.mxu0 0
      %1992 = vmatprep.subr.bf16.mxu0 0
      %1993 = vmatpush1.bf16.xpose.msra.mxu0 0
      %1994 = vmatprep.subr.bf16.mxu0 0
      %1995 = vmatpush1.bf16.xpose.msra.mxu0 0
      %1996 = vmatprep.subr.bf16.mxu0 0
      %1997 = vmatpush1.bf16.xpose.msra.mxu0 0
      %1998 = vmatprep.subr.bf16.mxu0 0
      %1999 = vmatpush1.bf16.xpose.msra.mxu0 0
      %2000 = vmatprep.subr.bf16.mxu0 0
      %2001 = vmatpush1.bf16.xpose.msra.mxu0 0
      %2002 = vmatprep.subr.bf16.mxu0 0
      %2003 = vmatpush1.bf16.xpose.msra.mxu0 0
      %2004 = vmatprep.subr.bf16.mxu0 0
      %2005 = vmatpush1.bf16.xpose.msra.mxu0 0
      %2006 = vmatprep.subr.bf16.mxu0 0
      %2007 = vmatpush1.bf16.xpose.msra.mxu0 0
      %2008 = vmatprep.subr.bf16.mxu0 0
      %2009 = vmatpush1.bf16.xpose.msra.mxu0 0
      %2010 = vmatprep.subr.bf16.mxu0 0
      %2011 = vmatpush1.bf16.xpose.msra.mxu0 0
      %2012 = vmatprep.subr.bf16.mxu0 0
      %2013 = vmatpush1.bf16.xpose.msra.mxu0 0
      %2014 = vmatprep.subr.bf16.mxu0 0
      %2015 = vmatpush1.bf16.xpose.msra.mxu0 0
      %2016 = vmatprep.subr.bf16.mxu0 0
      %2017 = vmatpush1.bf16.xpose.msra.mxu0 0
      %2018 = vmatprep.subr.bf16.mxu0 0
      %2019 = vmatpush1.bf16.xpose.msra.mxu0 0
      %2020 = vmatprep.mubr.bf16.mxu0 0
      %2021 = vmatmul.mubr.bf16.gmra.mrb[0].mxu0 %v1983
      %v2022 = vpop.f32.mrb[0].mxu0
      %v2023 = vadd.f32 %v824, %v2022
      %v2024 = vpop.f32.mrb[0].mxu0
      %v2025 = vpop.f32.mrb[0].mxu0
      %v2026 = vadd.f32 %v825, %v2025
      %v2027 = vpop.f32.mrb[0].mxu0
      %2028 = vdwg.mxu0
      %v2029 = vsel %vm1178, %v2023, -inf
      %2030 = vmax.xlane.f32.xlu0 %v2029
      %v2031 = vpop.xlane.xlu0 %2030
      %v2032 = vsel %vm1178, %v2026, -inf
      %2033 = vmax.xlane.f32.xlu0 %v2032
      %v2034 = vpop.xlane.xlu0 %2033
      %v2035 = vsub.f32 %v2023, %v2031
      %v2036 = vsub.f32 %v2026, %v2034
      %v2037 = vmul.f32 %v2035, 1.442695
      %v2038 = vpow.pop %v2037
      %v2039 = vmul.f32 %v2036, 1.442695
      %v2040 = vpow.pop %v2039
      %v2041 = vsel %vm1178, %v2038, 0.0
      %2042 = vadd.xlane.f32.xlu0 %v2041
      %v2043 = vpop.xlane.xlu0 %2042
      %v2044 = vsel %vm1178, %v2040, 0.0
      %2045 = vadd.xlane.f32.xlu0 %v2044
      %v2046 = vpop.xlane.xlu0 %2045
      %v2047 = vpack.c.bf16 %v2040, %v2038
      %2049 = vrot.lane.b32.xlu0 %v1928, 96
      %v2050 = vpop.permute.xlu0 %2049
      %v2053 = vsel %vm1178, %v2047, 0
      %2055 = vmatprep.subr.bf16.mxu0 0
      %2056 = vmatpush1.bf16.msra.mxu0 %v2050
      %2057 = vmatprep.subr.bf16.mxu0 0
      %2058 = vmatpush1.bf16.msra.mxu0 0
      %2059 = vmatprep.subr.bf16.mxu0 0
      %2060 = vmatpush1.bf16.msra.mxu0 0
      %2061 = vmatprep.subr.bf16.mxu0 0
      %2062 = vmatpush1.bf16.msra.mxu0 0
      %2063 = vmatprep.subr.bf16.mxu0 0
      %2064 = vmatpush1.bf16.msra.mxu0 0
      %2065 = vmatprep.subr.bf16.mxu0 0
      %2066 = vmatpush1.bf16.msra.mxu0 0
      %2067 = vmatprep.subr.bf16.mxu0 0
      %2068 = vmatpush1.bf16.msra.mxu0 0
      %2069 = vmatprep.subr.bf16.mxu0 0
      %2070 = vmatpush1.bf16.msra.mxu0 0
      %2071 = vmatprep.subr.bf16.mxu0 0
      %2072 = vmatpush1.bf16.msra.mxu0 0
      %2073 = vmatprep.subr.bf16.mxu0 0
      %2074 = vmatpush1.bf16.msra.mxu0 0
      %2075 = vmatprep.subr.bf16.mxu0 0
      %2076 = vmatpush1.bf16.msra.mxu0 0
      %2077 = vmatprep.subr.bf16.mxu0 0
      %2078 = vmatpush1.bf16.msra.mxu0 0
      %2079 = vmatprep.subr.bf16.mxu0 0
      %2080 = vmatpush1.bf16.msra.mxu0 0
      %2081 = vmatprep.subr.bf16.mxu0 0
      %2082 = vmatpush1.bf16.msra.mxu0 0
      %2083 = vmatprep.subr.bf16.mxu0 0
      %2084 = vmatpush1.bf16.msra.mxu0 0
      %2085 = vmatprep.subr.bf16.mxu0 0
      %2086 = vmatpush1.bf16.msra.mxu0 0
      %2087 = vmatprep.mubr.bf16.mxu0 0
      %2088 = vmatmul.mubr.bf16.gmra.mrb[0].mxu0 %v2053
      %v2089 = vpop.f32.mrb[0].mxu0
      %v2090 = vadd.f32 0.0, %v2089
      %v2091 = vpop.f32.mrb[0].mxu0
      %v2092 = vpop.f32.mrb[0].mxu0
      %v2093 = vadd.f32 0.0, %v2092
      %v2094 = vpop.f32.mrb[0].mxu0
      %2095 = vdwg.mxu0
      %v2096 = vrcp.pop %v2043
      %v2097 = vrcp.pop %v2046
      %v2098 = vmul.f32 %v2090, %v2096
      %v2099 = vmul.f32 %v2093, %v2097
      %2102 = vrot.lane.b32.xlu0 %v2098, 32
      %v2103 = vpop.permute.xlu0 %2102
      %2104 = vrot.lane.b32.xlu0 %v2099, 32
      %v2105 = vpop.permute.xlu0 %2104
      %v2108 = vsel %vm1130, %v1975, %v2103
      %v2109 = vsel %vm1130, %v1976, %v2105
      %v2110 = vpack.c.bf16 %v2109, %v2108
      %v2111 = vpack.c.bf16 %v646, %v645
      %v2112 = vpack.c.bf16 %v648, %v647
      %v2113 = vpack.c.bf16 %v650, %v649
      %v2114 = vpack.c.bf16 %v652, %v651
      %v2116 = vsel %vm972, %v2110, 0
      %2118 = vmatprep.subr.bf16.mxu0 0
      %2119 = vmatpush1.bf16.msra.mxu0 %v2111
      %2120 = vmatprep.subr.bf16.mxu0 0
      %2121 = vmatpush1.bf16.msra.mxu0 %v2112
      %2122 = vmatprep.subr.bf16.mxu0 0
      %2123 = vmatpush1.bf16.msra.mxu0 %v2113
      %2124 = vmatprep.subr.bf16.mxu0 0
      %2125 = vmatpush1.bf16.msra.mxu0 %v2114
      %2126 = vmatprep.subr.bf16.mxu0 0
      %2127 = vmatpush1.bf16.msra.mxu0 0
      %2128 = vmatprep.subr.bf16.mxu0 0
      %2129 = vmatpush1.bf16.msra.mxu0 0
      %2130 = vmatprep.subr.bf16.mxu0 0
      %2131 = vmatpush1.bf16.msra.mxu0 0
      %2132 = vmatprep.subr.bf16.mxu0 0
      %2133 = vmatpush1.bf16.msra.mxu0 0
      %2134 = vmatprep.subr.bf16.mxu0 0
      %2135 = vmatpush1.bf16.msra.mxu0 0
      %2136 = vmatprep.subr.bf16.mxu0 0
      %2137 = vmatpush1.bf16.msra.mxu0 0
      %2138 = vmatprep.subr.bf16.mxu0 0
      %2139 = vmatpush1.bf16.msra.mxu0 0
      %2140 = vmatprep.subr.bf16.mxu0 0
      %2141 = vmatpush1.bf16.msra.mxu0 0
      %2142 = vmatprep.subr.bf16.mxu0 0
      %2143 = vmatpush1.bf16.msra.mxu0 0
      %2144 = vmatprep.subr.bf16.mxu0 0
      %2145 = vmatpush1.bf16.msra.mxu0 0
      %2146 = vmatprep.subr.bf16.mxu0 0
      %2147 = vmatpush1.bf16.msra.mxu0 0
      %2148 = vmatprep.subr.bf16.mxu0 0
      %2149 = vmatpush1.bf16.msra.mxu0 0
      %2150 = vmatprep.mubr.bf16.mxu0 0
      %2151 = vmatmul.mubr.bf16.gmra.mrb[0].mxu0 %v2116
      %v2152 = vpop.f32.mrb[0].mxu0
      %v2153 = vadd.f32 0.0, %v2152
      %v2154 = vpop.f32.mrb[0].mxu0
      %v2155 = vpop.f32.mrb[0].mxu0
      %v2156 = vadd.f32 0.0, %v2155
      %v2157 = vpop.f32.mrb[0].mxu0
      %2158 = vdwg.mxu0
      %v2159 = vlaneseq
      %v2160 = vshrl.u32 %v2159, 7
      %v2161 = vsub.s32 0, %v2160
      %v2162 = vrot.slane %v800, %v2161
      %v2163 = vadd.f32 %v2153, %v2162
      %v2164 = vadd.f32 %v2156, %v2162
      %v2165 = vadd.f32 %v1783, %v2163
      %v2166 = vadd.f32 %v1784, %v2164
      %v2167 = vsel %vm972, %v2165, 0.0
      %2168 = vadd.xlane.f32.xlu0 %v2167
      %v2169 = vpop.xlane.xlu0 %2168
      %v2170 = vsel %vm972, %v2166, 0.0
      %2171 = vadd.xlane.f32.xlu0 %v2170
      %v2172 = vpop.xlane.xlu0 %2171
      %v2173 = vmul.f32 %v2169, %v1443
      %v2174 = vmul.f32 %v2172, %v1443
      %v2175 = vsub.f32 %v2165, %v2173
      %v2176 = vsub.f32 %v2166, %v2174
      %v2177 = vmul.f32 %v2175, %v2175
      %v2178 = vmul.f32 %v2176, %v2176
      %v2179 = vsel %vm972, %v2177, 0.0
      %2180 = vadd.xlane.f32.xlu0 %v2179
      %v2181 = vpop.xlane.xlu0 %2180
      %v2182 = vsel %vm972, %v2178, 0.0
      %2183 = vadd.xlane.f32.xlu0 %v2182
      %v2184 = vpop.xlane.xlu0 %2183
      %v2185 = vmul.f32 %v2181, %v1443
      %v2186 = vmul.f32 %v2184, %v1443
      %v2187 = vadd.f32 %v2185, 1e-05
      %v2188 = vadd.f32 %v2186, 1e-05
      %v2189 = vrsqrt.pop %v2187
      %v2190 = vrsqrt.pop %v2188
      %v2191 = vmul.f32 %v2175, %v2189
      %v2192 = vmul.f32 %v2176, %v2190
      %v2193 = vlaneseq
      %v2194 = vshrl.u32 %v2193, 7
      %v2195 = vsub.s32 1, %v2194
      %v2196 = vrot.slane %v800, %v2195
      %v2197 = vmul.f32 %v2191, %v2196
      %v2198 = vmul.f32 %v2192, %v2196
      %v2199 = vlaneseq
      %v2200 = vshrl.u32 %v2199, 7
      %v2201 = vsub.s32 2, %v2200
      %v2202 = vrot.slane %v800, %v2201
      %v2203 = vadd.f32 %v2197, %v2202
      %v2204 = vadd.f32 %v2198, %v2202
      %v2205 = vmul.f32 %v2203, %v1042
      %v2206 = vmul.f32 %v2204, %v1047
      %v2209 = vrot.slane %v2205, 6
      %v2210 = vrot.slane %v2206, 6
      %v2211 = vsel %vm1480, %v2209, %v2210
      %v2214 = vsel %vm1480, 0.0, %v2209
      %v2215 = vrot.slane %v2205, 7
      %v2216 = vrot.slane %v2206, 7
      %v2217 = vsel %vm884, %v2215, %v2216
      %v2219 = vsel %vm884, 0.0, %v2215
      %2221 = vrot.lane.b32.xlu0 %v2219, 64
      %v2222 = vpop.permute.xlu0 %2221
      %2223 = vrot.lane.b32.xlu0 %v2217, 64
      %v2224 = vpop.permute.xlu0 %2223
      %v2227 = vsel %vm972, %v2214, %v2222
      %v2228 = vsel %vm972, %v2211, %v2224
      %v2229 = vpack.c.bf16 %v2228, %v2227
      %v2230 = vpack.c.bf16 %v2206, %v2205
      %v2231 = vpack.c.bf16 %v678, %v677
      %v2232 = vpack.c.bf16 %v680, %v679
      %v2233 = vpack.c.bf16 %v682, %v681
      %v2234 = vpack.c.bf16 %v684, %v683
      %v2235 = vpack.c.bf16 %v686, %v685
      %v2236 = vpack.c.bf16 %v688, %v687
      %v2237 = vpack.c.bf16 %v690, %v689
      %v2238 = vpack.c.bf16 %v692, %v691
      %v2239 = vpack.c.bf16 %v694, %v693
      %v2240 = vpack.c.bf16 %v696, %v695
      %v2241 = vpack.c.bf16 %v698, %v697
      %v2242 = vpack.c.bf16 %v700, %v699
      %v2244 = vsel %vm972, %v2230, 0
      %2246 = vmatprep.subr.bf16.mxu0 0
      %2247 = vmatpush1.bf16.msra.mxu0 %v2231
      %2248 = vmatprep.subr.bf16.mxu0 0
      %2249 = vmatpush1.bf16.msra.mxu0 %v2232
      %2250 = vmatprep.subr.bf16.mxu0 0
      %2251 = vmatpush1.bf16.msra.mxu0 %v2233
      %2252 = vmatprep.subr.bf16.mxu0 0
      %2253 = vmatpush1.bf16.msra.mxu0 %v2234
      %2254 = vmatprep.subr.bf16.mxu0 0
      %2255 = vmatpush1.bf16.msra.mxu0 %v2235
      %2256 = vmatprep.subr.bf16.mxu0 0
      %2257 = vmatpush1.bf16.msra.mxu0 %v2236
      %2258 = vmatprep.subr.bf16.mxu0 0
      %2259 = vmatpush1.bf16.msra.mxu0 %v2237
      %2260 = vmatprep.subr.bf16.mxu0 0
      %2261 = vmatpush1.bf16.msra.mxu0 %v2238
      %2262 = vmatprep.subr.bf16.mxu0 0
      %2263 = vmatpush1.bf16.msra.mxu0 %v2239
      %2264 = vmatprep.subr.bf16.mxu0 0
      %2265 = vmatpush1.bf16.msra.mxu0 %v2240
      %2266 = vmatprep.subr.bf16.mxu0 0
      %2267 = vmatpush1.bf16.msra.mxu0 %v2241
      %2268 = vmatprep.subr.bf16.mxu0 0
      %2269 = vmatpush1.bf16.msra.mxu0 %v2242
      %2270 = vmatprep.subr.bf16.mxu0 0
      %2271 = vmatpush1.bf16.msra.mxu0 0
      %2272 = vmatprep.subr.bf16.mxu0 0
      %2273 = vmatpush1.bf16.msra.mxu0 0
      %2274 = vmatprep.subr.bf16.mxu0 0
      %2275 = vmatpush1.bf16.msra.mxu0 0
      %2276 = vmatprep.subr.bf16.mxu0 0
      %2277 = vmatpush1.bf16.msra.mxu0 0
      %2278 = vmatprep.mubr.bf16.mxu0 %v2244
      %2279 = vmatmul.mubr.bf16.gmra.mrb[0].mxu0 %v2229
      %v2280 = vpop.f32.mrb[0].mxu0
      %v2281 = vadd.f32 0.0, %v2280
      %v2282 = vpop.f32.mrb[0].mxu0
      %v2283 = vpop.f32.mrb[0].mxu0
      %v2284 = vadd.f32 0.0, %v2283
      %v2285 = vpop.f32.mrb[0].mxu0
      %2286 = vdwg.mxu0
      %v2288 = vlaneseq
      %v2289 = vshrl.u32 %v2288, 7
      %v2290 = vsub.s32 0, %v2289
      %v2291 = vrot.slane %v702, %v2290
      %v2293 = vadd.f32 %v2281, %v2291
      %v2294 = vadd.f32 %v2284, %v2291
      %v2295 = vmax.f32 %v2293, 0.0
      %v2296 = vmax.f32 %v2294, 0.0
      %v2297 = vmul.f32 %v2295, %v1042
      %v2298 = vmul.f32 %v2296, %v1047
      %v2301 = vrot.slane %v2297, 6
      %v2302 = vrot.slane %v2298, 6
      %v2303 = vsel %vm1480, %v2301, %v2302
      %v2306 = vsel %vm1480, 0.0, %v2301
      %v2307 = vpack.c.bf16 %v2303, %v2306
      %v2308 = vpack.c.bf16 %v752, %v751
      %v2309 = vpack.c.bf16 %v754, %v753
      %v2310 = vpack.c.bf16 %v756, %v755
      %v2311 = vpack.c.bf16 %v758, %v757
      %v2312 = vpack.c.bf16 %v760, %v759
      %v2313 = vpack.c.bf16 %v762, %v761
      %v2314 = vpack.c.bf16 %v764, %v763
      %v2315 = vpack.c.bf16 %v766, %v765
      %v2316 = vrot.slane %v2297, 7
      %v2317 = vrot.slane %v2298, 7
      %v2318 = vsel %vm884, %v2316, %v2317
      %v2321 = vsel %vm884, 0.0, %v2316
      %v2322 = vpack.c.bf16 %v2318, %v2321
      %v2323 = vpack.c.bf16 %v768, %v767
      %v2324 = vpack.c.bf16 %v770, %v769
      %v2325 = vpack.c.bf16 %v772, %v771
      %v2326 = vpack.c.bf16 %v774, %v773
      %v2327 = vpack.c.bf16 %v776, %v775
      %v2328 = vpack.c.bf16 %v778, %v777
      %v2329 = vpack.c.bf16 %v780, %v779
      %v2330 = vpack.c.bf16 %v782, %v781
      %2331 = vmatprep.subr.bf16.mxu0 0
      %2332 = vmatpush1.bf16.msra.mxu0 %v2323
      %2333 = vmatprep.subr.bf16.mxu0 0
      %2334 = vmatpush1.bf16.msra.mxu0 %v2324
      %2335 = vmatprep.subr.bf16.mxu0 0
      %2336 = vmatpush1.bf16.msra.mxu0 %v2325
      %2337 = vmatprep.subr.bf16.mxu0 0
      %2338 = vmatpush1.bf16.msra.mxu0 %v2326
      %2339 = vmatprep.subr.bf16.mxu0 0
      %2340 = vmatpush1.bf16.msra.mxu0 %v2327
      %2341 = vmatprep.subr.bf16.mxu0 0
      %2342 = vmatpush1.bf16.msra.mxu0 %v2328
      %2343 = vmatprep.subr.bf16.mxu0 0
      %2344 = vmatpush1.bf16.msra.mxu0 %v2329
      %2345 = vmatprep.subr.bf16.mxu0 0
      %2346 = vmatpush1.bf16.msra.mxu0 %v2330
      %2347 = vmatprep.subr.bf16.mxu0 0
      %2348 = vmatpush1.bf16.msra.mxu0 0
      %2349 = vmatprep.subr.bf16.mxu0 0
      %2350 = vmatpush1.bf16.msra.mxu0 0
      %2351 = vmatprep.subr.bf16.mxu0 0
      %2352 = vmatpush1.bf16.msra.mxu0 0
      %2353 = vmatprep.subr.bf16.mxu0 0
      %2354 = vmatpush1.bf16.msra.mxu0 0
      %2355 = vmatprep.subr.bf16.mxu0 0
      %2356 = vmatpush1.bf16.msra.mxu0 0
      %2357 = vmatprep.subr.bf16.mxu0 0
      %2358 = vmatpush1.bf16.msra.mxu0 0
      %2359 = vmatprep.subr.bf16.mxu0 0
      %2360 = vmatpush1.bf16.msra.mxu0 0
      %2361 = vmatprep.subr.bf16.mxu0 0
      %2362 = vmatpush1.bf16.msra.mxu0 0
      %2363 = vmatprep.mubr.bf16.mxu0 0
      %2364 = vmatmul.mubr.bf16.gmra.mrb[0].mxu0 %v2322
      %v2365 = vpop.f32.mrb[0].mxu0
      %v2366 = vadd.f32 0.0, %v2365
      %v2367 = vpop.f32.mrb[0].mxu0
      %v2368 = vpop.f32.mrb[0].mxu0
      %v2369 = vadd.f32 0.0, %v2368
      %v2370 = vpop.f32.mrb[0].mxu0
      %2371 = vdwg.mxu0
      %2372 = vmatprep.subr.bf16.mxu0 0
      %2373 = vmatpush1.bf16.msra.mxu0 %v2308
      %2374 = vmatprep.subr.bf16.mxu0 0
      %2375 = vmatpush1.bf16.msra.mxu0 %v2309
      %2376 = vmatprep.subr.bf16.mxu0 0
      %2377 = vmatpush1.bf16.msra.mxu0 %v2310
      %2378 = vmatprep.subr.bf16.mxu0 0
      %2379 = vmatpush1.bf16.msra.mxu0 %v2311
      %2380 = vmatprep.subr.bf16.mxu0 0
      %2381 = vmatpush1.bf16.msra.mxu0 %v2312
      %2382 = vmatprep.subr.bf16.mxu0 0
      %2383 = vmatpush1.bf16.msra.mxu0 %v2313
      %2384 = vmatprep.subr.bf16.mxu0 0
      %2385 = vmatpush1.bf16.msra.mxu0 %v2314
      %2386 = vmatprep.subr.bf16.mxu0 0
      %2387 = vmatpush1.bf16.msra.mxu0 %v2315
      %2388 = vmatprep.subr.bf16.mxu0 0
      %2389 = vmatpush1.bf16.msra.mxu0 0
      %2390 = vmatprep.subr.bf16.mxu0 0
      %2391 = vmatpush1.bf16.msra.mxu0 0
      %2392 = vmatprep.subr.bf16.mxu0 0
      %2393 = vmatpush1.bf16.msra.mxu0 0
      %2394 = vmatprep.subr.bf16.mxu0 0
      %2395 = vmatpush1.bf16.msra.mxu0 0
      %2396 = vmatprep.subr.bf16.mxu0 0
      %2397 = vmatpush1.bf16.msra.mxu0 0
      %2398 = vmatprep.subr.bf16.mxu0 0
      %2399 = vmatpush1.bf16.msra.mxu0 0
      %2400 = vmatprep.subr.bf16.mxu0 0
      %2401 = vmatpush1.bf16.msra.mxu0 0
      %2402 = vmatprep.subr.bf16.mxu0 0
      %2403 = vmatpush1.bf16.msra.mxu0 0
      %2404 = vmatprep.mubr.bf16.mxu0 0
      %2405 = vmatmul.mubr.bf16.gmra.mrb[0].mxu0 %v2307
      %v2406 = vpop.f32.mrb[0].mxu0
      %v2407 = vadd.f32 %v2366, %v2406
      %v2408 = vpop.f32.mrb[0].mxu0
      %v2409 = vpop.f32.mrb[0].mxu0
      %v2410 = vadd.f32 %v2369, %v2409
      %v2411 = vpop.f32.mrb[0].mxu0
      %2412 = vdwg.mxu0
      %v2413 = vpack.c.bf16 %v2298, %v2297
      %v2414 = vpack.c.bf16 %v784, %v783
      %v2415 = vpack.c.bf16 %v786, %v785
      %v2416 = vpack.c.bf16 %v788, %v787
      %v2417 = vpack.c.bf16 %v790, %v789
      %v2418 = vpack.c.bf16 %v792, %v791
      %v2419 = vpack.c.bf16 %v794, %v793
      %v2420 = vpack.c.bf16 %v796, %v795
      %v2421 = vpack.c.bf16 %v798, %v797
      %2422 = vmatprep.subr.bf16.mxu0 0
      %2423 = vmatpush1.bf16.msra.mxu0 %v2414
      %2424 = vmatprep.subr.bf16.mxu0 0
      %2425 = vmatpush1.bf16.msra.mxu0 %v2415
      %2426 = vmatprep.subr.bf16.mxu0 0
      %2427 = vmatpush1.bf16.msra.mxu0 %v2416
      %2428 = vmatprep.subr.bf16.mxu0 0
      %2429 = vmatpush1.bf16.msra.mxu0 %v2417
      %2430 = vmatprep.subr.bf16.mxu0 0
      %2431 = vmatpush1.bf16.msra.mxu0 %v2418
      %2432 = vmatprep.subr.bf16.mxu0 0
      %2433 = vmatpush1.bf16.msra.mxu0 %v2419
      %2434 = vmatprep.subr.bf16.mxu0 0
      %2435 = vmatpush1.bf16.msra.mxu0 %v2420
      %2436 = vmatprep.subr.bf16.mxu0 0
      %2437 = vmatpush1.bf16.msra.mxu0 %v2421
      %2438 = vmatprep.subr.bf16.mxu0 0
      %2439 = vmatpush1.bf16.msra.mxu0 0
      %2440 = vmatprep.subr.bf16.mxu0 0
      %2441 = vmatpush1.bf16.msra.mxu0 0
      %2442 = vmatprep.subr.bf16.mxu0 0
      %2443 = vmatpush1.bf16.msra.mxu0 0
      %2444 = vmatprep.subr.bf16.mxu0 0
      %2445 = vmatpush1.bf16.msra.mxu0 0
      %2446 = vmatprep.subr.bf16.mxu0 0
      %2447 = vmatpush1.bf16.msra.mxu0 0
      %2448 = vmatprep.subr.bf16.mxu0 0
      %2449 = vmatpush1.bf16.msra.mxu0 0
      %2450 = vmatprep.subr.bf16.mxu0 0
      %2451 = vmatpush1.bf16.msra.mxu0 0
      %2452 = vmatprep.subr.bf16.mxu0 0
      %2453 = vmatpush1.bf16.msra.mxu0 0
      %2454 = vmatprep.mubr.bf16.mxu0 0
      %2455 = vmatmul.mubr.bf16.gmra.mrb[0].mxu0 %v2413
      %v2456 = vpop.f32.mrb[0].mxu0
      %v2457 = vadd.f32 0.0, %v2456
      %v2458 = vpop.f32.mrb[0].mxu0
      %v2459 = vpop.f32.mrb[0].mxu0
      %v2460 = vadd.f32 0.0, %v2459
      %v2461 = vpop.f32.mrb[0].mxu0
      %2462 = vdwg.mxu0
      %v2463 = vadd.f32 %v2407, %v2457
      %v2464 = vadd.f32 %v2410, %v2460
      %v2465 = vlaneseq
      %v2466 = vshrl.u32 %v2465, 7
      %v2467 = vsub.s32 3, %v2466
      %v2468 = vrot.slane %v800, %v2467
      %v2469 = vadd.f32 %v2463, %v2468
      %v2470 = vadd.f32 %v2464, %v2468
      %v2471 = vmul.f32 %v2469, %v1042
      %v2472 = vmul.f32 %v2470, %v1047
      %v2473 = vadd.f32 %v2203, %v2471
      %v2474 = vadd.f32 %v2204, %v2472
      %v2475 = vsel %vm972, %v2473, 0.0
      %2476 = vadd.xlane.f32.xlu0 %v2475
      %v2477 = vpop.xlane.xlu0 %2476
      %v2478 = vsel %vm972, %v2474, 0.0
      %2479 = vadd.xlane.f32.xlu0 %v2478
      %v2480 = vpop.xlane.xlu0 %2479
      %v2481 = vmul.f32 %v2477, %v1443
      %v2482 = vmul.f32 %v2480, %v1443
      %v2483 = vsub.f32 %v2473, %v2481
      %v2484 = vsub.f32 %v2474, %v2482
      %v2485 = vmul.f32 %v2483, %v2483
      %v2486 = vmul.f32 %v2484, %v2484
      %v2487 = vsel %vm972, %v2485, 0.0
      %2488 = vadd.xlane.f32.xlu0 %v2487
      %v2489 = vpop.xlane.xlu0 %2488
      %v2490 = vsel %vm972, %v2486, 0.0
      %2491 = vadd.xlane.f32.xlu0 %v2490
      %v2492 = vpop.xlane.xlu0 %2491
      %v2493 = vmul.f32 %v2489, %v1443
      %v2494 = vmul.f32 %v2492, %v1443
      %v2495 = vadd.f32 %v2493, 1e-05
      %v2496 = vadd.f32 %v2494, 1e-05
      %v2497 = vrsqrt.pop %v2495
      %v2498 = vrsqrt.pop %v2496
      %v2499 = vmul.f32 %v2483, %v2497
      %v2500 = vmul.f32 %v2484, %v2498
      %v2501 = vlaneseq
      %v2502 = vshrl.u32 %v2501, 7
      %v2503 = vsub.s32 4, %v2502
      %v2504 = vrot.slane %v800, %v2503
      %v2505 = vmul.f32 %v2499, %v2504
      %v2506 = vmul.f32 %v2500, %v2504
      %v2507 = vlaneseq
      %v2508 = vshrl.u32 %v2507, 7
      %v2509 = vsub.s32 5, %v2508
      %v2510 = vrot.slane %v800, %v2509
      %v2511 = vadd.f32 %v2505, %v2510
      %v2512 = vadd.f32 %v2506, %v2510
      %v2513 = vmul.f32 %v2511, %v1042
      %v2514 = vmul.f32 %v2512, %v1047
      %v2515 = vpack.c.bf16 %v2514, %v2513
      %v2516 = vpack.c.bf16 %v802, %v801
      %v2517 = vpack.c.bf16 %v804, %v803
      %v2518 = vpack.c.bf16 %v806, %v805
      %v2519 = vpack.c.bf16 %v808, %v807
      %v2521 = vsel %vm972, %v2515, 0
      %2523 = vmatprep.subr.bf16.mxu0 0
      %2524 = vmatpush1.bf16.msra.mxu0 %v2516
      %2525 = vmatprep.subr.bf16.mxu0 0
      %2526 = vmatpush1.bf16.msra.mxu0 %v2517
      %2527 = vmatprep.subr.bf16.mxu0 0
      %2528 = vmatpush1.bf16.msra.mxu0 %v2518
      %2529 = vmatprep.subr.bf16.mxu0 0
      %2530 = vmatpush1.bf16.msra.mxu0 %v2519
      %2531 = vmatprep.subr.bf16.mxu0 0
      %2532 = vmatpush1.bf16.msra.mxu0 0
      %2533 = vmatprep.subr.bf16.mxu0 0
      %2534 = vmatpush1.bf16.msra.mxu0 0
      %2535 = vmatprep.subr.bf16.mxu0 0
      %2536 = vmatpush1.bf16.msra.mxu0 0
      %2537 = vmatprep.subr.bf16.mxu0 0
      %2538 = vmatpush1.bf16.msra.mxu0 0
      %2539 = vmatprep.subr.bf16.mxu0 0
      %2540 = vmatpush1.bf16.msra.mxu0 0
      %2541 = vmatprep.subr.bf16.mxu0 0
      %2542 = vmatpush1.bf16.msra.mxu0 0
      %2543 = vmatprep.subr.bf16.mxu0 0
      %2544 = vmatpush1.bf16.msra.mxu0 0
      %2545 = vmatprep.subr.bf16.mxu0 0
      %2546 = vmatpush1.bf16.msra.mxu0 0
      %2547 = vmatprep.subr.bf16.mxu0 0
      %2548 = vmatpush1.bf16.msra.mxu0 0
      %2549 = vmatprep.subr.bf16.mxu0 0
      %2550 = vmatpush1.bf16.msra.mxu0 0
      %2551 = vmatprep.subr.bf16.mxu0 0
      %2552 = vmatpush1.bf16.msra.mxu0 0
      %2553 = vmatprep.subr.bf16.mxu0 0
      %2554 = vmatpush1.bf16.msra.mxu0 0
      %2555 = vmatprep.mubr.bf16.mxu0 0
      %2556 = vmatmul.mubr.bf16.gmra.mrb[0].mxu0 %v2521
      %v2557 = vpop.f32.mrb[0].mxu0
      %v2558 = vadd.f32 0.0, %v2557
      %v2559 = vpop.f32.mrb[0].mxu0
      %v2560 = vpop.f32.mrb[0].mxu0
      %v2561 = vadd.f32 0.0, %v2560
      %v2562 = vpop.f32.mrb[0].mxu0
      %2563 = vdwg.mxu0
      %v2565 = vlaneseq
      %v2566 = vshrl.u32 %v2565, 7
      %v2567 = vsub.s32 0, %v2566
      %v2568 = vrot.slane %v809, %v2567
      %v2570 = vadd.f32 %v2558, %v2568
      %v2571 = vadd.f32 %v2561, %v2568
      %v2572 = vmul.f32 %v2570, %v1042
      %v2573 = vmul.f32 %v2571, %v1047
      %vm2574 = vcmask 15360
      %2575 = vst.msk [vmem:[%s575] sm:$0xff] %vm2574, %v2572
      %2576 = vst.msk [vmem:[%s575 + $0x8] sm:$0xff] %vm2574, %v2573
      %p2577 = scmp.lt.s32.totalorder %s27, 1
      %s2578 = scalar_select %p2577, %s27, 1
      %s2579 = smul.addr %s2578, 2
      %s2580 = smul.addr %s2579, 8
      %s2581 = scalar_lea.vmem %s16, %s2580
      // Predicated region
      $region85: #{tpu_custom_call.1} parent=83 // pred_check
        %p2582 = pneg %p401
      $region86: #{tpu_custom_call.1} parent=83 // pred_check_branch
        %2584 = sbr.rel (%p2582) target = $region88
      $region87: #{tpu_custom_call.1} parent=83 // pred_region
        _
      $region88: #{tpu_custom_call.1} parent=83 // pred_fallthru
        _
    $region84: #{tpu_custom_call.1} parent=5 // pred_fallthru
      _
    %p2585 = scmp.le.s32.totalorder 2, %s22
    // Predicated region
    $region89: #{tpu_custom_call.1} parent=5 // pred_check
      %p2586 = pneg %p2585
    $region90: #{tpu_custom_call.1} parent=5 // pred_check_branch
      %2588 = sbr.rel (%p2586) target = $region92
    $region91: #{tpu_custom_call.1} parent=5 // pred_region
      %s2589 = ssub.s32 %s22, 2
      // Predicated region
      $region93: #{tpu_custom_call.1} parent=91 // pred_check
        %p2590 = pneg %p407
      $region94: #{tpu_custom_call.1} parent=91 // pred_check_branch
        %2592 = sbr.rel (%p2590) target = $region96
      $region95: #{tpu_custom_call.1} parent=91 // pred_region
        %p2593 = scmp.lt.s32.totalorder %s28, 1
        %s2594 = scalar_select %p2593, %s28, 1
        %s2595 = smul.addr %s2594, 2
        %s2596 = smul.addr %s2595, 8
        %s2597 = scalar_lea.vmem %s16, %s2596
      $region96: #{tpu_custom_call.1} parent=91 // pred_fallthru
        _
    $region92: #{tpu_custom_call.1} parent=5 // pred_fallthru
      _
  $region6: #{tpu_custom_call.1} parent=0 // loop_footer
    %s26 = sadd.s32 1, %s22
  $region7: #{tpu_custom_call.1} parent=0 // loop_footer_branch
    %21 = sbr.rel target = $region3
  $region8: #{tpu_custom_call.1} parent=0 // loop_exit
    _

</llo_original>
